<compile_context>
chip_gen: v7x
topology: tpu7x:2x2x1
jax: 0.10.0
libtpu: 0.0.40
codegen_flags: <defaults>
</compile_context>

<pallas_src>
import jax
import jax.numpy as jnp
from jax.experimental import pallas as pl
from jax.experimental.pallas import tpu as pltpu


_NEG_SLOPE = 0.1  # nn.LeakyReLU(0.1) in the original module


def _leaky_relu(x, slope=_NEG_SLOPE):
    return jnp.where(x > 0, x, slope * x)


def _round_up(n, m):
    return ((n + m - 1) // m) * m


def _choose_tile(batch, tile_b):
    """Pick a lane-friendly batch tile: multiple of 128, >=2 tiles when batch
    allows it (so both v7x TensorCores get work), padding waste < one tile."""
    b128 = _round_up(batch, 128)
    tile_b = max(128, _round_up(tile_b, 128))
    two_way = _round_up(pl.cdiv(b128, 2), 128) if b128 >= 256 else b128
    return min(tile_b, two_way)


def _kernel(x_ref, w_in_ref, w_mid_ref, w_out_ref, b_mid_ref, b_out_ref, out_ref):
    # x_ref:     (TILE_B, Din)  bf16   streamed batch tile (batch-major, contiguous DMA)
    # w_in_ref:  (Din, P)       bf16   layer-1 weight, (in, out) layout, out padded to P
    # w_mid_ref: (4, P, P)      bf16   layers 2..5, (in, out) layout, zero-padded
    # w_out_ref: (P, Din)       bf16   layer-6 weight, in padded to P
    # b_mid_ref: (5, 1, P)      f32    biases of layers 1..5 as row vectors (padded)
    # b_out_ref: (1, Din)       f32    layer-6 bias
    # out_ref:   (TILE_B, Din)  bf16
    a = x_ref[...]                                                  # bf16

    # Layer 1 (Linear -> LeakyReLU); Dropout is identity in eval mode.
    h = jnp.dot(a, w_in_ref[...], preferred_element_type=jnp.float32) + b_mid_ref[0]
    a = _leaky_relu(h).astype(jnp.bfloat16)

    # Layers 2..5: zero-padded weight rows/cols and zero biases keep padded
    # activation columns exactly zero through LeakyReLU.
    for i in range(4):
        h = jnp.dot(a, w_mid_ref[i], preferred_element_type=jnp.float32) + b_mid_ref[i + 1]
        a = _leaky_relu(h).astype(jnp.bfloat16)

    # Layer 6 + Sigmoid (output columns are exactly Din, no slicing needed).
    y = jnp.dot(a, w_out_ref[...], preferred_element_type=jnp.float32) + b_out_ref[...]
    out_ref[...] = jax.nn.sigmoid(y).astype(out_ref.dtype)


def init_params(key, input_dim, hidden_dim, z_dim):
    """PyTorch-style uniform(-1/sqrt(fan_in), 1/sqrt(fan_in)) init.
    Weights are stored in PyTorch nn.Linear layout: (out_features, in_features)."""
    dims = [
        (hidden_dim, input_dim),   # encoder Linear 1
        (hidden_dim, hidden_dim),  # encoder Linear 2
        (z_dim, hidden_dim),       # encoder Linear 3
        (hidden_dim, z_dim),       # decoder Linear 1
        (hidden_dim, hidden_dim),  # decoder Linear 2
        (input_dim, hidden_dim),   # decoder Linear 3
    ]
    params = []
    keys = jax.random.split(key, 2 * len(dims))
    for i, (fan_out, fan_in) in enumerate(dims):
        bound = 1.0 / (fan_in ** 0.5)
        w = jax.random.uniform(keys[2 * i], (fan_out, fan_in),
                               minval=-bound, maxval=bound, dtype=jnp.float32)
        b = jax.random.uniform(keys[2 * i + 1], (fan_out,),
                               minval=-bound, maxval=bound, dtype=jnp.float32)
        params.append((w, b))
    return params


def pack_params(params):
    """Transpose weights to (in, out) layout, zero-pad internal dims to a common P,
    and pack layers 2..5 into one bf16 buffer. Layer-1 / layer-6 weights get their
    own exactly-shaped buffers so the kernel never slices weights at run time."""
    (w1, b1), (w2, b2), (w3, b3), (w4, b4), (w5, b5), (w6, b6) = params
    hidden_dim, input_dim = w1.shape
    z_dim = w3.shape[0]
    P = _round_up(max(hidden_dim, z_dim), 8)
    bf = jnp.bfloat16

    def pad_t(w, rows, cols):
        wt = w.T.astype(bf)
        return jnp.zeros((rows, cols), bf).at[:wt.shape[0], :wt.shape[1]].set(wt)

    def pad_b(b, width):
        return jnp.zeros((1, width), jnp.float32).at[0, :b.shape[0]].set(b)

    w_in = pad_t(w1, input_dim, P)                                   # (Din, P)
    w_mid = jnp.stack([pad_t(w, P, P) for w in (w2, w3, w4, w5)])    # (4, P, P)
    w_out = pad_t(w6, P, input_dim)                                  # (P, Din)
    b_mid = jnp.stack([pad_b(b, P) for b in (b1, b2, b3, b4, b5)])   # (5, 1, P)
    b_out = pad_b(b6, input_dim)                                     # (1, Din)
    return w_in, w_mid, w_out, b_mid, b_out


def singleae_forward(x, packed, *, tile_b=4096):
    """x: (batch, input_dim) -> (batch, input_dim) bf16 reconstruction."""
    w_in, w_mid, w_out, b_mid, b_out = packed
    batch, input_dim = x.shape
    P = w_in.shape[1]

    x = x.astype(jnp.bfloat16)                 # bf16 streaming I/O (no-op if already bf16)
    tb = _choose_tile(batch, tile_b)
    b_pad = _round_up(batch, tb)
    if b_pad != batch:
        x = jnp.pad(x, ((0, b_pad - batch), (0, 0)))

    out = pl.pallas_call(
        _kernel,
        out_shape=jax.ShapeDtypeStruct((b_pad, input_dim), jnp.bfloat16),
        grid_spec=pltpu.PrefetchScalarGridSpec(
            num_scalar_prefetch=0,
            grid=(b_pad // tb,),
            in_specs=[
                # streamed, double-buffered contiguous batch tiles
                pl.BlockSpec((tb, input_dim), lambda i: (i, 0)),
                # weights / biases: constant block index -> DMA'd once, VMEM-resident
                pl.BlockSpec((input_dim, P), lambda i: (0, 0)),
                pl.BlockSpec((4, P, P), lambda i: (0, 0, 0)),
                pl.BlockSpec((P, input_dim), lambda i: (0, 0)),
                pl.BlockSpec((5, 1, P), lambda i: (0, 0, 0)),
                pl.BlockSpec((1, input_dim), lambda i: (0, 0)),
            ],
            out_specs=pl.BlockSpec((tb, input_dim), lambda i: (i, 0)),
        ),
        compiler_params=pltpu.CompilerParams(
            dimension_semantics=("parallel",),   # shards batch tiles across TCs on v7x
            vmem_limit_bytes=32 * 1024 * 1024,   # safe on v5e/v6e/v7x
        ),
    )(x, w_in, w_mid, w_out, b_mid, b_out)

    return out[:batch]


def singleae_reference(x, params):
    """Pure-JAX reference mirroring the kernel math (bf16 weights & activations,
    f32 accumulation), batch-major."""
    a = x.astype(jnp.bfloat16)
    n = len(params)
    for i, (w, b) in enumerate(params):
        h = jnp.dot(a, w.T.astype(jnp.bfloat16),
                    preferred_element_type=jnp.float32) + b[None, :]
        if i < n - 1:
            a = _leaky_relu(h).astype(jnp.bfloat16)
        else:
            a = jax.nn.sigmoid(h)
    return a  # f32


if __name__ == "__main__":
    # Small shapes consistent with the module: hidden=32, z=16; batch=640 exercises
    # the >=2-tile grid (tb=384 -> 2 tiles) plus batch padding (640 -> 768).
    batch, input_dim, hidden_dim, z_dim = 640, 32, 32, 16

    key = jax.random.PRNGKey(0)
    k_x, k_p = jax.random.split(key)
    x = jax.random.normal(k_x, (batch, input_dim), dtype=jnp.float32).astype(jnp.bfloat16)
    params = init_params(k_p, input_dim, hidden_dim, z_dim)
    packed = pack_params(params)

    out = jax.block_until_ready(singleae_forward(x, packed, tile_b=4096))
    ref = singleae_reference(x, params)

    assert out.shape == (batch, input_dim)
    out_f = out.astype(jnp.float32)
    max_err = float(jnp.max(jnp.abs(out_f - ref)))
    assert jnp.allclose(out_f, ref, atol=4e-3, rtol=4e-3), max_err

    print("KERNEL_OK")
</pallas_src>

<mosaic_0001>
module attributes {stable_mosaic.version = 11 : i64} {
  func.func @_kernel(%arg0: i32, %arg1: memref<384x32xbf16, #tpu.memory_space<vmem>>, %arg2: memref<32x32xbf16, #tpu.memory_space<vmem>>, %arg3: memref<4x32x32xbf16, #tpu.memory_space<vmem>>, %arg4: memref<32x32xbf16, #tpu.memory_space<vmem>>, %arg5: memref<5x1x32xf32, #tpu.memory_space<vmem>>, %arg6: memref<1x32xf32, #tpu.memory_space<vmem>>, %arg7: memref<384x32xbf16, #tpu.memory_space<vmem>>) attributes {dimension_semantics = [#tpu.dimension_semantics<parallel>], iteration_bounds = array<i64: 2>, scalar_prefetch = 0 : i64, scratch_operands = 0 : i64, tpu.core_type = #tpu.core_type<tc>, window_params = [{transform_indices = @transform_0, window_bounds = array<i64: 384, 32>}, {pipeline_mode = #tpu.pipeline_mode<synchronous>, transform_indices = @transform_1, window_bounds = array<i64: 32, 32>}, {pipeline_mode = #tpu.pipeline_mode<synchronous>, transform_indices = @transform_2, window_bounds = array<i64: 4, 32, 32>}, {pipeline_mode = #tpu.pipeline_mode<synchronous>, transform_indices = @transform_3, window_bounds = array<i64: 32, 32>}, {pipeline_mode = #tpu.pipeline_mode<synchronous>, transform_indices = @transform_4, window_bounds = array<i64: 5, 1, 32>}, {pipeline_mode = #tpu.pipeline_mode<synchronous>, transform_indices = @transform_5, window_bounds = array<i64: 1, 32>}, {transform_indices = @transform_6, window_bounds = array<i64: 384, 32>}]} {
    %c0 = arith.constant 0 : index
    %c0_0 = arith.constant 0 : index
    %0 = vector.load %arg1[%c0, %c0_0] : memref<384x32xbf16, #tpu.memory_space<vmem>>, vector<384x32xbf16>
    %c0_1 = arith.constant 0 : index
    %c0_2 = arith.constant 0 : index
    %1 = vector.load %arg2[%c0_1, %c0_2] : memref<32x32xbf16, #tpu.memory_space<vmem>>, vector<32x32xbf16>
    %cst = arith.constant dense<0.000000e+00> : vector<384x32xf32>
    %2 = tpu.matmul %0, %1, %cst {dimension_numbers = #tpu.dot_dimension_numbers<[1], [0], [0], [1], [0, 0, 1, 1], [], []>} : vector<384x32xbf16>, vector<32x32xbf16>, vector<384x32xf32> -> vector<384x32xf32>
    %c0_3 = arith.constant 0 : index
    %c0_4 = arith.constant 0 : index
    %c0_5 = arith.constant 0 : index
    %3 = vector.load %arg5[%c0_3, %c0_4, %c0_5] : memref<5x1x32xf32, #tpu.memory_space<vmem>>, vector<1x1x32xf32>
    %4 = vector.shape_cast %3 : vector<1x1x32xf32> to vector<1x32xf32>
    %5 = vector.broadcast %4 : vector<1x32xf32> to vector<384x32xf32>
    %6 = arith.addf %2, %5 : vector<384x32xf32>
    %cst_6 = arith.constant 0.000000e+00 : f32
    %7 = vector.broadcast %cst_6 : f32 to vector<384x32xf32>
    %8 = arith.cmpf ogt, %6, %7 : vector<384x32xf32>
    %cst_7 = arith.constant 1.000000e-01 : f32
    %9 = vector.broadcast %cst_7 : f32 to vector<384x32xf32>
    %10 = arith.mulf %9, %6 : vector<384x32xf32>
    %11 = arith.select %8, %6, %10 : vector<384x32xi1>, vector<384x32xf32>
    %12 = arith.truncf %11 : vector<384x32xf32> to vector<384x32xbf16>
    %c0_8 = arith.constant 0 : index
    %c0_9 = arith.constant 0 : index
    %c0_10 = arith.constant 0 : index
    %13 = vector.load %arg3[%c0_8, %c0_9, %c0_10] : memref<4x32x32xbf16, #tpu.memory_space<vmem>>, vector<1x32x32xbf16>
    %14 = vector.shape_cast %13 : vector<1x32x32xbf16> to vector<32x32xbf16>
    %cst_11 = arith.constant dense<0.000000e+00> : vector<384x32xf32>
    %15 = tpu.matmul %12, %14, %cst_11 {dimension_numbers = #tpu.dot_dimension_numbers<[1], [0], [0], [1], [0, 0, 1, 1], [], []>} : vector<384x32xbf16>, vector<32x32xbf16>, vector<384x32xf32> -> vector<384x32xf32>
    %c1 = arith.constant 1 : index
    %c0_12 = arith.constant 0 : index
    %c0_13 = arith.constant 0 : index
    %16 = vector.load %arg5[%c1, %c0_12, %c0_13] : memref<5x1x32xf32, #tpu.memory_space<vmem>>, vector<1x1x32xf32>
    %17 = vector.shape_cast %16 : vector<1x1x32xf32> to vector<1x32xf32>
    %18 = vector.broadcast %17 : vector<1x32xf32> to vector<384x32xf32>
    %19 = arith.addf %15, %18 : vector<384x32xf32>
    %cst_14 = arith.constant 0.000000e+00 : f32
    %20 = vector.broadcast %cst_14 : f32 to vector<384x32xf32>
    %21 = arith.cmpf ogt, %19, %20 : vector<384x32xf32>
    %cst_15 = arith.constant 1.000000e-01 : f32
    %22 = vector.broadcast %cst_15 : f32 to vector<384x32xf32>
    %23 = arith.mulf %22, %19 : vector<384x32xf32>
    %24 = arith.select %21, %19, %23 : vector<384x32xi1>, vector<384x32xf32>
    %25 = arith.truncf %24 : vector<384x32xf32> to vector<384x32xbf16>
    %c1_16 = arith.constant 1 : index
    %c0_17 = arith.constant 0 : index
    %c0_18 = arith.constant 0 : index
    %26 = vector.load %arg3[%c1_16, %c0_17, %c0_18] : memref<4x32x32xbf16, #tpu.memory_space<vmem>>, vector<1x32x32xbf16>
    %27 = vector.shape_cast %26 : vector<1x32x32xbf16> to vector<32x32xbf16>
    %cst_19 = arith.constant dense<0.000000e+00> : vector<384x32xf32>
    %28 = tpu.matmul %25, %27, %cst_19 {dimension_numbers = #tpu.dot_dimension_numbers<[1], [0], [0], [1], [0, 0, 1, 1], [], []>} : vector<384x32xbf16>, vector<32x32xbf16>, vector<384x32xf32> -> vector<384x32xf32>
    %c2 = arith.constant 2 : index
    %c0_20 = arith.constant 0 : index
    %c0_21 = arith.constant 0 : index
    %29 = vector.load %arg5[%c2, %c0_20, %c0_21] : memref<5x1x32xf32, #tpu.memory_space<vmem>>, vector<1x1x32xf32>
    %30 = vector.shape_cast %29 : vector<1x1x32xf32> to vector<1x32xf32>
    %31 = vector.broadcast %30 : vector<1x32xf32> to vector<384x32xf32>
    %32 = arith.addf %28, %31 : vector<384x32xf32>
    %cst_22 = arith.constant 0.000000e+00 : f32
    %33 = vector.broadcast %cst_22 : f32 to vector<384x32xf32>
    %34 = arith.cmpf ogt, %32, %33 : vector<384x32xf32>
    %cst_23 = arith.constant 1.000000e-01 : f32
    %35 = vector.broadcast %cst_23 : f32 to vector<384x32xf32>
    %36 = arith.mulf %35, %32 : vector<384x32xf32>
    %37 = arith.select %34, %32, %36 : vector<384x32xi1>, vector<384x32xf32>
    %38 = arith.truncf %37 : vector<384x32xf32> to vector<384x32xbf16>
    %c2_24 = arith.constant 2 : index
    %c0_25 = arith.constant 0 : index
    %c0_26 = arith.constant 0 : index
    %39 = vector.load %arg3[%c2_24, %c0_25, %c0_26] : memref<4x32x32xbf16, #tpu.memory_space<vmem>>, vector<1x32x32xbf16>
    %40 = vector.shape_cast %39 : vector<1x32x32xbf16> to vector<32x32xbf16>
    %cst_27 = arith.constant dense<0.000000e+00> : vector<384x32xf32>
    %41 = tpu.matmul %38, %40, %cst_27 {dimension_numbers = #tpu.dot_dimension_numbers<[1], [0], [0], [1], [0, 0, 1, 1], [], []>} : vector<384x32xbf16>, vector<32x32xbf16>, vector<384x32xf32> -> vector<384x32xf32>
    %c3 = arith.constant 3 : index
    %c0_28 = arith.constant 0 : index
    %c0_29 = arith.constant 0 : index
    %42 = vector.load %arg5[%c3, %c0_28, %c0_29] : memref<5x1x32xf32, #tpu.memory_space<vmem>>, vector<1x1x32xf32>
    %43 = vector.shape_cast %42 : vector<1x1x32xf32> to vector<1x32xf32>
    %44 = vector.broadcast %43 : vector<1x32xf32> to vector<384x32xf32>
    %45 = arith.addf %41, %44 : vector<384x32xf32>
    %cst_30 = arith.constant 0.000000e+00 : f32
    %46 = vector.broadcast %cst_30 : f32 to vector<384x32xf32>
    %47 = arith.cmpf ogt, %45, %46 : vector<384x32xf32>
    %cst_31 = arith.constant 1.000000e-01 : f32
    %48 = vector.broadcast %cst_31 : f32 to vector<384x32xf32>
    %49 = arith.mulf %48, %45 : vector<384x32xf32>
    %50 = arith.select %47, %45, %49 : vector<384x32xi1>, vector<384x32xf32>
    %51 = arith.truncf %50 : vector<384x32xf32> to vector<384x32xbf16>
    %c3_32 = arith.constant 3 : index
    %c0_33 = arith.constant 0 : index
    %c0_34 = arith.constant 0 : index
    %52 = vector.load %arg3[%c3_32, %c0_33, %c0_34] : memref<4x32x32xbf16, #tpu.memory_space<vmem>>, vector<1x32x32xbf16>
    %53 = vector.shape_cast %52 : vector<1x32x32xbf16> to vector<32x32xbf16>
    %cst_35 = arith.constant dense<0.000000e+00> : vector<384x32xf32>
    %54 = tpu.matmul %51, %53, %cst_35 {dimension_numbers = #tpu.dot_dimension_numbers<[1], [0], [0], [1], [0, 0, 1, 1], [], []>} : vector<384x32xbf16>, vector<32x32xbf16>, vector<384x32xf32> -> vector<384x32xf32>
    %c4 = arith.constant 4 : index
    %c0_36 = arith.constant 0 : index
    %c0_37 = arith.constant 0 : index
    %55 = vector.load %arg5[%c4, %c0_36, %c0_37] : memref<5x1x32xf32, #tpu.memory_space<vmem>>, vector<1x1x32xf32>
    %56 = vector.shape_cast %55 : vector<1x1x32xf32> to vector<1x32xf32>
    %57 = vector.broadcast %56 : vector<1x32xf32> to vector<384x32xf32>
    %58 = arith.addf %54, %57 : vector<384x32xf32>
    %cst_38 = arith.constant 0.000000e+00 : f32
    %59 = vector.broadcast %cst_38 : f32 to vector<384x32xf32>
    %60 = arith.cmpf ogt, %58, %59 : vector<384x32xf32>
    %cst_39 = arith.constant 1.000000e-01 : f32
    %61 = vector.broadcast %cst_39 : f32 to vector<384x32xf32>
    %62 = arith.mulf %61, %58 : vector<384x32xf32>
    %63 = arith.select %60, %58, %62 : vector<384x32xi1>, vector<384x32xf32>
    %64 = arith.truncf %63 : vector<384x32xf32> to vector<384x32xbf16>
    %c0_40 = arith.constant 0 : index
    %c0_41 = arith.constant 0 : index
    %65 = vector.load %arg4[%c0_40, %c0_41] : memref<32x32xbf16, #tpu.memory_space<vmem>>, vector<32x32xbf16>
    %cst_42 = arith.constant dense<0.000000e+00> : vector<384x32xf32>
    %66 = tpu.matmul %64, %65, %cst_42 {dimension_numbers = #tpu.dot_dimension_numbers<[1], [0], [0], [1], [0, 0, 1, 1], [], []>} : vector<384x32xbf16>, vector<32x32xbf16>, vector<384x32xf32> -> vector<384x32xf32>
    %c0_43 = arith.constant 0 : index
    %c0_44 = arith.constant 0 : index
    %67 = vector.load %arg6[%c0_43, %c0_44] : memref<1x32xf32, #tpu.memory_space<vmem>>, vector<1x32xf32>
    %68 = vector.broadcast %67 : vector<1x32xf32> to vector<384x32xf32>
    %69 = arith.addf %66, %68 : vector<384x32xf32>
    %70 = arith.negf %69 : vector<384x32xf32>
    %71 = math.exp %70 : vector<384x32xf32>
    %cst_45 = arith.constant 1.000000e+00 : f32
    %72 = vector.broadcast %cst_45 : f32 to vector<384x32xf32>
    %73 = arith.addf %72, %71 : vector<384x32xf32>
    %74 = arith.divf %72, %73 : vector<384x32xf32>
    %75 = arith.truncf %74 : vector<384x32xf32> to vector<384x32xbf16>
    %c0_46 = arith.constant 0 : index
    %c0_47 = arith.constant 0 : index
    %76 = vector.load %arg7[%c0_46, %c0_47] : memref<384x32xbf16, #tpu.memory_space<vmem>>, vector<384x32xbf16>
    tpu.vector_store %arg7[%c0_46, %c0_47], %75 {strides = array<i32>} : memref<384x32xbf16, #tpu.memory_space<vmem>>, vector<384x32xbf16>,
    return
  }
  func.func @transform_0(%arg0: i32) -> (i32, i32) {
    %c0_i32 = arith.constant 0 : i32
    %c0_i32_0 = arith.constant 0 : i32
    return %arg0, %c0_i32 : i32, i32
  }
  func.func @transform_1(%arg0: i32) -> (i32, i32) {
    %c0_i32 = arith.constant 0 : i32
    %c0_i32_0 = arith.constant 0 : i32
    %c0_i32_1 = arith.constant 0 : i32
    return %c0_i32, %c0_i32_0 : i32, i32
  }
  func.func @transform_2(%arg0: i32) -> (i32, i32, i32) {
    %c0_i32 = arith.constant 0 : i32
    %c0_i32_0 = arith.constant 0 : i32
    %c0_i32_1 = arith.constant 0 : i32
    %c0_i32_2 = arith.constant 0 : i32
    return %c0_i32, %c0_i32_0, %c0_i32_1 : i32, i32, i32
  }
  func.func @transform_3(%arg0: i32) -> (i32, i32) {
    %c0_i32 = arith.constant 0 : i32
    %c0_i32_0 = arith.constant 0 : i32
    %c0_i32_1 = arith.constant 0 : i32
    return %c0_i32, %c0_i32_0 : i32, i32
  }
  func.func @transform_4(%arg0: i32) -> (i32, i32, i32) {
    %c0_i32 = arith.constant 0 : i32
    %c0_i32_0 = arith.constant 0 : i32
    %c0_i32_1 = arith.constant 0 : i32
    %c0_i32_2 = arith.constant 0 : i32
    return %c0_i32, %c0_i32_0, %c0_i32_1 : i32, i32, i32
  }
  func.func @transform_5(%arg0: i32) -> (i32, i32) {
    %c0_i32 = arith.constant 0 : i32
    %c0_i32_0 = arith.constant 0 : i32
    %c0_i32_1 = arith.constant 0 : i32
    return %c0_i32, %c0_i32_0 : i32, i32
  }
  func.func @transform_6(%arg0: i32) -> (i32, i32) {
    %c0_i32 = arith.constant 0 : i32
    %c0_i32_0 = arith.constant 0 : i32
    return %arg0, %c0_i32 : i32, i32
  }
}

</mosaic_0001>

<llo_original>
// kernel: tpu_custom_call.1
$region0: #{tpu_custom_call.1}
  #allocation0 [shape = 'u32[]', space=smem, size = 0x4, offset = 0x4, fixed_abs, tag = 'smem constant byte address 0x4 - core index']
  #allocation1 [shape = 'u32[144,128]{1,0:T(1,128)}', space=vmem, size = 0x12000, scoped, tag = 'internal scratch']
  %s0 = inlined_call_operand.vmem [shape: bf16[768,32], index: 0, kind: input, shape index: {}]
  %s1 = inlined_call_operand.vmem [shape: bf16[32,32], index: 1, kind: input, shape index: {}]
  %s2 = inlined_call_operand.vmem [shape: bf16[4,32,32], index: 2, kind: input, shape index: {}]
  %s3 = inlined_call_operand.vmem [shape: bf16[32,32], index: 3, kind: input, shape index: {}]
  %s4 = inlined_call_operand.vmem [shape: f32[5,1,32], index: 4, kind: input, shape index: {}]
  %s5 = inlined_call_operand.vmem [shape: f32[1,32], index: 5, kind: input, shape index: {}]
  %s6 = inlined_call_operand.vmem [shape: bf16[768,32], index: 6, kind: output, shape index: {}]
  %s7 = sld [smem:[#allocation0]]
  $region57: #{tpu_custom_call.1} parent=0
    _
  %s9 = ssub.s32 1, %s7
  %s10 = scalar_select 0, %s9, %s7
  loop: start=0, step=1, limit=4
  $region2: #{tpu_custom_call.1} parent=0 // loop_pre_header
    _
  $region3: #{tpu_custom_call.1} parent=0 // loop_header
    %s12 = sphi 0, %s16
    %p13 = scmp.ge.s32.totalorder %s12, 4
    %s22 = sphi 0, %s24
    %s25 = sphi 0, %s22
    %s26 = sphi 0, %s25
    %s42 = sphi 0, %s26
    %s46 = sphi 0, %s46
    %s48 = sphi 0, %s46
    %s49 = sphi 0, %s48
    %s63 = sphi 0, %s49
    %s67 = sphi 0, %s67
    %s69 = sphi 0, %s67
    %s70 = sphi 0, %s69
    %s84 = sphi 0, %s70
    %s88 = sphi 0, %s88
    %s90 = sphi 0, %s88
    %s91 = sphi 0, %s90
    %s105 = sphi 0, %s91
    %s109 = sphi 0, %s109
    %s111 = sphi 0, %s109
    %s112 = sphi 0, %s111
    %s126 = sphi 0, %s112
    %s130 = sphi 0, %s130
    %s132 = sphi 0, %s130
    %s133 = sphi 0, %s132
    %s147 = sphi 0, %s133
    %s153 = sphi 0, %s155
    %s156 = sphi 0, %s153
    %s157 = sphi 0, %s156
    %s173 = sphi 0, %s157
  $region4: #{tpu_custom_call.1} parent=0 // loop_header_branch
    %15 = sbr.rel (%p13) target = $region8
  $region5: #{tpu_custom_call.1} parent=0 // loop_body
    %s17 = ssub.s32 %s12, 1
    %s18 = ssub.s32 %s12, 2
    %s19 = sadd.s32 %s12, 1
    %s20 = ssub.s32 %s12, %s19
    %p21 = scmp.eq.s32.totalorder %s20, 0
    %s23 = sadd.s32 %s22, 1
    %s24 = scalar_select %p21, %s22, %s23
    %p27 = pneg %p21
    %p28 = scmp.eq.s32.totalorder %s12, 1
    %p29 = por %p27, %p28
    %p30 = scmp.ne.s32.totalorder %s22, %s25
    %p31 = scmp.eq.s32.totalorder %s12, 0
    %p32 = por %p30, %p31
    %p33 = scmp.ne.s32.totalorder %s22, %s25
    %p34 = scmp.eq.s32.totalorder %s17, 1
    %p35 = por %p33, %p34
    %p36 = scmp.ne.s32.totalorder %s25, %s26
    %p37 = scmp.eq.s32.totalorder %s17, 0
    %p38 = por %p36, %p37
    %p39 = scmp.ne.s32.totalorder %s25, %s26
    %p40 = scmp.eq.s32.totalorder %s18, 1
    %p41 = por %p39, %p40
    %p43 = scmp.ne.s32.totalorder %s26, %s42
    %p44 = scmp.eq.s32.totalorder %s18, 0
    %p45 = por %p43, %p44
    %s47 = sadd.s32 %s46, 1
    %p50 = scmp.eq.s32.totalorder %s12, 1
    %p51 = scmp.ne.s32.totalorder %s46, %s48
    %p52 = scmp.eq.s32.totalorder %s12, 0
    %p53 = por %p51, %p52
    %p54 = scmp.ne.s32.totalorder %s46, %s48
    %p55 = scmp.eq.s32.totalorder %s17, 1
    %p56 = por %p54, %p55
    %p57 = scmp.ne.s32.totalorder %s48, %s49
    %p58 = scmp.eq.s32.totalorder %s17, 0
    %p59 = por %p57, %p58
    %p60 = scmp.ne.s32.totalorder %s48, %s49
    %p61 = scmp.eq.s32.totalorder %s18, 1
    %p62 = por %p60, %p61
    %p64 = scmp.ne.s32.totalorder %s49, %s63
    %p65 = scmp.eq.s32.totalorder %s18, 0
    %p66 = por %p64, %p65
    %s68 = sadd.s32 %s67, 1
    %p71 = scmp.eq.s32.totalorder %s12, 1
    %p72 = scmp.ne.s32.totalorder %s67, %s69
    %p73 = scmp.eq.s32.totalorder %s12, 0
    %p74 = por %p72, %p73
    %p75 = scmp.ne.s32.totalorder %s67, %s69
    %p76 = scmp.eq.s32.totalorder %s17, 1
    %p77 = por %p75, %p76
    %p78 = scmp.ne.s32.totalorder %s69, %s70
    %p79 = scmp.eq.s32.totalorder %s17, 0
    %p80 = por %p78, %p79
    %p81 = scmp.ne.s32.totalorder %s69, %s70
    %p82 = scmp.eq.s32.totalorder %s18, 1
    %p83 = por %p81, %p82
    %p85 = scmp.ne.s32.totalorder %s70, %s84
    %p86 = scmp.eq.s32.totalorder %s18, 0
    %p87 = por %p85, %p86
    %s89 = sadd.s32 %s88, 1
    %p92 = scmp.eq.s32.totalorder %s12, 1
    %p93 = scmp.ne.s32.totalorder %s88, %s90
    %p94 = scmp.eq.s32.totalorder %s12, 0
    %p95 = por %p93, %p94
    %p96 = scmp.ne.s32.totalorder %s88, %s90
    %p97 = scmp.eq.s32.totalorder %s17, 1
    %p98 = por %p96, %p97
    %p99 = scmp.ne.s32.totalorder %s90, %s91
    %p100 = scmp.eq.s32.totalorder %s17, 0
    %p101 = por %p99, %p100
    %p102 = scmp.ne.s32.totalorder %s90, %s91
    %p103 = scmp.eq.s32.totalorder %s18, 1
    %p104 = por %p102, %p103
    %p106 = scmp.ne.s32.totalorder %s91, %s105
    %p107 = scmp.eq.s32.totalorder %s18, 0
    %p108 = por %p106, %p107
    %s110 = sadd.s32 %s109, 1
    %p113 = scmp.eq.s32.totalorder %s12, 1
    %p114 = scmp.ne.s32.totalorder %s109, %s111
    %p115 = scmp.eq.s32.totalorder %s12, 0
    %p116 = por %p114, %p115
    %p117 = scmp.ne.s32.totalorder %s109, %s111
    %p118 = scmp.eq.s32.totalorder %s17, 1
    %p119 = por %p117, %p118
    %p120 = scmp.ne.s32.totalorder %s111, %s112
    %p121 = scmp.eq.s32.totalorder %s17, 0
    %p122 = por %p120, %p121
    %p123 = scmp.ne.s32.totalorder %s111, %s112
    %p124 = scmp.eq.s32.totalorder %s18, 1
    %p125 = por %p123, %p124
    %p127 = scmp.ne.s32.totalorder %s112, %s126
    %p128 = scmp.eq.s32.totalorder %s18, 0
    %p129 = por %p127, %p128
    %s131 = sadd.s32 %s130, 1
    %p134 = scmp.eq.s32.totalorder %s12, 1
    %p135 = scmp.ne.s32.totalorder %s130, %s132
    %p136 = scmp.eq.s32.totalorder %s12, 0
    %p137 = por %p135, %p136
    %p138 = scmp.ne.s32.totalorder %s130, %s132
    %p139 = scmp.eq.s32.totalorder %s17, 1
    %p140 = por %p138, %p139
    %p141 = scmp.ne.s32.totalorder %s132, %s133
    %p142 = scmp.eq.s32.totalorder %s17, 0
    %p143 = por %p141, %p142
    %p144 = scmp.ne.s32.totalorder %s132, %s133
    %p145 = scmp.eq.s32.totalorder %s18, 1
    %p146 = por %p144, %p145
    %p148 = scmp.ne.s32.totalorder %s133, %s147
    %p149 = scmp.eq.s32.totalorder %s18, 0
    %p150 = por %p148, %p149
    %s151 = ssub.s32 %s12, %s19
    %p152 = scmp.eq.s32.totalorder %s151, 0
    %s154 = sadd.s32 %s153, 1
    %s155 = scalar_select %p152, %s153, %s154
    %p158 = pneg %p152
    %p159 = scmp.eq.s32.totalorder %s12, 1
    %p160 = por %p158, %p159
    %p161 = scmp.ne.s32.totalorder %s153, %s156
    %p162 = scmp.eq.s32.totalorder %s12, 0
    %p163 = por %p161, %p162
    %p164 = scmp.ne.s32.totalorder %s153, %s156
    %p165 = scmp.eq.s32.totalorder %s17, 1
    %p166 = por %p164, %p165
    %p167 = scmp.ne.s32.totalorder %s156, %s157
    %p168 = scmp.eq.s32.totalorder %s17, 0
    %p169 = por %p167, %p168
    %p170 = scmp.ne.s32.totalorder %s156, %s157
    %p171 = scmp.eq.s32.totalorder %s18, 1
    %p172 = por %p170, %p171
    %p174 = scmp.ne.s32.totalorder %s157, %s173
    %p175 = scmp.eq.s32.totalorder %s18, 0
    %p176 = por %p174, %p175
    %p177 = scmp.le.s32.totalorder 1, %s12
    %p178 = scmp.lt.s32.totalorder %s12, 3
    %p179 = pnand %p177, %p178
    %p180 = pneg %p179
    // Predicated region
    $region9: #{tpu_custom_call.1} parent=5 // pred_check
      _
    $region10: #{tpu_custom_call.1} parent=5 // pred_check_branch
      %182 = sbr.rel (%p179) target = $region12
    $region11: #{tpu_custom_call.1} parent=5 // pred_region
      %s183 = ssub.s32 %s12, 1
      // Predicated region
      $region13: #{tpu_custom_call.1} parent=11 // pred_check
        %p184 = pneg %p59
      $region14: #{tpu_custom_call.1} parent=11 // pred_check_branch
        %186 = sbr.rel (%p184) target = $region16
      $region15: #{tpu_custom_call.1} parent=11 // pred_region
        _
      $region16: #{tpu_custom_call.1} parent=11 // pred_fallthru
        _
      // Predicated region
      $region17: #{tpu_custom_call.1} parent=11 // pred_check
        %p187 = pneg %p80
      $region18: #{tpu_custom_call.1} parent=11 // pred_check_branch
        %189 = sbr.rel (%p187) target = $region20
      $region19: #{tpu_custom_call.1} parent=11 // pred_region
        _
      $region20: #{tpu_custom_call.1} parent=11 // pred_fallthru
        _
      // Predicated region
      $region21: #{tpu_custom_call.1} parent=11 // pred_check
        %p190 = pneg %p101
      $region22: #{tpu_custom_call.1} parent=11 // pred_check_branch
        %192 = sbr.rel (%p190) target = $region24
      $region23: #{tpu_custom_call.1} parent=11 // pred_region
        _
      $region24: #{tpu_custom_call.1} parent=11 // pred_fallthru
        _
      // Predicated region
      $region25: #{tpu_custom_call.1} parent=11 // pred_check
        %p193 = pneg %p122
      $region26: #{tpu_custom_call.1} parent=11 // pred_check_branch
        %195 = sbr.rel (%p193) target = $region28
      $region27: #{tpu_custom_call.1} parent=11 // pred_region
        _
      $region28: #{tpu_custom_call.1} parent=11 // pred_fallthru
        _
      // Predicated region
      $region29: #{tpu_custom_call.1} parent=11 // pred_check
        %p196 = pneg %p143
      $region30: #{tpu_custom_call.1} parent=11 // pred_check_branch
        %198 = sbr.rel (%p196) target = $region32
      $region31: #{tpu_custom_call.1} parent=11 // pred_region
        _
      $region32: #{tpu_custom_call.1} parent=11 // pred_fallthru
        _
    $region12: #{tpu_custom_call.1} parent=5 // pred_fallthru
      _
    %p199 = scmp.lt.s32.totalorder %s12, 2
    // Predicated region
    $region33: #{tpu_custom_call.1} parent=5 // pred_check
      %p200 = pneg %p199
    $region34: #{tpu_custom_call.1} parent=5 // pred_check_branch
      %202 = sbr.rel (%p200) target = $region36
    $region35: #{tpu_custom_call.1} parent=5 // pred_region
      // Predicated region
      $region37: #{tpu_custom_call.1} parent=35 // pred_check
        %p203 = pneg %p32
      $region38: #{tpu_custom_call.1} parent=35 // pred_check_branch
        %205 = sbr.rel (%p203) target = $region40
      $region39: #{tpu_custom_call.1} parent=35 // pred_region
        %s206 = smul.u32 48, %s12
        %p207 = scmp.lt.s32.totalorder %s206, 95
        %s208 = scalar_select %p207, %s206, 95
        %s209 = smul.addr %s208, 4
        %s210 = scalar_lea.vmem %s0, %s209
        %s211 = smul.u32 48, %s12
      $region40: #{tpu_custom_call.1} parent=35 // pred_fallthru
        _
    $region36: #{tpu_custom_call.1} parent=5 // pred_fallthru
      _
    %p212 = scmp.le.s32.totalorder 1, %s12
    %p213 = scmp.lt.s32.totalorder %s12, 3
    %p214 = pnand %p212, %p213
    %p215 = pneg %p214
    // Predicated region
    $region41: #{tpu_custom_call.1} parent=5 // pred_check
      _
    $region42: #{tpu_custom_call.1} parent=5 // pred_check_branch
      %217 = sbr.rel (%p214) target = $region44
    $region43: #{tpu_custom_call.1} parent=5 // pred_region
      %s218 = ssub.s32 %s12, 1
      %s219 = smul.u32 48, %s17
      %p220 = scmp.lt.s32.totalorder %s219, 95
      %s221 = scalar_select %p220, %s219, 95
      %s222 = smul.addr %s221, 4
      %s223 = scalar_lea.vmem %s0, %s222
      %p224 = pneg %p38
      %p225 = pneg %p35
      %p226 = pneg %p59
      %p227 = pneg %p56
      %p228 = pneg %p80
      %p229 = pneg %p77
      %p230 = pneg %p101
      %p231 = pneg %p98
      %p232 = pneg %p122
      %p233 = pneg %p119
      %p234 = pneg %p143
      %p235 = pneg %p140
      %p236 = pneg %p169
      %p237 = pneg %p166
      %s238 = smul.u32 48, %s17
      %p239 = scmp.lt.s32.totalorder %s238, 95
      %s240 = scalar_select %p239, %s238, 95
      %s241 = smul.addr %s240, 4
      %s242 = scalar_lea.vmem %s6, %s241
      %s243 = smul.u32 48, %s17
      %p244 = scmp.lt.s32.totalorder %s243, 95
      %s245 = scalar_select %p244, %s243, 95
      %s246 = smul.addr %s245, 4
      %s247 = scalar_lea.vmem %s0, %s246
      %s248 = smul.u32 48, %s17
      %s249 = smul.u32 48, %s17
      %p250 = scmp.lt.s32.totalorder %s249, 95
      %s251 = scalar_select %p250, %s249, 95
      %s252 = smul.addr %s251, 4
      %s253 = scalar_lea.vmem %s6, %s252
      %s254 = smul.u32 48, %s17
      %v256 = vld [vmem:[%s247] sm:$0xf]
      %v257 = vld [vmem:[%s247 + $0x4] sm:$0xf]
      %v258 = vld [vmem:[%s247 + $0x8] sm:$0xf]
      %v259 = vld [vmem:[%s247 + $0xc] sm:$0xf]
      %v260 = vld [vmem:[%s247 + $0x10] sm:$0xf]
      %v261 = vld [vmem:[%s247 + $0x14] sm:$0xf]
      %v262 = vld [vmem:[%s247 + $0x18] sm:$0xf]
      %v263 = vld [vmem:[%s247 + $0x1c] sm:$0xf]
      %v264 = vld [vmem:[%s247 + $0x20] sm:$0xf]
      %v265 = vld [vmem:[%s247 + $0x24] sm:$0xf]
      %v266 = vld [vmem:[%s247 + $0x28] sm:$0xf]
      %v267 = vld [vmem:[%s247 + $0x2c] sm:$0xf]
      %v268 = vld [vmem:[%s247 + $0x30] sm:$0xf]
      %v269 = vld [vmem:[%s247 + $0x34] sm:$0xf]
      %v270 = vld [vmem:[%s247 + $0x38] sm:$0xf]
      %v271 = vld [vmem:[%s247 + $0x3c] sm:$0xf]
      %v272 = vld [vmem:[%s247 + $0x40] sm:$0xf]
      %v273 = vld [vmem:[%s247 + $0x44] sm:$0xf]
      %v274 = vld [vmem:[%s247 + $0x48] sm:$0xf]
      %v275 = vld [vmem:[%s247 + $0x4c] sm:$0xf]
      %v276 = vld [vmem:[%s247 + $0x50] sm:$0xf]
      %v277 = vld [vmem:[%s247 + $0x54] sm:$0xf]
      %v278 = vld [vmem:[%s247 + $0x58] sm:$0xf]
      %v279 = vld [vmem:[%s247 + $0x5c] sm:$0xf]
      %v280 = vld [vmem:[%s247 + $0x60] sm:$0xf]
      %v281 = vld [vmem:[%s247 + $0x64] sm:$0xf]
      %v282 = vld [vmem:[%s247 + $0x68] sm:$0xf]
      %v283 = vld [vmem:[%s247 + $0x6c] sm:$0xf]
      %v284 = vld [vmem:[%s247 + $0x70] sm:$0xf]
      %v285 = vld [vmem:[%s247 + $0x74] sm:$0xf]
      %v286 = vld [vmem:[%s247 + $0x78] sm:$0xf]
      %v287 = vld [vmem:[%s247 + $0x7c] sm:$0xf]
      %v288 = vld [vmem:[%s247 + $0x80] sm:$0xf]
      %v289 = vld [vmem:[%s247 + $0x84] sm:$0xf]
      %v290 = vld [vmem:[%s247 + $0x88] sm:$0xf]
      %v291 = vld [vmem:[%s247 + $0x8c] sm:$0xf]
      %v292 = vld [vmem:[%s247 + $0x90] sm:$0xf]
      %v293 = vld [vmem:[%s247 + $0x94] sm:$0xf]
      %v294 = vld [vmem:[%s247 + $0x98] sm:$0xf]
      %v295 = vld [vmem:[%s247 + $0x9c] sm:$0xf]
      %v296 = vld [vmem:[%s247 + $0xa0] sm:$0xf]
      %v297 = vld [vmem:[%s247 + $0xa4] sm:$0xf]
      %v298 = vld [vmem:[%s247 + $0xa8] sm:$0xf]
      %v299 = vld [vmem:[%s247 + $0xac] sm:$0xf]
      %v300 = vld [vmem:[%s247 + $0xb0] sm:$0xf]
      %v301 = vld [vmem:[%s247 + $0xb4] sm:$0xf]
      %v302 = vld [vmem:[%s247 + $0xb8] sm:$0xf]
      %v303 = vld [vmem:[%s247 + $0xbc] sm:$0xf]
      %v304 = vld [vmem:[%s1] sm:$0xf]
      %v305 = vld [vmem:[%s1 + $0x4] sm:$0xf]
      %v306 = vld [vmem:[%s1 + $0x8] sm:$0xf]
      %v307 = vld [vmem:[%s1 + $0xc] sm:$0xf]
      %v308 = vld [vmem:[%s4] sm:$0x1]
      %v310 = vlaneseq
      %v311 = vshrl.u32 %v310, 7
      %v312 = vsub.s32 0, %v311
      %v313 = vrot.slane %v308, %v312
      %v363 = vunpack.c.l.b16 %v256
      %v364 = vunpack.c.l.b16 %v257
      %v365 = vunpack.c.l.b16 %v258
      %v366 = vunpack.c.l.b16 %v259
      %v367 = vunpack.c.l.b16 %v260
      %v368 = vunpack.c.l.b16 %v261
      %v369 = vunpack.c.l.b16 %v262
      %v370 = vunpack.c.l.b16 %v263
      %v371 = vunpack.c.l.b16 %v264
      %v372 = vunpack.c.l.b16 %v265
      %v373 = vunpack.c.l.b16 %v266
      %v374 = vunpack.c.l.b16 %v267
      %v375 = vunpack.c.l.b16 %v268
      %v376 = vunpack.c.l.b16 %v269
      %v377 = vunpack.c.l.b16 %v270
      %v378 = vunpack.c.l.b16 %v271
      %v379 = vunpack.c.l.b16 %v272
      %v380 = vunpack.c.l.b16 %v273
      %v381 = vunpack.c.l.b16 %v274
      %v382 = vunpack.c.l.b16 %v275
      %v383 = vunpack.c.l.b16 %v276
      %v384 = vunpack.c.l.b16 %v277
      %v385 = vunpack.c.l.b16 %v278
      %v386 = vunpack.c.l.b16 %v279
      %v387 = vunpack.c.l.b16 %v280
      %v388 = vunpack.c.l.b16 %v281
      %v389 = vunpack.c.l.b16 %v282
      %v390 = vunpack.c.l.b16 %v283
      %v391 = vunpack.c.l.b16 %v284
      %v392 = vunpack.c.l.b16 %v285
      %v393 = vunpack.c.l.b16 %v286
      %v394 = vunpack.c.l.b16 %v287
      %v395 = vunpack.c.l.b16 %v288
      %v396 = vunpack.c.l.b16 %v289
      %v397 = vunpack.c.l.b16 %v290
      %v398 = vunpack.c.l.b16 %v291
      %v399 = vunpack.c.l.b16 %v292
      %v400 = vunpack.c.l.b16 %v293
      %v401 = vunpack.c.l.b16 %v294
      %v402 = vunpack.c.l.b16 %v295
      %v403 = vunpack.c.l.b16 %v296
      %v404 = vunpack.c.l.b16 %v297
      %v405 = vunpack.c.l.b16 %v298
      %v406 = vunpack.c.l.b16 %v299
      %v407 = vunpack.c.l.b16 %v300
      %v408 = vunpack.c.l.b16 %v301
      %v409 = vunpack.c.l.b16 %v302
      %v410 = vunpack.c.l.b16 %v303
      %v411 = vpack.c.b16 %v364, %v363
      %v412 = vpack.c.b16 %v366, %v365
      %v413 = vpack.c.b16 %v368, %v367
      %v414 = vpack.c.b16 %v370, %v369
      %v415 = vpack.c.b16 %v372, %v371
      %v416 = vpack.c.b16 %v374, %v373
      %v417 = vpack.c.b16 %v376, %v375
      %v418 = vpack.c.b16 %v378, %v377
      %v419 = vpack.c.b16 %v380, %v379
      %v420 = vpack.c.b16 %v382, %v381
      %v421 = vpack.c.b16 %v384, %v383
      %v422 = vpack.c.b16 %v386, %v385
      %v423 = vpack.c.b16 %v388, %v387
      %v424 = vpack.c.b16 %v390, %v389
      %v425 = vpack.c.b16 %v392, %v391
      %v426 = vpack.c.b16 %v394, %v393
      %v427 = vpack.c.b16 %v396, %v395
      %v428 = vpack.c.b16 %v398, %v397
      %v429 = vpack.c.b16 %v400, %v399
      %v430 = vpack.c.b16 %v402, %v401
      %v431 = vpack.c.b16 %v404, %v403
      %v432 = vpack.c.b16 %v406, %v405
      %v433 = vpack.c.b16 %v408, %v407
      %v434 = vpack.c.b16 %v410, %v409
      %v439 = vunpack.c.l.b16 %v304
      %v440 = vunpack.c.l.b16 %v305
      %v441 = vunpack.c.l.b16 %v306
      %v442 = vunpack.c.l.b16 %v307
      %v443 = vpack.c.b16 %v440, %v439
      %v444 = vpack.c.b16 %v442, %v441
      %vm447 = vcmask 261120
      %v449 = vsel %vm447, %v411, 0
      %v452 = vsel %vm447, %v412, 0
      %v455 = vsel %vm447, %v413, 0
      %v458 = vsel %vm447, %v414, 0
      %v461 = vsel %vm447, %v415, 0
      %v464 = vsel %vm447, %v416, 0
      %v467 = vsel %vm447, %v417, 0
      %v470 = vsel %vm447, %v418, 0
      %v473 = vsel %vm447, %v419, 0
      %v476 = vsel %vm447, %v420, 0
      %v479 = vsel %vm447, %v421, 0
      %v482 = vsel %vm447, %v422, 0
      %v485 = vsel %vm447, %v423, 0
      %v488 = vsel %vm447, %v424, 0
      %v491 = vsel %vm447, %v425, 0
      %v494 = vsel %vm447, %v426, 0
      %v497 = vsel %vm447, %v427, 0
      %v500 = vsel %vm447, %v428, 0
      %v503 = vsel %vm447, %v429, 0
      %v506 = vsel %vm447, %v430, 0
      %v509 = vsel %vm447, %v431, 0
      %v512 = vsel %vm447, %v432, 0
      %v515 = vsel %vm447, %v433, 0
      %v518 = vsel %vm447, %v434, 0
      %520 = vmatprep.subr.bf16.mxu0 0
      %521 = vmatpush1.bf16.msra.mxu0 %v443
      %522 = vmatprep.subr.bf16.mxu0 0
      %523 = vmatpush1.bf16.msra.mxu0 %v444
      %524 = vmatprep.subr.bf16.mxu0 0
      %525 = vmatpush1.bf16.msra.mxu0 0
      %526 = vmatprep.subr.bf16.mxu0 0
      %527 = vmatpush1.bf16.msra.mxu0 0
      %528 = vmatprep.subr.bf16.mxu0 0
      %529 = vmatpush1.bf16.msra.mxu0 0
      %530 = vmatprep.subr.bf16.mxu0 0
      %531 = vmatpush1.bf16.msra.mxu0 0
      %532 = vmatprep.subr.bf16.mxu0 0
      %533 = vmatpush1.bf16.msra.mxu0 0
      %534 = vmatprep.subr.bf16.mxu0 0
      %535 = vmatpush1.bf16.msra.mxu0 0
      %536 = vmatprep.subr.bf16.mxu0 0
      %537 = vmatpush1.bf16.msra.mxu0 0
      %538 = vmatprep.subr.bf16.mxu0 0
      %539 = vmatpush1.bf16.msra.mxu0 0
      %540 = vmatprep.subr.bf16.mxu0 0
      %541 = vmatpush1.bf16.msra.mxu0 0
      %542 = vmatprep.subr.bf16.mxu0 0
      %543 = vmatpush1.bf16.msra.mxu0 0
      %544 = vmatprep.subr.bf16.mxu0 0
      %545 = vmatpush1.bf16.msra.mxu0 0
      %546 = vmatprep.subr.bf16.mxu0 0
      %547 = vmatpush1.bf16.msra.mxu0 0
      %548 = vmatprep.subr.bf16.mxu0 0
      %549 = vmatpush1.bf16.msra.mxu0 0
      %550 = vmatprep.subr.bf16.mxu0 0
      %551 = vmatpush1.bf16.msra.mxu0 0
      %552 = vmatprep.mubr.bf16.mxu0 0
      %553 = vmatmul.mubr.bf16.gmra.mrb[0].mxu0 %v449
      %v554 = vpop.f32.mrb[0].mxu0
      %v555 = vadd.f32 %v313, %v554
      %v556 = vpop.f32.mrb[0].mxu0
      %v557 = vpop.f32.mrb[0].mxu0
      %v558 = vadd.f32 %v313, %v557
      %v559 = vpop.f32.mrb[0].mxu0
      %560 = vmatprep.mubr.bf16.mxu0 0
      %561 = vmatmul.mubr.bf16.gmra.mrb[0].mxu0 %v452
      %v562 = vpop.f32.mrb[0].mxu0
      %v563 = vadd.f32 %v313, %v562
      %v564 = vpop.f32.mrb[0].mxu0
      %v565 = vpop.f32.mrb[0].mxu0
      %v566 = vadd.f32 %v313, %v565
      %v567 = vpop.f32.mrb[0].mxu0
      %568 = vmatprep.mubr.bf16.mxu0 0
      %569 = vmatmul.mubr.bf16.gmra.mrb[0].mxu0 %v455
      %v570 = vpop.f32.mrb[0].mxu0
      %v571 = vadd.f32 %v313, %v570
      %v572 = vpop.f32.mrb[0].mxu0
      %v573 = vpop.f32.mrb[0].mxu0
      %v574 = vadd.f32 %v313, %v573
      %v575 = vpop.f32.mrb[0].mxu0
      %576 = vmatprep.mubr.bf16.mxu0 0
      %577 = vmatmul.mubr.bf16.gmra.mrb[0].mxu0 %v458
      %v578 = vpop.f32.mrb[0].mxu0
      %v579 = vadd.f32 %v313, %v578
      %v580 = vpop.f32.mrb[0].mxu0
      %v581 = vpop.f32.mrb[0].mxu0
      %v582 = vadd.f32 %v313, %v581
      %v583 = vpop.f32.mrb[0].mxu0
      %584 = vmatprep.mubr.bf16.mxu0 0
      %585 = vmatmul.mubr.bf16.gmra.mrb[0].mxu0 %v461
      %v586 = vpop.f32.mrb[0].mxu0
      %v587 = vadd.f32 %v313, %v586
      %v588 = vpop.f32.mrb[0].mxu0
      %v589 = vpop.f32.mrb[0].mxu0
      %v590 = vadd.f32 %v313, %v589
      %v591 = vpop.f32.mrb[0].mxu0
      %592 = vmatprep.mubr.bf16.mxu0 0
      %593 = vmatmul.mubr.bf16.gmra.mrb[0].mxu0 %v464
      %v594 = vpop.f32.mrb[0].mxu0
      %v595 = vadd.f32 %v313, %v594
      %v596 = vpop.f32.mrb[0].mxu0
      %v597 = vpop.f32.mrb[0].mxu0
      %v598 = vadd.f32 %v313, %v597
      %v599 = vpop.f32.mrb[0].mxu0
      %600 = vmatprep.mubr.bf16.mxu0 0
      %601 = vmatmul.mubr.bf16.gmra.mrb[0].mxu0 %v467
      %v602 = vpop.f32.mrb[0].mxu0
      %v603 = vadd.f32 %v313, %v602
      %v604 = vpop.f32.mrb[0].mxu0
      %v605 = vpop.f32.mrb[0].mxu0
      %v606 = vadd.f32 %v313, %v605
      %v607 = vpop.f32.mrb[0].mxu0
      %608 = vmatprep.mubr.bf16.mxu0 0
      %609 = vmatmul.mubr.bf16.gmra.mrb[0].mxu0 %v470
      %v610 = vpop.f32.mrb[0].mxu0
      %v611 = vadd.f32 %v313, %v610
      %v612 = vpop.f32.mrb[0].mxu0
      %v613 = vpop.f32.mrb[0].mxu0
      %v614 = vadd.f32 %v313, %v613
      %v615 = vpop.f32.mrb[0].mxu0
      %616 = vmatprep.mubr.bf16.mxu0 0
      %617 = vmatmul.mubr.bf16.gmra.mrb[0].mxu0 %v473
      %v618 = vpop.f32.mrb[0].mxu0
      %v619 = vadd.f32 %v313, %v618
      %v620 = vpop.f32.mrb[0].mxu0
      %v621 = vpop.f32.mrb[0].mxu0
      %v622 = vadd.f32 %v313, %v621
      %v623 = vpop.f32.mrb[0].mxu0
      %624 = vmatprep.mubr.bf16.mxu0 0
      %625 = vmatmul.mubr.bf16.gmra.mrb[0].mxu0 %v476
      %v626 = vpop.f32.mrb[0].mxu0
      %v627 = vadd.f32 %v313, %v626
      %v628 = vpop.f32.mrb[0].mxu0
      %v629 = vpop.f32.mrb[0].mxu0
      %v630 = vadd.f32 %v313, %v629
      %v631 = vpop.f32.mrb[0].mxu0
      %632 = vmatprep.mubr.bf16.mxu0 0
      %633 = vmatmul.mubr.bf16.gmra.mrb[0].mxu0 %v479
      %v634 = vpop.f32.mrb[0].mxu0
      %v635 = vadd.f32 %v313, %v634
      %v636 = vpop.f32.mrb[0].mxu0
      %v637 = vpop.f32.mrb[0].mxu0
      %v638 = vadd.f32 %v313, %v637
      %v639 = vpop.f32.mrb[0].mxu0
      %640 = vmatprep.mubr.bf16.mxu0 0
      %641 = vmatmul.mubr.bf16.gmra.mrb[0].mxu0 %v482
      %v642 = vpop.f32.mrb[0].mxu0
      %v643 = vadd.f32 %v313, %v642
      %v644 = vpop.f32.mrb[0].mxu0
      %v645 = vpop.f32.mrb[0].mxu0
      %v646 = vadd.f32 %v313, %v645
      %v647 = vpop.f32.mrb[0].mxu0
      %648 = vmatprep.mubr.bf16.mxu0 0
      %649 = vmatmul.mubr.bf16.gmra.mrb[0].mxu0 %v485
      %v650 = vpop.f32.mrb[0].mxu0
      %v651 = vadd.f32 %v313, %v650
      %v652 = vpop.f32.mrb[0].mxu0
      %v653 = vpop.f32.mrb[0].mxu0
      %v654 = vadd.f32 %v313, %v653
      %v655 = vpop.f32.mrb[0].mxu0
      %656 = vmatprep.mubr.bf16.mxu0 0
      %657 = vmatmul.mubr.bf16.gmra.mrb[0].mxu0 %v488
      %v658 = vpop.f32.mrb[0].mxu0
      %v659 = vadd.f32 %v313, %v658
      %v660 = vpop.f32.mrb[0].mxu0
      %v661 = vpop.f32.mrb[0].mxu0
      %v662 = vadd.f32 %v313, %v661
      %v663 = vpop.f32.mrb[0].mxu0
      %664 = vmatprep.mubr.bf16.mxu0 0
      %665 = vmatmul.mubr.bf16.gmra.mrb[0].mxu0 %v491
      %v666 = vpop.f32.mrb[0].mxu0
      %v667 = vadd.f32 %v313, %v666
      %v668 = vpop.f32.mrb[0].mxu0
      %v669 = vpop.f32.mrb[0].mxu0
      %v670 = vadd.f32 %v313, %v669
      %v671 = vpop.f32.mrb[0].mxu0
      %672 = vmatprep.mubr.bf16.mxu0 0
      %673 = vmatmul.mubr.bf16.gmra.mrb[0].mxu0 %v494
      %v674 = vpop.f32.mrb[0].mxu0
      %v675 = vadd.f32 %v313, %v674
      %v676 = vpop.f32.mrb[0].mxu0
      %v677 = vpop.f32.mrb[0].mxu0
      %v678 = vadd.f32 %v313, %v677
      %v679 = vpop.f32.mrb[0].mxu0
      %680 = vmatprep.mubr.bf16.mxu0 0
      %681 = vmatmul.mubr.bf16.gmra.mrb[0].mxu0 %v497
      %v682 = vpop.f32.mrb[0].mxu0
      %v683 = vadd.f32 %v313, %v682
      %v684 = vpop.f32.mrb[0].mxu0
      %v685 = vpop.f32.mrb[0].mxu0
      %v686 = vadd.f32 %v313, %v685
      %v687 = vpop.f32.mrb[0].mxu0
      %688 = vmatprep.mubr.bf16.mxu0 0
      %689 = vmatmul.mubr.bf16.gmra.mrb[0].mxu0 %v500
      %v690 = vpop.f32.mrb[0].mxu0
      %v691 = vadd.f32 %v313, %v690
      %v692 = vpop.f32.mrb[0].mxu0
      %v693 = vpop.f32.mrb[0].mxu0
      %v694 = vadd.f32 %v313, %v693
      %v695 = vpop.f32.mrb[0].mxu0
      %696 = vmatprep.mubr.bf16.mxu0 0
      %697 = vmatmul.mubr.bf16.gmra.mrb[0].mxu0 %v503
      %v698 = vpop.f32.mrb[0].mxu0
      %v699 = vadd.f32 %v313, %v698
      %v700 = vpop.f32.mrb[0].mxu0
      %v701 = vpop.f32.mrb[0].mxu0
      %v702 = vadd.f32 %v313, %v701
      %v703 = vpop.f32.mrb[0].mxu0
      %704 = vmatprep.mubr.bf16.mxu0 0
      %705 = vmatmul.mubr.bf16.gmra.mrb[0].mxu0 %v506
      %v706 = vpop.f32.mrb[0].mxu0
      %v707 = vadd.f32 %v313, %v706
      %v708 = vpop.f32.mrb[0].mxu0
      %v709 = vpop.f32.mrb[0].mxu0
      %v710 = vadd.f32 %v313, %v709
      %v711 = vpop.f32.mrb[0].mxu0
      %712 = vmatprep.mubr.bf16.mxu0 0
      %713 = vmatmul.mubr.bf16.gmra.mrb[0].mxu0 %v509
      %v714 = vpop.f32.mrb[0].mxu0
      %v715 = vadd.f32 %v313, %v714
      %v716 = vpop.f32.mrb[0].mxu0
      %v717 = vpop.f32.mrb[0].mxu0
      %v718 = vadd.f32 %v313, %v717
      %v719 = vpop.f32.mrb[0].mxu0
      %720 = vmatprep.mubr.bf16.mxu0 0
      %721 = vmatmul.mubr.bf16.gmra.mrb[0].mxu0 %v512
      %v722 = vpop.f32.mrb[0].mxu0
      %v723 = vadd.f32 %v313, %v722
      %v724 = vpop.f32.mrb[0].mxu0
      %v725 = vpop.f32.mrb[0].mxu0
      %v726 = vadd.f32 %v313, %v725
      %v727 = vpop.f32.mrb[0].mxu0
      %728 = vmatprep.mubr.bf16.mxu0 0
      %729 = vmatmul.mubr.bf16.gmra.mrb[0].mxu0 %v515
      %v730 = vpop.f32.mrb[0].mxu0
      %v731 = vadd.f32 %v313, %v730
      %v732 = vpop.f32.mrb[0].mxu0
      %v733 = vpop.f32.mrb[0].mxu0
      %v734 = vadd.f32 %v313, %v733
      %v735 = vpop.f32.mrb[0].mxu0
      %736 = vmatprep.mubr.bf16.mxu0 0
      %737 = vmatmul.mubr.bf16.gmra.mrb[0].mxu0 %v518
      %v738 = vpop.f32.mrb[0].mxu0
      %v739 = vadd.f32 %v313, %v738
      %v740 = vpop.f32.mrb[0].mxu0
      %v741 = vpop.f32.mrb[0].mxu0
      %v742 = vadd.f32 %v313, %v741
      %v743 = vpop.f32.mrb[0].mxu0
      %744 = vdwg.mxu0
      %vm745 = vcmp.gt.f32.partialorder %v555, 0.0
      %vm746 = vcmp.gt.f32.partialorder %v558, 0.0
      %vm747 = vcmp.gt.f32.partialorder %v563, 0.0
      %vm748 = vcmp.gt.f32.partialorder %v566, 0.0
      %vm749 = vcmp.gt.f32.partialorder %v571, 0.0
      %vm750 = vcmp.gt.f32.partialorder %v574, 0.0
      %vm751 = vcmp.gt.f32.partialorder %v579, 0.0
      %vm752 = vcmp.gt.f32.partialorder %v582, 0.0
      %vm753 = vcmp.gt.f32.partialorder %v587, 0.0
      %vm754 = vcmp.gt.f32.partialorder %v590, 0.0
      %vm755 = vcmp.gt.f32.partialorder %v595, 0.0
      %vm756 = vcmp.gt.f32.partialorder %v598, 0.0
      %vm757 = vcmp.gt.f32.partialorder %v603, 0.0
      %vm758 = vcmp.gt.f32.partialorder %v606, 0.0
      %vm759 = vcmp.gt.f32.partialorder %v611, 0.0
      %vm760 = vcmp.gt.f32.partialorder %v614, 0.0
      %vm761 = vcmp.gt.f32.partialorder %v619, 0.0
      %vm762 = vcmp.gt.f32.partialorder %v622, 0.0
      %vm763 = vcmp.gt.f32.partialorder %v627, 0.0
      %vm764 = vcmp.gt.f32.partialorder %v630, 0.0
      %vm765 = vcmp.gt.f32.partialorder %v635, 0.0
      %vm766 = vcmp.gt.f32.partialorder %v638, 0.0
      %vm767 = vcmp.gt.f32.partialorder %v643, 0.0
      %vm768 = vcmp.gt.f32.partialorder %v646, 0.0
      %vm769 = vcmp.gt.f32.partialorder %v651, 0.0
      %vm770 = vcmp.gt.f32.partialorder %v654, 0.0
      %vm771 = vcmp.gt.f32.partialorder %v659, 0.0
      %vm772 = vcmp.gt.f32.partialorder %v662, 0.0
      %vm773 = vcmp.gt.f32.partialorder %v667, 0.0
      %vm774 = vcmp.gt.f32.partialorder %v670, 0.0
      %vm775 = vcmp.gt.f32.partialorder %v675, 0.0
      %vm776 = vcmp.gt.f32.partialorder %v678, 0.0
      %vm777 = vcmp.gt.f32.partialorder %v683, 0.0
      %vm778 = vcmp.gt.f32.partialorder %v686, 0.0
      %vm779 = vcmp.gt.f32.partialorder %v691, 0.0
      %vm780 = vcmp.gt.f32.partialorder %v694, 0.0
      %vm781 = vcmp.gt.f32.partialorder %v699, 0.0
      %vm782 = vcmp.gt.f32.partialorder %v702, 0.0
      %vm783 = vcmp.gt.f32.partialorder %v707, 0.0
      %vm784 = vcmp.gt.f32.partialorder %v710, 0.0
      %vm785 = vcmp.gt.f32.partialorder %v715, 0.0
      %vm786 = vcmp.gt.f32.partialorder %v718, 0.0
      %vm787 = vcmp.gt.f32.partialorder %v723, 0.0
      %vm788 = vcmp.gt.f32.partialorder %v726, 0.0
      %vm789 = vcmp.gt.f32.partialorder %v731, 0.0
      %vm790 = vcmp.gt.f32.partialorder %v734, 0.0
      %vm791 = vcmp.gt.f32.partialorder %v739, 0.0
      %vm792 = vcmp.gt.f32.partialorder %v742, 0.0
      %v793 = vmul.f32 %v555, 0.1
      %v794 = vmul.f32 %v558, 0.1
      %v795 = vmul.f32 %v563, 0.1
      %v796 = vmul.f32 %v566, 0.1
      %v797 = vmul.f32 %v571, 0.1
      %v798 = vmul.f32 %v574, 0.1
      %v799 = vmul.f32 %v579, 0.1
      %v800 = vmul.f32 %v582, 0.1
      %v801 = vmul.f32 %v587, 0.1
      %v802 = vmul.f32 %v590, 0.1
      %v803 = vmul.f32 %v595, 0.1
      %v804 = vmul.f32 %v598, 0.1
      %v805 = vmul.f32 %v603, 0.1
      %v806 = vmul.f32 %v606, 0.1
      %v807 = vmul.f32 %v611, 0.1
      %v808 = vmul.f32 %v614, 0.1
      %v809 = vmul.f32 %v619, 0.1
      %v810 = vmul.f32 %v622, 0.1
      %v811 = vmul.f32 %v627, 0.1
      %v812 = vmul.f32 %v630, 0.1
      %v813 = vmul.f32 %v635, 0.1
      %v814 = vmul.f32 %v638, 0.1
      %v815 = vmul.f32 %v643, 0.1
      %v816 = vmul.f32 %v646, 0.1
      %v817 = vmul.f32 %v651, 0.1
      %v818 = vmul.f32 %v654, 0.1
      %v819 = vmul.f32 %v659, 0.1
      %v820 = vmul.f32 %v662, 0.1
      %v821 = vmul.f32 %v667, 0.1
      %v822 = vmul.f32 %v670, 0.1
      %v823 = vmul.f32 %v675, 0.1
      %v824 = vmul.f32 %v678, 0.1
      %v825 = vmul.f32 %v683, 0.1
      %v826 = vmul.f32 %v686, 0.1
      %v827 = vmul.f32 %v691, 0.1
      %v828 = vmul.f32 %v694, 0.1
      %v829 = vmul.f32 %v699, 0.1
      %v830 = vmul.f32 %v702, 0.1
      %v831 = vmul.f32 %v707, 0.1
      %v832 = vmul.f32 %v710, 0.1
      %v833 = vmul.f32 %v715, 0.1
      %v834 = vmul.f32 %v718, 0.1
      %v835 = vmul.f32 %v723, 0.1
      %v836 = vmul.f32 %v726, 0.1
      %v837 = vmul.f32 %v731, 0.1
      %v838 = vmul.f32 %v734, 0.1
      %v839 = vmul.f32 %v739, 0.1
      %v840 = vmul.f32 %v742, 0.1
      %v841 = vsel %vm745, %v555, %v793
      %v842 = vsel %vm746, %v558, %v794
      %v843 = vsel %vm747, %v563, %v795
      %v844 = vsel %vm748, %v566, %v796
      %v845 = vsel %vm749, %v571, %v797
      %v846 = vsel %vm750, %v574, %v798
      %v847 = vsel %vm751, %v579, %v799
      %v848 = vsel %vm752, %v582, %v800
      %v849 = vsel %vm753, %v587, %v801
      %v850 = vsel %vm754, %v590, %v802
      %v851 = vsel %vm755, %v595, %v803
      %v852 = vsel %vm756, %v598, %v804
      %v853 = vsel %vm757, %v603, %v805
      %v854 = vsel %vm758, %v606, %v806
      %v855 = vsel %vm759, %v611, %v807
      %v856 = vsel %vm760, %v614, %v808
      %v857 = vsel %vm761, %v619, %v809
      %v858 = vsel %vm762, %v622, %v810
      %v859 = vsel %vm763, %v627, %v811
      %v860 = vsel %vm764, %v630, %v812
      %v861 = vsel %vm765, %v635, %v813
      %v862 = vsel %vm766, %v638, %v814
      %v863 = vsel %vm767, %v643, %v815
      %v864 = vsel %vm768, %v646, %v816
      %v865 = vsel %vm769, %v651, %v817
      %v866 = vsel %vm770, %v654, %v818
      %v867 = vsel %vm771, %v659, %v819
      %v868 = vsel %vm772, %v662, %v820
      %v869 = vsel %vm773, %v667, %v821
      %v870 = vsel %vm774, %v670, %v822
      %v871 = vsel %vm775, %v675, %v823
      %v872 = vsel %vm776, %v678, %v824
      %v873 = vsel %vm777, %v683, %v825
      %v874 = vsel %vm778, %v686, %v826
      %v875 = vsel %vm779, %v691, %v827
      %v876 = vsel %vm780, %v694, %v828
      %v877 = vsel %vm781, %v699, %v829
      %v878 = vsel %vm782, %v702, %v830
      %v879 = vsel %vm783, %v707, %v831
      %v880 = vsel %vm784, %v710, %v832
      %v881 = vsel %vm785, %v715, %v833
      %v882 = vsel %vm786, %v718, %v834
      %v883 = vsel %vm787, %v723, %v835
      %v884 = vsel %vm788, %v726, %v836
      %v885 = vsel %vm789, %v731, %v837
      %v886 = vsel %vm790, %v734, %v838
      %v887 = vsel %vm791, %v739, %v839
      %v888 = vsel %vm792, %v742, %v840
      %v889 = vpack.c.bf16 %v842, %v841
      %v890 = vpack.c.bf16 %v844, %v843
      %v891 = vpack.c.bf16 %v846, %v845
      %v892 = vpack.c.bf16 %v848, %v847
      %v893 = vpack.c.bf16 %v850, %v849
      %v894 = vpack.c.bf16 %v852, %v851
      %v895 = vpack.c.bf16 %v854, %v853
      %v896 = vpack.c.bf16 %v856, %v855
      %v897 = vpack.c.bf16 %v858, %v857
      %v898 = vpack.c.bf16 %v860, %v859
      %v899 = vpack.c.bf16 %v862, %v861
      %v900 = vpack.c.bf16 %v864, %v863
      %v901 = vpack.c.bf16 %v866, %v865
      %v902 = vpack.c.bf16 %v868, %v867
      %v903 = vpack.c.bf16 %v870, %v869
      %v904 = vpack.c.bf16 %v872, %v871
      %v905 = vpack.c.bf16 %v874, %v873
      %v906 = vpack.c.bf16 %v876, %v875
      %v907 = vpack.c.bf16 %v878, %v877
      %v908 = vpack.c.bf16 %v880, %v879
      %v909 = vpack.c.bf16 %v882, %v881
      %v910 = vpack.c.bf16 %v884, %v883
      %v911 = vpack.c.bf16 %v886, %v885
      %v912 = vpack.c.bf16 %v888, %v887
      %v913 = vld [vmem:[%s2] sm:$0xf]
      %v914 = vld [vmem:[%s2 + $0x4] sm:$0xf]
      %v915 = vld [vmem:[%s2 + $0x8] sm:$0xf]
      %v916 = vld [vmem:[%s2 + $0xc] sm:$0xf]
      %s917 = scalar_lea.vmem %s4, 1
      %v918 = vld [vmem:[%s917] sm:$0x1]
      %v920 = vlaneseq
      %v921 = vshrl.u32 %v920, 7
      %v922 = vsub.s32 0, %v921
      %v923 = vrot.slane %v918, %v922
      %v929 = vunpack.c.l.b16 %v913
      %v930 = vunpack.c.l.b16 %v914
      %v931 = vunpack.c.l.b16 %v915
      %v932 = vunpack.c.l.b16 %v916
      %v933 = vpack.c.b16 %v930, %v929
      %v934 = vpack.c.b16 %v932, %v931
      %v938 = vsel %vm447, %v889, 0
      %v941 = vsel %vm447, %v890, 0
      %v944 = vsel %vm447, %v891, 0
      %v947 = vsel %vm447, %v892, 0
      %v950 = vsel %vm447, %v893, 0
      %v953 = vsel %vm447, %v894, 0
      %v956 = vsel %vm447, %v895, 0
      %v959 = vsel %vm447, %v896, 0
      %v962 = vsel %vm447, %v897, 0
      %v965 = vsel %vm447, %v898, 0
      %v968 = vsel %vm447, %v899, 0
      %v971 = vsel %vm447, %v900, 0
      %v974 = vsel %vm447, %v901, 0
      %v977 = vsel %vm447, %v902, 0
      %v980 = vsel %vm447, %v903, 0
      %v983 = vsel %vm447, %v904, 0
      %v986 = vsel %vm447, %v905, 0
      %v989 = vsel %vm447, %v906, 0
      %v992 = vsel %vm447, %v907, 0
      %v995 = vsel %vm447, %v908, 0
      %v998 = vsel %vm447, %v909, 0
      %v1001 = vsel %vm447, %v910, 0
      %v1004 = vsel %vm447, %v911, 0
      %v1007 = vsel %vm447, %v912, 0
      %1009 = vmatprep.subr.bf16.mxu0 0
      %1010 = vmatpush1.bf16.msra.mxu0 %v933
      %1011 = vmatprep.subr.bf16.mxu0 0
      %1012 = vmatpush1.bf16.msra.mxu0 %v934
      %1013 = vmatprep.subr.bf16.mxu0 0
      %1014 = vmatpush1.bf16.msra.mxu0 0
      %1015 = vmatprep.subr.bf16.mxu0 0
      %1016 = vmatpush1.bf16.msra.mxu0 0
      %1017 = vmatprep.subr.bf16.mxu0 0
      %1018 = vmatpush1.bf16.msra.mxu0 0
      %1019 = vmatprep.subr.bf16.mxu0 0
      %1020 = vmatpush1.bf16.msra.mxu0 0
      %1021 = vmatprep.subr.bf16.mxu0 0
      %1022 = vmatpush1.bf16.msra.mxu0 0
      %1023 = vmatprep.subr.bf16.mxu0 0
      %1024 = vmatpush1.bf16.msra.mxu0 0
      %1025 = vmatprep.subr.bf16.mxu0 0
      %1026 = vmatpush1.bf16.msra.mxu0 0
      %1027 = vmatprep.subr.bf16.mxu0 0
      %1028 = vmatpush1.bf16.msra.mxu0 0
      %1029 = vmatprep.subr.bf16.mxu0 0
      %1030 = vmatpush1.bf16.msra.mxu0 0
      %1031 = vmatprep.subr.bf16.mxu0 0
      %1032 = vmatpush1.bf16.msra.mxu0 0
      %1033 = vmatprep.subr.bf16.mxu0 0
      %1034 = vmatpush1.bf16.msra.mxu0 0
      %1035 = vmatprep.subr.bf16.mxu0 0
      %1036 = vmatpush1.bf16.msra.mxu0 0
      %1037 = vmatprep.subr.bf16.mxu0 0
      %1038 = vmatpush1.bf16.msra.mxu0 0
      %1039 = vmatprep.subr.bf16.mxu0 0
      %1040 = vmatpush1.bf16.msra.mxu0 0
      %1041 = vmatprep.mubr.bf16.mxu0 0
      %1042 = vmatmul.mubr.bf16.gmra.mrb[0].mxu0 %v938
      %v1043 = vpop.f32.mrb[0].mxu0
      %v1044 = vadd.f32 %v923, %v1043
      %v1045 = vpop.f32.mrb[0].mxu0
      %v1046 = vpop.f32.mrb[0].mxu0
      %v1047 = vadd.f32 %v923, %v1046
      %v1048 = vpop.f32.mrb[0].mxu0
      %1049 = vmatprep.mubr.bf16.mxu0 0
      %1050 = vmatmul.mubr.bf16.gmra.mrb[0].mxu0 %v941
      %v1051 = vpop.f32.mrb[0].mxu0
      %v1052 = vadd.f32 %v923, %v1051
      %v1053 = vpop.f32.mrb[0].mxu0
      %v1054 = vpop.f32.mrb[0].mxu0
      %v1055 = vadd.f32 %v923, %v1054
      %v1056 = vpop.f32.mrb[0].mxu0
      %1057 = vmatprep.mubr.bf16.mxu0 0
      %1058 = vmatmul.mubr.bf16.gmra.mrb[0].mxu0 %v944
      %v1059 = vpop.f32.mrb[0].mxu0
      %v1060 = vadd.f32 %v923, %v1059
      %v1061 = vpop.f32.mrb[0].mxu0
      %v1062 = vpop.f32.mrb[0].mxu0
      %v1063 = vadd.f32 %v923, %v1062
      %v1064 = vpop.f32.mrb[0].mxu0
      %1065 = vmatprep.mubr.bf16.mxu0 0
      %1066 = vmatmul.mubr.bf16.gmra.mrb[0].mxu0 %v947
      %v1067 = vpop.f32.mrb[0].mxu0
      %v1068 = vadd.f32 %v923, %v1067
      %v1069 = vpop.f32.mrb[0].mxu0
      %v1070 = vpop.f32.mrb[0].mxu0
      %v1071 = vadd.f32 %v923, %v1070
      %v1072 = vpop.f32.mrb[0].mxu0
      %1073 = vmatprep.mubr.bf16.mxu0 0
      %1074 = vmatmul.mubr.bf16.gmra.mrb[0].mxu0 %v950
      %v1075 = vpop.f32.mrb[0].mxu0
      %v1076 = vadd.f32 %v923, %v1075
      %v1077 = vpop.f32.mrb[0].mxu0
      %v1078 = vpop.f32.mrb[0].mxu0
      %v1079 = vadd.f32 %v923, %v1078
      %v1080 = vpop.f32.mrb[0].mxu0
      %1081 = vmatprep.mubr.bf16.mxu0 0
      %1082 = vmatmul.mubr.bf16.gmra.mrb[0].mxu0 %v953
      %v1083 = vpop.f32.mrb[0].mxu0
      %v1084 = vadd.f32 %v923, %v1083
      %v1085 = vpop.f32.mrb[0].mxu0
      %v1086 = vpop.f32.mrb[0].mxu0
      %v1087 = vadd.f32 %v923, %v1086
      %v1088 = vpop.f32.mrb[0].mxu0
      %1089 = vmatprep.mubr.bf16.mxu0 0
      %1090 = vmatmul.mubr.bf16.gmra.mrb[0].mxu0 %v956
      %v1091 = vpop.f32.mrb[0].mxu0
      %v1092 = vadd.f32 %v923, %v1091
      %v1093 = vpop.f32.mrb[0].mxu0
      %v1094 = vpop.f32.mrb[0].mxu0
      %v1095 = vadd.f32 %v923, %v1094
      %v1096 = vpop.f32.mrb[0].mxu0
      %1097 = vmatprep.mubr.bf16.mxu0 0
      %1098 = vmatmul.mubr.bf16.gmra.mrb[0].mxu0 %v959
      %v1099 = vpop.f32.mrb[0].mxu0
      %v1100 = vadd.f32 %v923, %v1099
      %v1101 = vpop.f32.mrb[0].mxu0
      %v1102 = vpop.f32.mrb[0].mxu0
      %v1103 = vadd.f32 %v923, %v1102
      %v1104 = vpop.f32.mrb[0].mxu0
      %1105 = vmatprep.mubr.bf16.mxu0 0
      %1106 = vmatmul.mubr.bf16.gmra.mrb[0].mxu0 %v962
      %v1107 = vpop.f32.mrb[0].mxu0
      %v1108 = vadd.f32 %v923, %v1107
      %v1109 = vpop.f32.mrb[0].mxu0
      %v1110 = vpop.f32.mrb[0].mxu0
      %v1111 = vadd.f32 %v923, %v1110
      %v1112 = vpop.f32.mrb[0].mxu0
      %1113 = vmatprep.mubr.bf16.mxu0 0
      %1114 = vmatmul.mubr.bf16.gmra.mrb[0].mxu0 %v965
      %v1115 = vpop.f32.mrb[0].mxu0
      %v1116 = vadd.f32 %v923, %v1115
      %v1117 = vpop.f32.mrb[0].mxu0
      %v1118 = vpop.f32.mrb[0].mxu0
      %v1119 = vadd.f32 %v923, %v1118
      %v1120 = vpop.f32.mrb[0].mxu0
      %1121 = vmatprep.mubr.bf16.mxu0 0
      %1122 = vmatmul.mubr.bf16.gmra.mrb[0].mxu0 %v968
      %v1123 = vpop.f32.mrb[0].mxu0
      %v1124 = vadd.f32 %v923, %v1123
      %v1125 = vpop.f32.mrb[0].mxu0
      %v1126 = vpop.f32.mrb[0].mxu0
      %v1127 = vadd.f32 %v923, %v1126
      %v1128 = vpop.f32.mrb[0].mxu0
      %1129 = vmatprep.mubr.bf16.mxu0 0
      %1130 = vmatmul.mubr.bf16.gmra.mrb[0].mxu0 %v971
      %v1131 = vpop.f32.mrb[0].mxu0
      %v1132 = vadd.f32 %v923, %v1131
      %v1133 = vpop.f32.mrb[0].mxu0
      %v1134 = vpop.f32.mrb[0].mxu0
      %v1135 = vadd.f32 %v923, %v1134
      %v1136 = vpop.f32.mrb[0].mxu0
      %1137 = vmatprep.mubr.bf16.mxu0 0
      %1138 = vmatmul.mubr.bf16.gmra.mrb[0].mxu0 %v974
      %v1139 = vpop.f32.mrb[0].mxu0
      %v1140 = vadd.f32 %v923, %v1139
      %v1141 = vpop.f32.mrb[0].mxu0
      %v1142 = vpop.f32.mrb[0].mxu0
      %v1143 = vadd.f32 %v923, %v1142
      %v1144 = vpop.f32.mrb[0].mxu0
      %1145 = vmatprep.mubr.bf16.mxu0 0
      %1146 = vmatmul.mubr.bf16.gmra.mrb[0].mxu0 %v977
      %v1147 = vpop.f32.mrb[0].mxu0
      %v1148 = vadd.f32 %v923, %v1147
      %v1149 = vpop.f32.mrb[0].mxu0
      %v1150 = vpop.f32.mrb[0].mxu0
      %v1151 = vadd.f32 %v923, %v1150
      %v1152 = vpop.f32.mrb[0].mxu0
      %1153 = vmatprep.mubr.bf16.mxu0 0
      %1154 = vmatmul.mubr.bf16.gmra.mrb[0].mxu0 %v980
      %v1155 = vpop.f32.mrb[0].mxu0
      %v1156 = vadd.f32 %v923, %v1155
      %v1157 = vpop.f32.mrb[0].mxu0
      %v1158 = vpop.f32.mrb[0].mxu0
      %v1159 = vadd.f32 %v923, %v1158
      %v1160 = vpop.f32.mrb[0].mxu0
      %1161 = vmatprep.mubr.bf16.mxu0 0
      %1162 = vmatmul.mubr.bf16.gmra.mrb[0].mxu0 %v983
      %v1163 = vpop.f32.mrb[0].mxu0
      %v1164 = vadd.f32 %v923, %v1163
      %v1165 = vpop.f32.mrb[0].mxu0
      %v1166 = vpop.f32.mrb[0].mxu0
      %v1167 = vadd.f32 %v923, %v1166
      %v1168 = vpop.f32.mrb[0].mxu0
      %1169 = vmatprep.mubr.bf16.mxu0 0
      %1170 = vmatmul.mubr.bf16.gmra.mrb[0].mxu0 %v986
      %v1171 = vpop.f32.mrb[0].mxu0
      %v1172 = vadd.f32 %v923, %v1171
      %v1173 = vpop.f32.mrb[0].mxu0
      %v1174 = vpop.f32.mrb[0].mxu0
      %v1175 = vadd.f32 %v923, %v1174
      %v1176 = vpop.f32.mrb[0].mxu0
      %1177 = vmatprep.mubr.bf16.mxu0 0
      %1178 = vmatmul.mubr.bf16.gmra.mrb[0].mxu0 %v989
      %v1179 = vpop.f32.mrb[0].mxu0
      %v1180 = vadd.f32 %v923, %v1179
      %v1181 = vpop.f32.mrb[0].mxu0
      %v1182 = vpop.f32.mrb[0].mxu0
      %v1183 = vadd.f32 %v923, %v1182
      %v1184 = vpop.f32.mrb[0].mxu0
      %1185 = vmatprep.mubr.bf16.mxu0 0
      %1186 = vmatmul.mubr.bf16.gmra.mrb[0].mxu0 %v992
      %v1187 = vpop.f32.mrb[0].mxu0
      %v1188 = vadd.f32 %v923, %v1187
      %v1189 = vpop.f32.mrb[0].mxu0
      %v1190 = vpop.f32.mrb[0].mxu0
      %v1191 = vadd.f32 %v923, %v1190
      %v1192 = vpop.f32.mrb[0].mxu0
      %1193 = vmatprep.mubr.bf16.mxu0 0
      %1194 = vmatmul.mubr.bf16.gmra.mrb[0].mxu0 %v995
      %v1195 = vpop.f32.mrb[0].mxu0
      %v1196 = vadd.f32 %v923, %v1195
      %v1197 = vpop.f32.mrb[0].mxu0
      %v1198 = vpop.f32.mrb[0].mxu0
      %v1199 = vadd.f32 %v923, %v1198
      %v1200 = vpop.f32.mrb[0].mxu0
      %1201 = vmatprep.mubr.bf16.mxu0 0
      %1202 = vmatmul.mubr.bf16.gmra.mrb[0].mxu0 %v998
      %v1203 = vpop.f32.mrb[0].mxu0
      %v1204 = vadd.f32 %v923, %v1203
      %v1205 = vpop.f32.mrb[0].mxu0
      %v1206 = vpop.f32.mrb[0].mxu0
      %v1207 = vadd.f32 %v923, %v1206
      %v1208 = vpop.f32.mrb[0].mxu0
      %1209 = vmatprep.mubr.bf16.mxu0 0
      %1210 = vmatmul.mubr.bf16.gmra.mrb[0].mxu0 %v1001
      %v1211 = vpop.f32.mrb[0].mxu0
      %v1212 = vadd.f32 %v923, %v1211
      %v1213 = vpop.f32.mrb[0].mxu0
      %v1214 = vpop.f32.mrb[0].mxu0
      %v1215 = vadd.f32 %v923, %v1214
      %v1216 = vpop.f32.mrb[0].mxu0
      %1217 = vmatprep.mubr.bf16.mxu0 0
      %1218 = vmatmul.mubr.bf16.gmra.mrb[0].mxu0 %v1004
      %v1219 = vpop.f32.mrb[0].mxu0
      %v1220 = vadd.f32 %v923, %v1219
      %v1221 = vpop.f32.mrb[0].mxu0
      %v1222 = vpop.f32.mrb[0].mxu0
      %v1223 = vadd.f32 %v923, %v1222
      %v1224 = vpop.f32.mrb[0].mxu0
      %1225 = vmatprep.mubr.bf16.mxu0 0
      %1226 = vmatmul.mubr.bf16.gmra.mrb[0].mxu0 %v1007
      %v1227 = vpop.f32.mrb[0].mxu0
      %v1228 = vadd.f32 %v923, %v1227
      %v1229 = vpop.f32.mrb[0].mxu0
      %v1230 = vpop.f32.mrb[0].mxu0
      %v1231 = vadd.f32 %v923, %v1230
      %v1232 = vpop.f32.mrb[0].mxu0
      %1233 = vdwg.mxu0
      %vm1234 = vcmp.gt.f32.partialorder %v1044, 0.0
      %vm1235 = vcmp.gt.f32.partialorder %v1047, 0.0
      %vm1236 = vcmp.gt.f32.partialorder %v1052, 0.0
      %vm1237 = vcmp.gt.f32.partialorder %v1055, 0.0
      %vm1238 = vcmp.gt.f32.partialorder %v1060, 0.0
      %vm1239 = vcmp.gt.f32.partialorder %v1063, 0.0
      %vm1240 = vcmp.gt.f32.partialorder %v1068, 0.0
      %vm1241 = vcmp.gt.f32.partialorder %v1071, 0.0
      %vm1242 = vcmp.gt.f32.partialorder %v1076, 0.0
      %vm1243 = vcmp.gt.f32.partialorder %v1079, 0.0
      %vm1244 = vcmp.gt.f32.partialorder %v1084, 0.0
      %vm1245 = vcmp.gt.f32.partialorder %v1087, 0.0
      %vm1246 = vcmp.gt.f32.partialorder %v1092, 0.0
      %vm1247 = vcmp.gt.f32.partialorder %v1095, 0.0
      %vm1248 = vcmp.gt.f32.partialorder %v1100, 0.0
      %vm1249 = vcmp.gt.f32.partialorder %v1103, 0.0
      %vm1250 = vcmp.gt.f32.partialorder %v1108, 0.0
      %vm1251 = vcmp.gt.f32.partialorder %v1111, 0.0
      %vm1252 = vcmp.gt.f32.partialorder %v1116, 0.0
      %vm1253 = vcmp.gt.f32.partialorder %v1119, 0.0
      %vm1254 = vcmp.gt.f32.partialorder %v1124, 0.0
      %vm1255 = vcmp.gt.f32.partialorder %v1127, 0.0
      %vm1256 = vcmp.gt.f32.partialorder %v1132, 0.0
      %vm1257 = vcmp.gt.f32.partialorder %v1135, 0.0
      %vm1258 = vcmp.gt.f32.partialorder %v1140, 0.0
      %vm1259 = vcmp.gt.f32.partialorder %v1143, 0.0
      %vm1260 = vcmp.gt.f32.partialorder %v1148, 0.0
      %vm1261 = vcmp.gt.f32.partialorder %v1151, 0.0
      %vm1262 = vcmp.gt.f32.partialorder %v1156, 0.0
      %vm1263 = vcmp.gt.f32.partialorder %v1159, 0.0
      %vm1264 = vcmp.gt.f32.partialorder %v1164, 0.0
      %vm1265 = vcmp.gt.f32.partialorder %v1167, 0.0
      %vm1266 = vcmp.gt.f32.partialorder %v1172, 0.0
      %vm1267 = vcmp.gt.f32.partialorder %v1175, 0.0
      %vm1268 = vcmp.gt.f32.partialorder %v1180, 0.0
      %vm1269 = vcmp.gt.f32.partialorder %v1183, 0.0
      %vm1270 = vcmp.gt.f32.partialorder %v1188, 0.0
      %vm1271 = vcmp.gt.f32.partialorder %v1191, 0.0
      %vm1272 = vcmp.gt.f32.partialorder %v1196, 0.0
      %vm1273 = vcmp.gt.f32.partialorder %v1199, 0.0
      %vm1274 = vcmp.gt.f32.partialorder %v1204, 0.0
      %vm1275 = vcmp.gt.f32.partialorder %v1207, 0.0
      %vm1276 = vcmp.gt.f32.partialorder %v1212, 0.0
      %vm1277 = vcmp.gt.f32.partialorder %v1215, 0.0
      %vm1278 = vcmp.gt.f32.partialorder %v1220, 0.0
      %vm1279 = vcmp.gt.f32.partialorder %v1223, 0.0
      %vm1280 = vcmp.gt.f32.partialorder %v1228, 0.0
      %vm1281 = vcmp.gt.f32.partialorder %v1231, 0.0
      %v1282 = vmul.f32 %v1044, 0.1
      %v1283 = vmul.f32 %v1047, 0.1
      %v1284 = vmul.f32 %v1052, 0.1
      %v1285 = vmul.f32 %v1055, 0.1
      %v1286 = vmul.f32 %v1060, 0.1
      %v1287 = vmul.f32 %v1063, 0.1
      %v1288 = vmul.f32 %v1068, 0.1
      %v1289 = vmul.f32 %v1071, 0.1
      %v1290 = vmul.f32 %v1076, 0.1
      %v1291 = vmul.f32 %v1079, 0.1
      %v1292 = vmul.f32 %v1084, 0.1
      %v1293 = vmul.f32 %v1087, 0.1
      %v1294 = vmul.f32 %v1092, 0.1
      %v1295 = vmul.f32 %v1095, 0.1
      %v1296 = vmul.f32 %v1100, 0.1
      %v1297 = vmul.f32 %v1103, 0.1
      %v1298 = vmul.f32 %v1108, 0.1
      %v1299 = vmul.f32 %v1111, 0.1
      %v1300 = vmul.f32 %v1116, 0.1
      %v1301 = vmul.f32 %v1119, 0.1
      %v1302 = vmul.f32 %v1124, 0.1
      %v1303 = vmul.f32 %v1127, 0.1
      %v1304 = vmul.f32 %v1132, 0.1
      %v1305 = vmul.f32 %v1135, 0.1
      %v1306 = vmul.f32 %v1140, 0.1
      %v1307 = vmul.f32 %v1143, 0.1
      %v1308 = vmul.f32 %v1148, 0.1
      %v1309 = vmul.f32 %v1151, 0.1
      %v1310 = vmul.f32 %v1156, 0.1
      %v1311 = vmul.f32 %v1159, 0.1
      %v1312 = vmul.f32 %v1164, 0.1
      %v1313 = vmul.f32 %v1167, 0.1
      %v1314 = vmul.f32 %v1172, 0.1
      %v1315 = vmul.f32 %v1175, 0.1
      %v1316 = vmul.f32 %v1180, 0.1
      %v1317 = vmul.f32 %v1183, 0.1
      %v1318 = vmul.f32 %v1188, 0.1
      %v1319 = vmul.f32 %v1191, 0.1
      %v1320 = vmul.f32 %v1196, 0.1
      %v1321 = vmul.f32 %v1199, 0.1
      %v1322 = vmul.f32 %v1204, 0.1
      %v1323 = vmul.f32 %v1207, 0.1
      %v1324 = vmul.f32 %v1212, 0.1
      %v1325 = vmul.f32 %v1215, 0.1
      %v1326 = vmul.f32 %v1220, 0.1
      %v1327 = vmul.f32 %v1223, 0.1
      %v1328 = vmul.f32 %v1228, 0.1
      %v1329 = vmul.f32 %v1231, 0.1
      %v1330 = vsel %vm1234, %v1044, %v1282
      %v1331 = vsel %vm1235, %v1047, %v1283
      %v1332 = vsel %vm1236, %v1052, %v1284
      %v1333 = vsel %vm1237, %v1055, %v1285
      %v1334 = vsel %vm1238, %v1060, %v1286
      %v1335 = vsel %vm1239, %v1063, %v1287
      %v1336 = vsel %vm1240, %v1068, %v1288
      %v1337 = vsel %vm1241, %v1071, %v1289
      %v1338 = vsel %vm1242, %v1076, %v1290
      %v1339 = vsel %vm1243, %v1079, %v1291
      %v1340 = vsel %vm1244, %v1084, %v1292
      %v1341 = vsel %vm1245, %v1087, %v1293
      %v1342 = vsel %vm1246, %v1092, %v1294
      %v1343 = vsel %vm1247, %v1095, %v1295
      %v1344 = vsel %vm1248, %v1100, %v1296
      %v1345 = vsel %vm1249, %v1103, %v1297
      %v1346 = vsel %vm1250, %v1108, %v1298
      %v1347 = vsel %vm1251, %v1111, %v1299
      %v1348 = vsel %vm1252, %v1116, %v1300
      %v1349 = vsel %vm1253, %v1119, %v1301
      %v1350 = vsel %vm1254, %v1124, %v1302
      %v1351 = vsel %vm1255, %v1127, %v1303
      %v1352 = vsel %vm1256, %v1132, %v1304
      %v1353 = vsel %vm1257, %v1135, %v1305
      %v1354 = vsel %vm1258, %v1140, %v1306
      %v1355 = vsel %vm1259, %v1143, %v1307
      %v1356 = vsel %vm1260, %v1148, %v1308
      %v1357 = vsel %vm1261, %v1151, %v1309
      %v1358 = vsel %vm1262, %v1156, %v1310
      %v1359 = vsel %vm1263, %v1159, %v1311
      %v1360 = vsel %vm1264, %v1164, %v1312
      %v1361 = vsel %vm1265, %v1167, %v1313
      %v1362 = vsel %vm1266, %v1172, %v1314
      %v1363 = vsel %vm1267, %v1175, %v1315
      %v1364 = vsel %vm1268, %v1180, %v1316
      %v1365 = vsel %vm1269, %v1183, %v1317
      %v1366 = vsel %vm1270, %v1188, %v1318
      %v1367 = vsel %vm1271, %v1191, %v1319
      %v1368 = vsel %vm1272, %v1196, %v1320
      %v1369 = vsel %vm1273, %v1199, %v1321
      %v1370 = vsel %vm1274, %v1204, %v1322
      %v1371 = vsel %vm1275, %v1207, %v1323
      %v1372 = vsel %vm1276, %v1212, %v1324
      %v1373 = vsel %vm1277, %v1215, %v1325
      %v1374 = vsel %vm1278, %v1220, %v1326
      %v1375 = vsel %vm1279, %v1223, %v1327
      %v1376 = vsel %vm1280, %v1228, %v1328
      %v1377 = vsel %vm1281, %v1231, %v1329
      %v1378 = vpack.c.bf16 %v1331, %v1330
      %v1379 = vpack.c.bf16 %v1333, %v1332
      %v1380 = vpack.c.bf16 %v1335, %v1334
      %v1381 = vpack.c.bf16 %v1337, %v1336
      %v1382 = vpack.c.bf16 %v1339, %v1338
      %v1383 = vpack.c.bf16 %v1341, %v1340
      %v1384 = vpack.c.bf16 %v1343, %v1342
      %v1385 = vpack.c.bf16 %v1345, %v1344
      %v1386 = vpack.c.bf16 %v1347, %v1346
      %v1387 = vpack.c.bf16 %v1349, %v1348
      %v1388 = vpack.c.bf16 %v1351, %v1350
      %v1389 = vpack.c.bf16 %v1353, %v1352
      %v1390 = vpack.c.bf16 %v1355, %v1354
      %v1391 = vpack.c.bf16 %v1357, %v1356
      %v1392 = vpack.c.bf16 %v1359, %v1358
      %v1393 = vpack.c.bf16 %v1361, %v1360
      %v1394 = vpack.c.bf16 %v1363, %v1362
      %v1395 = vpack.c.bf16 %v1365, %v1364
      %v1396 = vpack.c.bf16 %v1367, %v1366
      %v1397 = vpack.c.bf16 %v1369, %v1368
      %v1398 = vpack.c.bf16 %v1371, %v1370
      %v1399 = vpack.c.bf16 %v1373, %v1372
      %v1400 = vpack.c.bf16 %v1375, %v1374
      %v1401 = vpack.c.bf16 %v1377, %v1376
      %s1402 = scalar_lea.vmem %s2, 16
      %v1403 = vld [vmem:[%s1402] sm:$0xf]
      %v1404 = vld [vmem:[%s1402 + $0x4] sm:$0xf]
      %v1405 = vld [vmem:[%s1402 + $0x8] sm:$0xf]
      %v1406 = vld [vmem:[%s1402 + $0xc] sm:$0xf]
      %s1407 = scalar_lea.vmem %s4, 2
      %v1408 = vld [vmem:[%s1407] sm:$0x1]
      %v1410 = vlaneseq
      %v1411 = vshrl.u32 %v1410, 7
      %v1412 = vsub.s32 0, %v1411
      %v1413 = vrot.slane %v1408, %v1412
      %v1419 = vunpack.c.l.b16 %v1403
      %v1420 = vunpack.c.l.b16 %v1404
      %v1421 = vunpack.c.l.b16 %v1405
      %v1422 = vunpack.c.l.b16 %v1406
      %v1423 = vpack.c.b16 %v1420, %v1419
      %v1424 = vpack.c.b16 %v1422, %v1421
      %v1428 = vsel %vm447, %v1378, 0
      %v1431 = vsel %vm447, %v1379, 0
      %v1434 = vsel %vm447, %v1380, 0
      %v1437 = vsel %vm447, %v1381, 0
      %v1440 = vsel %vm447, %v1382, 0
      %v1443 = vsel %vm447, %v1383, 0
      %v1446 = vsel %vm447, %v1384, 0
      %v1449 = vsel %vm447, %v1385, 0
      %v1452 = vsel %vm447, %v1386, 0
      %v1455 = vsel %vm447, %v1387, 0
      %v1458 = vsel %vm447, %v1388, 0
      %v1461 = vsel %vm447, %v1389, 0
      %v1464 = vsel %vm447, %v1390, 0
      %v1467 = vsel %vm447, %v1391, 0
      %v1470 = vsel %vm447, %v1392, 0
      %v1473 = vsel %vm447, %v1393, 0
      %v1476 = vsel %vm447, %v1394, 0
      %v1479 = vsel %vm447, %v1395, 0
      %v1482 = vsel %vm447, %v1396, 0
      %v1485 = vsel %vm447, %v1397, 0
      %v1488 = vsel %vm447, %v1398, 0
      %v1491 = vsel %vm447, %v1399, 0
      %v1494 = vsel %vm447, %v1400, 0
      %v1497 = vsel %vm447, %v1401, 0
      %1499 = vmatprep.subr.bf16.mxu0 0
      %1500 = vmatpush1.bf16.msra.mxu0 %v1423
      %1501 = vmatprep.subr.bf16.mxu0 0
      %1502 = vmatpush1.bf16.msra.mxu0 %v1424
      %1503 = vmatprep.subr.bf16.mxu0 0
      %1504 = vmatpush1.bf16.msra.mxu0 0
      %1505 = vmatprep.subr.bf16.mxu0 0
      %1506 = vmatpush1.bf16.msra.mxu0 0
      %1507 = vmatprep.subr.bf16.mxu0 0
      %1508 = vmatpush1.bf16.msra.mxu0 0
      %1509 = vmatprep.subr.bf16.mxu0 0
      %1510 = vmatpush1.bf16.msra.mxu0 0
      %1511 = vmatprep.subr.bf16.mxu0 0
      %1512 = vmatpush1.bf16.msra.mxu0 0
      %1513 = vmatprep.subr.bf16.mxu0 0
      %1514 = vmatpush1.bf16.msra.mxu0 0
      %1515 = vmatprep.subr.bf16.mxu0 0
      %1516 = vmatpush1.bf16.msra.mxu0 0
      %1517 = vmatprep.subr.bf16.mxu0 0
      %1518 = vmatpush1.bf16.msra.mxu0 0
      %1519 = vmatprep.subr.bf16.mxu0 0
      %1520 = vmatpush1.bf16.msra.mxu0 0
      %1521 = vmatprep.subr.bf16.mxu0 0
      %1522 = vmatpush1.bf16.msra.mxu0 0
      %1523 = vmatprep.subr.bf16.mxu0 0
      %1524 = vmatpush1.bf16.msra.mxu0 0
      %1525 = vmatprep.subr.bf16.mxu0 0
      %1526 = vmatpush1.bf16.msra.mxu0 0
      %1527 = vmatprep.subr.bf16.mxu0 0
      %1528 = vmatpush1.bf16.msra.mxu0 0
      %1529 = vmatprep.subr.bf16.mxu0 0
      %1530 = vmatpush1.bf16.msra.mxu0 0
      %1531 = vmatprep.mubr.bf16.mxu0 0
      %1532 = vmatmul.mubr.bf16.gmra.mrb[0].mxu0 %v1428
      %v1533 = vpop.f32.mrb[0].mxu0
      %v1534 = vadd.f32 %v1413, %v1533
      %v1535 = vpop.f32.mrb[0].mxu0
      %v1536 = vpop.f32.mrb[0].mxu0
      %v1537 = vadd.f32 %v1413, %v1536
      %v1538 = vpop.f32.mrb[0].mxu0
      %1539 = vmatprep.mubr.bf16.mxu0 0
      %1540 = vmatmul.mubr.bf16.gmra.mrb[0].mxu0 %v1431
      %v1541 = vpop.f32.mrb[0].mxu0
      %v1542 = vadd.f32 %v1413, %v1541
      %v1543 = vpop.f32.mrb[0].mxu0
      %v1544 = vpop.f32.mrb[0].mxu0
      %v1545 = vadd.f32 %v1413, %v1544
      %v1546 = vpop.f32.mrb[0].mxu0
      %1547 = vmatprep.mubr.bf16.mxu0 0
      %1548 = vmatmul.mubr.bf16.gmra.mrb[0].mxu0 %v1434
      %v1549 = vpop.f32.mrb[0].mxu0
      %v1550 = vadd.f32 %v1413, %v1549
      %v1551 = vpop.f32.mrb[0].mxu0
      %v1552 = vpop.f32.mrb[0].mxu0
      %v1553 = vadd.f32 %v1413, %v1552
      %v1554 = vpop.f32.mrb[0].mxu0
      %1555 = vmatprep.mubr.bf16.mxu0 0
      %1556 = vmatmul.mubr.bf16.gmra.mrb[0].mxu0 %v1437
      %v1557 = vpop.f32.mrb[0].mxu0
      %v1558 = vadd.f32 %v1413, %v1557
      %v1559 = vpop.f32.mrb[0].mxu0
      %v1560 = vpop.f32.mrb[0].mxu0
      %v1561 = vadd.f32 %v1413, %v1560
      %v1562 = vpop.f32.mrb[0].mxu0
      %1563 = vmatprep.mubr.bf16.mxu0 0
      %1564 = vmatmul.mubr.bf16.gmra.mrb[0].mxu0 %v1440
      %v1565 = vpop.f32.mrb[0].mxu0
      %v1566 = vadd.f32 %v1413, %v1565
      %v1567 = vpop.f32.mrb[0].mxu0
      %v1568 = vpop.f32.mrb[0].mxu0
      %v1569 = vadd.f32 %v1413, %v1568
      %v1570 = vpop.f32.mrb[0].mxu0
      %1571 = vmatprep.mubr.bf16.mxu0 0
      %1572 = vmatmul.mubr.bf16.gmra.mrb[0].mxu0 %v1443
      %v1573 = vpop.f32.mrb[0].mxu0
      %v1574 = vadd.f32 %v1413, %v1573
      %v1575 = vpop.f32.mrb[0].mxu0
      %v1576 = vpop.f32.mrb[0].mxu0
      %v1577 = vadd.f32 %v1413, %v1576
      %v1578 = vpop.f32.mrb[0].mxu0
      %1579 = vmatprep.mubr.bf16.mxu0 0
      %1580 = vmatmul.mubr.bf16.gmra.mrb[0].mxu0 %v1446
      %v1581 = vpop.f32.mrb[0].mxu0
      %v1582 = vadd.f32 %v1413, %v1581
      %v1583 = vpop.f32.mrb[0].mxu0
      %v1584 = vpop.f32.mrb[0].mxu0
      %v1585 = vadd.f32 %v1413, %v1584
      %v1586 = vpop.f32.mrb[0].mxu0
      %1587 = vmatprep.mubr.bf16.mxu0 0
      %1588 = vmatmul.mubr.bf16.gmra.mrb[0].mxu0 %v1449
      %v1589 = vpop.f32.mrb[0].mxu0
      %v1590 = vadd.f32 %v1413, %v1589
      %v1591 = vpop.f32.mrb[0].mxu0
      %v1592 = vpop.f32.mrb[0].mxu0
      %v1593 = vadd.f32 %v1413, %v1592
      %v1594 = vpop.f32.mrb[0].mxu0
      %1595 = vmatprep.mubr.bf16.mxu0 0
      %1596 = vmatmul.mubr.bf16.gmra.mrb[0].mxu0 %v1452
      %v1597 = vpop.f32.mrb[0].mxu0
      %v1598 = vadd.f32 %v1413, %v1597
      %v1599 = vpop.f32.mrb[0].mxu0
      %v1600 = vpop.f32.mrb[0].mxu0
      %v1601 = vadd.f32 %v1413, %v1600
      %v1602 = vpop.f32.mrb[0].mxu0
      %1603 = vmatprep.mubr.bf16.mxu0 0
      %1604 = vmatmul.mubr.bf16.gmra.mrb[0].mxu0 %v1455
      %v1605 = vpop.f32.mrb[0].mxu0
      %v1606 = vadd.f32 %v1413, %v1605
      %v1607 = vpop.f32.mrb[0].mxu0
      %v1608 = vpop.f32.mrb[0].mxu0
      %v1609 = vadd.f32 %v1413, %v1608
      %v1610 = vpop.f32.mrb[0].mxu0
      %1611 = vmatprep.mubr.bf16.mxu0 0
      %1612 = vmatmul.mubr.bf16.gmra.mrb[0].mxu0 %v1458
      %v1613 = vpop.f32.mrb[0].mxu0
      %v1614 = vadd.f32 %v1413, %v1613
      %v1615 = vpop.f32.mrb[0].mxu0
      %v1616 = vpop.f32.mrb[0].mxu0
      %v1617 = vadd.f32 %v1413, %v1616
      %v1618 = vpop.f32.mrb[0].mxu0
      %1619 = vmatprep.mubr.bf16.mxu0 0
      %1620 = vmatmul.mubr.bf16.gmra.mrb[0].mxu0 %v1461
      %v1621 = vpop.f32.mrb[0].mxu0
      %v1622 = vadd.f32 %v1413, %v1621
      %v1623 = vpop.f32.mrb[0].mxu0
      %v1624 = vpop.f32.mrb[0].mxu0
      %v1625 = vadd.f32 %v1413, %v1624
      %v1626 = vpop.f32.mrb[0].mxu0
      %1627 = vmatprep.mubr.bf16.mxu0 0
      %1628 = vmatmul.mubr.bf16.gmra.mrb[0].mxu0 %v1464
      %v1629 = vpop.f32.mrb[0].mxu0
      %v1630 = vadd.f32 %v1413, %v1629
      %v1631 = vpop.f32.mrb[0].mxu0
      %v1632 = vpop.f32.mrb[0].mxu0
      %v1633 = vadd.f32 %v1413, %v1632
      %v1634 = vpop.f32.mrb[0].mxu0
      %1635 = vmatprep.mubr.bf16.mxu0 0
      %1636 = vmatmul.mubr.bf16.gmra.mrb[0].mxu0 %v1467
      %v1637 = vpop.f32.mrb[0].mxu0
      %v1638 = vadd.f32 %v1413, %v1637
      %v1639 = vpop.f32.mrb[0].mxu0
      %v1640 = vpop.f32.mrb[0].mxu0
      %v1641 = vadd.f32 %v1413, %v1640
      %v1642 = vpop.f32.mrb[0].mxu0
      %1643 = vmatprep.mubr.bf16.mxu0 0
      %1644 = vmatmul.mubr.bf16.gmra.mrb[0].mxu0 %v1470
      %v1645 = vpop.f32.mrb[0].mxu0
      %v1646 = vadd.f32 %v1413, %v1645
      %v1647 = vpop.f32.mrb[0].mxu0
      %v1648 = vpop.f32.mrb[0].mxu0
      %v1649 = vadd.f32 %v1413, %v1648
      %v1650 = vpop.f32.mrb[0].mxu0
      %1651 = vmatprep.mubr.bf16.mxu0 0
      %1652 = vmatmul.mubr.bf16.gmra.mrb[0].mxu0 %v1473
      %v1653 = vpop.f32.mrb[0].mxu0
      %v1654 = vadd.f32 %v1413, %v1653
      %v1655 = vpop.f32.mrb[0].mxu0
      %v1656 = vpop.f32.mrb[0].mxu0
      %v1657 = vadd.f32 %v1413, %v1656
      %v1658 = vpop.f32.mrb[0].mxu0
      %1659 = vmatprep.mubr.bf16.mxu0 0
      %1660 = vmatmul.mubr.bf16.gmra.mrb[0].mxu0 %v1476
      %v1661 = vpop.f32.mrb[0].mxu0
      %v1662 = vadd.f32 %v1413, %v1661
      %v1663 = vpop.f32.mrb[0].mxu0
      %v1664 = vpop.f32.mrb[0].mxu0
      %v1665 = vadd.f32 %v1413, %v1664
      %v1666 = vpop.f32.mrb[0].mxu0
      %1667 = vmatprep.mubr.bf16.mxu0 0
      %1668 = vmatmul.mubr.bf16.gmra.mrb[0].mxu0 %v1479
      %v1669 = vpop.f32.mrb[0].mxu0
      %v1670 = vadd.f32 %v1413, %v1669
      %v1671 = vpop.f32.mrb[0].mxu0
      %v1672 = vpop.f32.mrb[0].mxu0
      %v1673 = vadd.f32 %v1413, %v1672
      %v1674 = vpop.f32.mrb[0].mxu0
      %1675 = vmatprep.mubr.bf16.mxu0 0
      %1676 = vmatmul.mubr.bf16.gmra.mrb[0].mxu0 %v1482
      %v1677 = vpop.f32.mrb[0].mxu0
      %v1678 = vadd.f32 %v1413, %v1677
      %v1679 = vpop.f32.mrb[0].mxu0
      %v1680 = vpop.f32.mrb[0].mxu0
      %v1681 = vadd.f32 %v1413, %v1680
      %v1682 = vpop.f32.mrb[0].mxu0
      %1683 = vmatprep.mubr.bf16.mxu0 0
      %1684 = vmatmul.mubr.bf16.gmra.mrb[0].mxu0 %v1485
      %v1685 = vpop.f32.mrb[0].mxu0
      %v1686 = vadd.f32 %v1413, %v1685
      %v1687 = vpop.f32.mrb[0].mxu0
      %v1688 = vpop.f32.mrb[0].mxu0
      %v1689 = vadd.f32 %v1413, %v1688
      %v1690 = vpop.f32.mrb[0].mxu0
      %1691 = vmatprep.mubr.bf16.mxu0 0
      %1692 = vmatmul.mubr.bf16.gmra.mrb[0].mxu0 %v1488
      %v1693 = vpop.f32.mrb[0].mxu0
      %v1694 = vadd.f32 %v1413, %v1693
      %v1695 = vpop.f32.mrb[0].mxu0
      %v1696 = vpop.f32.mrb[0].mxu0
      %v1697 = vadd.f32 %v1413, %v1696
      %v1698 = vpop.f32.mrb[0].mxu0
      %1699 = vmatprep.mubr.bf16.mxu0 0
      %1700 = vmatmul.mubr.bf16.gmra.mrb[0].mxu0 %v1491
      %v1701 = vpop.f32.mrb[0].mxu0
      %v1702 = vadd.f32 %v1413, %v1701
      %v1703 = vpop.f32.mrb[0].mxu0
      %v1704 = vpop.f32.mrb[0].mxu0
      %v1705 = vadd.f32 %v1413, %v1704
      %v1706 = vpop.f32.mrb[0].mxu0
      %1707 = vmatprep.mubr.bf16.mxu0 0
      %1708 = vmatmul.mubr.bf16.gmra.mrb[0].mxu0 %v1494
      %v1709 = vpop.f32.mrb[0].mxu0
      %v1710 = vadd.f32 %v1413, %v1709
      %v1711 = vpop.f32.mrb[0].mxu0
      %v1712 = vpop.f32.mrb[0].mxu0
      %v1713 = vadd.f32 %v1413, %v1712
      %v1714 = vpop.f32.mrb[0].mxu0
      %1715 = vmatprep.mubr.bf16.mxu0 0
      %1716 = vmatmul.mubr.bf16.gmra.mrb[0].mxu0 %v1497
      %v1717 = vpop.f32.mrb[0].mxu0
      %v1718 = vadd.f32 %v1413, %v1717
      %v1719 = vpop.f32.mrb[0].mxu0
      %v1720 = vpop.f32.mrb[0].mxu0
      %v1721 = vadd.f32 %v1413, %v1720
      %v1722 = vpop.f32.mrb[0].mxu0
      %1723 = vdwg.mxu0
      %vm1724 = vcmp.gt.f32.partialorder %v1534, 0.0
      %vm1725 = vcmp.gt.f32.partialorder %v1537, 0.0
      %vm1726 = vcmp.gt.f32.partialorder %v1542, 0.0
      %vm1727 = vcmp.gt.f32.partialorder %v1545, 0.0
      %vm1728 = vcmp.gt.f32.partialorder %v1550, 0.0
      %vm1729 = vcmp.gt.f32.partialorder %v1553, 0.0
      %vm1730 = vcmp.gt.f32.partialorder %v1558, 0.0
      %vm1731 = vcmp.gt.f32.partialorder %v1561, 0.0
      %vm1732 = vcmp.gt.f32.partialorder %v1566, 0.0
      %vm1733 = vcmp.gt.f32.partialorder %v1569, 0.0
      %vm1734 = vcmp.gt.f32.partialorder %v1574, 0.0
      %vm1735 = vcmp.gt.f32.partialorder %v1577, 0.0
      %vm1736 = vcmp.gt.f32.partialorder %v1582, 0.0
      %vm1737 = vcmp.gt.f32.partialorder %v1585, 0.0
      %vm1738 = vcmp.gt.f32.partialorder %v1590, 0.0
      %vm1739 = vcmp.gt.f32.partialorder %v1593, 0.0
      %vm1740 = vcmp.gt.f32.partialorder %v1598, 0.0
      %vm1741 = vcmp.gt.f32.partialorder %v1601, 0.0
      %vm1742 = vcmp.gt.f32.partialorder %v1606, 0.0
      %vm1743 = vcmp.gt.f32.partialorder %v1609, 0.0
      %vm1744 = vcmp.gt.f32.partialorder %v1614, 0.0
      %vm1745 = vcmp.gt.f32.partialorder %v1617, 0.0
      %vm1746 = vcmp.gt.f32.partialorder %v1622, 0.0
      %vm1747 = vcmp.gt.f32.partialorder %v1625, 0.0
      %vm1748 = vcmp.gt.f32.partialorder %v1630, 0.0
      %vm1749 = vcmp.gt.f32.partialorder %v1633, 0.0
      %vm1750 = vcmp.gt.f32.partialorder %v1638, 0.0
      %vm1751 = vcmp.gt.f32.partialorder %v1641, 0.0
      %vm1752 = vcmp.gt.f32.partialorder %v1646, 0.0
      %vm1753 = vcmp.gt.f32.partialorder %v1649, 0.0
      %vm1754 = vcmp.gt.f32.partialorder %v1654, 0.0
      %vm1755 = vcmp.gt.f32.partialorder %v1657, 0.0
      %vm1756 = vcmp.gt.f32.partialorder %v1662, 0.0
      %vm1757 = vcmp.gt.f32.partialorder %v1665, 0.0
      %vm1758 = vcmp.gt.f32.partialorder %v1670, 0.0
      %vm1759 = vcmp.gt.f32.partialorder %v1673, 0.0
      %vm1760 = vcmp.gt.f32.partialorder %v1678, 0.0
      %vm1761 = vcmp.gt.f32.partialorder %v1681, 0.0
      %vm1762 = vcmp.gt.f32.partialorder %v1686, 0.0
      %vm1763 = vcmp.gt.f32.partialorder %v1689, 0.0
      %vm1764 = vcmp.gt.f32.partialorder %v1694, 0.0
      %vm1765 = vcmp.gt.f32.partialorder %v1697, 0.0
      %vm1766 = vcmp.gt.f32.partialorder %v1702, 0.0
      %vm1767 = vcmp.gt.f32.partialorder %v1705, 0.0
      %vm1768 = vcmp.gt.f32.partialorder %v1710, 0.0
      %vm1769 = vcmp.gt.f32.partialorder %v1713, 0.0
      %vm1770 = vcmp.gt.f32.partialorder %v1718, 0.0
      %vm1771 = vcmp.gt.f32.partialorder %v1721, 0.0
      %v1772 = vmul.f32 %v1534, 0.1
      %v1773 = vmul.f32 %v1537, 0.1
      %v1774 = vmul.f32 %v1542, 0.1
      %v1775 = vmul.f32 %v1545, 0.1
      %v1776 = vmul.f32 %v1550, 0.1
      %v1777 = vmul.f32 %v1553, 0.1
      %v1778 = vmul.f32 %v1558, 0.1
      %v1779 = vmul.f32 %v1561, 0.1
      %v1780 = vmul.f32 %v1566, 0.1
      %v1781 = vmul.f32 %v1569, 0.1
      %v1782 = vmul.f32 %v1574, 0.1
      %v1783 = vmul.f32 %v1577, 0.1
      %v1784 = vmul.f32 %v1582, 0.1
      %v1785 = vmul.f32 %v1585, 0.1
      %v1786 = vmul.f32 %v1590, 0.1
      %v1787 = vmul.f32 %v1593, 0.1
      %v1788 = vmul.f32 %v1598, 0.1
      %v1789 = vmul.f32 %v1601, 0.1
      %v1790 = vmul.f32 %v1606, 0.1
      %v1791 = vmul.f32 %v1609, 0.1
      %v1792 = vmul.f32 %v1614, 0.1
      %v1793 = vmul.f32 %v1617, 0.1
      %v1794 = vmul.f32 %v1622, 0.1
      %v1795 = vmul.f32 %v1625, 0.1
      %v1796 = vmul.f32 %v1630, 0.1
      %v1797 = vmul.f32 %v1633, 0.1
      %v1798 = vmul.f32 %v1638, 0.1
      %v1799 = vmul.f32 %v1641, 0.1
      %v1800 = vmul.f32 %v1646, 0.1
      %v1801 = vmul.f32 %v1649, 0.1
      %v1802 = vmul.f32 %v1654, 0.1
      %v1803 = vmul.f32 %v1657, 0.1
      %v1804 = vmul.f32 %v1662, 0.1
      %v1805 = vmul.f32 %v1665, 0.1
      %v1806 = vmul.f32 %v1670, 0.1
      %v1807 = vmul.f32 %v1673, 0.1
      %v1808 = vmul.f32 %v1678, 0.1
      %v1809 = vmul.f32 %v1681, 0.1
      %v1810 = vmul.f32 %v1686, 0.1
      %v1811 = vmul.f32 %v1689, 0.1
      %v1812 = vmul.f32 %v1694, 0.1
      %v1813 = vmul.f32 %v1697, 0.1
      %v1814 = vmul.f32 %v1702, 0.1
      %v1815 = vmul.f32 %v1705, 0.1
      %v1816 = vmul.f32 %v1710, 0.1
      %v1817 = vmul.f32 %v1713, 0.1
      %v1818 = vmul.f32 %v1718, 0.1
      %v1819 = vmul.f32 %v1721, 0.1
      %v1820 = vsel %vm1724, %v1534, %v1772
      %v1821 = vsel %vm1725, %v1537, %v1773
      %v1822 = vsel %vm1726, %v1542, %v1774
      %v1823 = vsel %vm1727, %v1545, %v1775
      %v1824 = vsel %vm1728, %v1550, %v1776
      %v1825 = vsel %vm1729, %v1553, %v1777
      %v1826 = vsel %vm1730, %v1558, %v1778
      %v1827 = vsel %vm1731, %v1561, %v1779
      %v1828 = vsel %vm1732, %v1566, %v1780
      %v1829 = vsel %vm1733, %v1569, %v1781
      %v1830 = vsel %vm1734, %v1574, %v1782
      %v1831 = vsel %vm1735, %v1577, %v1783
      %v1832 = vsel %vm1736, %v1582, %v1784
      %v1833 = vsel %vm1737, %v1585, %v1785
      %v1834 = vsel %vm1738, %v1590, %v1786
      %v1835 = vsel %vm1739, %v1593, %v1787
      %v1836 = vsel %vm1740, %v1598, %v1788
      %v1837 = vsel %vm1741, %v1601, %v1789
      %v1838 = vsel %vm1742, %v1606, %v1790
      %v1839 = vsel %vm1743, %v1609, %v1791
      %v1840 = vsel %vm1744, %v1614, %v1792
      %v1841 = vsel %vm1745, %v1617, %v1793
      %v1842 = vsel %vm1746, %v1622, %v1794
      %v1843 = vsel %vm1747, %v1625, %v1795
      %v1844 = vsel %vm1748, %v1630, %v1796
      %v1845 = vsel %vm1749, %v1633, %v1797
      %v1846 = vsel %vm1750, %v1638, %v1798
      %v1847 = vsel %vm1751, %v1641, %v1799
      %v1848 = vsel %vm1752, %v1646, %v1800
      %v1849 = vsel %vm1753, %v1649, %v1801
      %v1850 = vsel %vm1754, %v1654, %v1802
      %v1851 = vsel %vm1755, %v1657, %v1803
      %v1852 = vsel %vm1756, %v1662, %v1804
      %v1853 = vsel %vm1757, %v1665, %v1805
      %v1854 = vsel %vm1758, %v1670, %v1806
      %v1855 = vsel %vm1759, %v1673, %v1807
      %v1856 = vsel %vm1760, %v1678, %v1808
      %v1857 = vsel %vm1761, %v1681, %v1809
      %v1858 = vsel %vm1762, %v1686, %v1810
      %v1859 = vsel %vm1763, %v1689, %v1811
      %v1860 = vsel %vm1764, %v1694, %v1812
      %v1861 = vsel %vm1765, %v1697, %v1813
      %v1862 = vsel %vm1766, %v1702, %v1814
      %v1863 = vsel %vm1767, %v1705, %v1815
      %v1864 = vsel %vm1768, %v1710, %v1816
      %v1865 = vsel %vm1769, %v1713, %v1817
      %v1866 = vsel %vm1770, %v1718, %v1818
      %v1867 = vsel %vm1771, %v1721, %v1819
      %v1868 = vpack.c.bf16 %v1821, %v1820
      %v1869 = vpack.c.bf16 %v1823, %v1822
      %v1870 = vpack.c.bf16 %v1825, %v1824
      %v1871 = vpack.c.bf16 %v1827, %v1826
      %v1872 = vpack.c.bf16 %v1829, %v1828
      %v1873 = vpack.c.bf16 %v1831, %v1830
      %v1874 = vpack.c.bf16 %v1833, %v1832
      %v1875 = vpack.c.bf16 %v1835, %v1834
      %v1876 = vpack.c.bf16 %v1837, %v1836
      %v1877 = vpack.c.bf16 %v1839, %v1838
      %v1878 = vpack.c.bf16 %v1841, %v1840
      %v1879 = vpack.c.bf16 %v1843, %v1842
      %v1880 = vpack.c.bf16 %v1845, %v1844
      %v1881 = vpack.c.bf16 %v1847, %v1846
      %v1882 = vpack.c.bf16 %v1849, %v1848
      %v1883 = vpack.c.bf16 %v1851, %v1850
      %v1884 = vpack.c.bf16 %v1853, %v1852
      %v1885 = vpack.c.bf16 %v1855, %v1854
      %v1886 = vpack.c.bf16 %v1857, %v1856
      %v1887 = vpack.c.bf16 %v1859, %v1858
      %v1888 = vpack.c.bf16 %v1861, %v1860
      %v1889 = vpack.c.bf16 %v1863, %v1862
      %v1890 = vpack.c.bf16 %v1865, %v1864
      %v1891 = vpack.c.bf16 %v1867, %v1866
      %s1892 = scalar_lea.vmem %s2, 32
      %v1893 = vld [vmem:[%s1892] sm:$0xf]
      %v1894 = vld [vmem:[%s1892 + $0x4] sm:$0xf]
      %v1895 = vld [vmem:[%s1892 + $0x8] sm:$0xf]
      %v1896 = vld [vmem:[%s1892 + $0xc] sm:$0xf]
      %s1897 = scalar_lea.vmem %s4, 3
      %v1898 = vld [vmem:[%s1897] sm:$0x1]
      %v1900 = vlaneseq
      %v1901 = vshrl.u32 %v1900, 7
      %v1902 = vsub.s32 0, %v1901
      %v1903 = vrot.slane %v1898, %v1902
      %v1909 = vunpack.c.l.b16 %v1893
      %v1910 = vunpack.c.l.b16 %v1894
      %v1911 = vunpack.c.l.b16 %v1895
      %v1912 = vunpack.c.l.b16 %v1896
      %v1913 = vpack.c.b16 %v1910, %v1909
      %v1914 = vpack.c.b16 %v1912, %v1911
      %v1918 = vsel %vm447, %v1868, 0
      %v1921 = vsel %vm447, %v1869, 0
      %v1924 = vsel %vm447, %v1870, 0
      %v1927 = vsel %vm447, %v1871, 0
      %v1930 = vsel %vm447, %v1872, 0
      %v1933 = vsel %vm447, %v1873, 0
      %v1936 = vsel %vm447, %v1874, 0
      %v1939 = vsel %vm447, %v1875, 0
      %v1942 = vsel %vm447, %v1876, 0
      %v1945 = vsel %vm447, %v1877, 0
      %v1948 = vsel %vm447, %v1878, 0
      %v1951 = vsel %vm447, %v1879, 0
      %v1954 = vsel %vm447, %v1880, 0
      %v1957 = vsel %vm447, %v1881, 0
      %v1960 = vsel %vm447, %v1882, 0
      %v1963 = vsel %vm447, %v1883, 0
      %v1966 = vsel %vm447, %v1884, 0
      %v1969 = vsel %vm447, %v1885, 0
      %v1972 = vsel %vm447, %v1886, 0
      %v1975 = vsel %vm447, %v1887, 0
      %v1978 = vsel %vm447, %v1888, 0
      %v1981 = vsel %vm447, %v1889, 0
      %v1984 = vsel %vm447, %v1890, 0
      %v1987 = vsel %vm447, %v1891, 0
      %1989 = vmatprep.subr.bf16.mxu0 0
      %1990 = vmatpush1.bf16.msra.mxu0 %v1913
      %1991 = vmatprep.subr.bf16.mxu0 0
      %1992 = vmatpush1.bf16.msra.mxu0 %v1914
      %1993 = vmatprep.subr.bf16.mxu0 0
      %1994 = vmatpush1.bf16.msra.mxu0 0
      %1995 = vmatprep.subr.bf16.mxu0 0
      %1996 = vmatpush1.bf16.msra.mxu0 0
      %1997 = vmatprep.subr.bf16.mxu0 0
      %1998 = vmatpush1.bf16.msra.mxu0 0
      %1999 = vmatprep.subr.bf16.mxu0 0
      %2000 = vmatpush1.bf16.msra.mxu0 0
      %2001 = vmatprep.subr.bf16.mxu0 0
      %2002 = vmatpush1.bf16.msra.mxu0 0
      %2003 = vmatprep.subr.bf16.mxu0 0
      %2004 = vmatpush1.bf16.msra.mxu0 0
      %2005 = vmatprep.subr.bf16.mxu0 0
      %2006 = vmatpush1.bf16.msra.mxu0 0
      %2007 = vmatprep.subr.bf16.mxu0 0
      %2008 = vmatpush1.bf16.msra.mxu0 0
      %2009 = vmatprep.subr.bf16.mxu0 0
      %2010 = vmatpush1.bf16.msra.mxu0 0
      %2011 = vmatprep.subr.bf16.mxu0 0
      %2012 = vmatpush1.bf16.msra.mxu0 0
      %2013 = vmatprep.subr.bf16.mxu0 0
      %2014 = vmatpush1.bf16.msra.mxu0 0
      %2015 = vmatprep.subr.bf16.mxu0 0
      %2016 = vmatpush1.bf16.msra.mxu0 0
      %2017 = vmatprep.subr.bf16.mxu0 0
      %2018 = vmatpush1.bf16.msra.mxu0 0
      %2019 = vmatprep.subr.bf16.mxu0 0
      %2020 = vmatpush1.bf16.msra.mxu0 0
      %2021 = vmatprep.mubr.bf16.mxu0 0
      %2022 = vmatmul.mubr.bf16.gmra.mrb[0].mxu0 %v1918
      %v2023 = vpop.f32.mrb[0].mxu0
      %v2024 = vadd.f32 %v1903, %v2023
      %v2025 = vpop.f32.mrb[0].mxu0
      %v2026 = vpop.f32.mrb[0].mxu0
      %v2027 = vadd.f32 %v1903, %v2026
      %v2028 = vpop.f32.mrb[0].mxu0
      %2029 = vmatprep.mubr.bf16.mxu0 0
      %2030 = vmatmul.mubr.bf16.gmra.mrb[0].mxu0 %v1921
      %v2031 = vpop.f32.mrb[0].mxu0
      %v2032 = vadd.f32 %v1903, %v2031
      %v2033 = vpop.f32.mrb[0].mxu0
      %v2034 = vpop.f32.mrb[0].mxu0
      %v2035 = vadd.f32 %v1903, %v2034
      %v2036 = vpop.f32.mrb[0].mxu0
      %2037 = vmatprep.mubr.bf16.mxu0 0
      %2038 = vmatmul.mubr.bf16.gmra.mrb[0].mxu0 %v1924
      %v2039 = vpop.f32.mrb[0].mxu0
      %v2040 = vadd.f32 %v1903, %v2039
      %v2041 = vpop.f32.mrb[0].mxu0
      %v2042 = vpop.f32.mrb[0].mxu0
      %v2043 = vadd.f32 %v1903, %v2042
      %v2044 = vpop.f32.mrb[0].mxu0
      %2045 = vmatprep.mubr.bf16.mxu0 0
      %2046 = vmatmul.mubr.bf16.gmra.mrb[0].mxu0 %v1927
      %v2047 = vpop.f32.mrb[0].mxu0
      %v2048 = vadd.f32 %v1903, %v2047
      %v2049 = vpop.f32.mrb[0].mxu0
      %v2050 = vpop.f32.mrb[0].mxu0
      %v2051 = vadd.f32 %v1903, %v2050
      %v2052 = vpop.f32.mrb[0].mxu0
      %2053 = vmatprep.mubr.bf16.mxu0 0
      %2054 = vmatmul.mubr.bf16.gmra.mrb[0].mxu0 %v1930
      %v2055 = vpop.f32.mrb[0].mxu0
      %v2056 = vadd.f32 %v1903, %v2055
      %v2057 = vpop.f32.mrb[0].mxu0
      %v2058 = vpop.f32.mrb[0].mxu0
      %v2059 = vadd.f32 %v1903, %v2058
      %v2060 = vpop.f32.mrb[0].mxu0
      %2061 = vmatprep.mubr.bf16.mxu0 0
      %2062 = vmatmul.mubr.bf16.gmra.mrb[0].mxu0 %v1933
      %v2063 = vpop.f32.mrb[0].mxu0
      %v2064 = vadd.f32 %v1903, %v2063
      %v2065 = vpop.f32.mrb[0].mxu0
      %v2066 = vpop.f32.mrb[0].mxu0
      %v2067 = vadd.f32 %v1903, %v2066
      %v2068 = vpop.f32.mrb[0].mxu0
      %2069 = vmatprep.mubr.bf16.mxu0 0
      %2070 = vmatmul.mubr.bf16.gmra.mrb[0].mxu0 %v1936
      %v2071 = vpop.f32.mrb[0].mxu0
      %v2072 = vadd.f32 %v1903, %v2071
      %v2073 = vpop.f32.mrb[0].mxu0
      %v2074 = vpop.f32.mrb[0].mxu0
      %v2075 = vadd.f32 %v1903, %v2074
      %v2076 = vpop.f32.mrb[0].mxu0
      %2077 = vmatprep.mubr.bf16.mxu0 0
      %2078 = vmatmul.mubr.bf16.gmra.mrb[0].mxu0 %v1939
      %v2079 = vpop.f32.mrb[0].mxu0
      %v2080 = vadd.f32 %v1903, %v2079
      %v2081 = vpop.f32.mrb[0].mxu0
      %v2082 = vpop.f32.mrb[0].mxu0
      %v2083 = vadd.f32 %v1903, %v2082
      %v2084 = vpop.f32.mrb[0].mxu0
      %2085 = vmatprep.mubr.bf16.mxu0 0
      %2086 = vmatmul.mubr.bf16.gmra.mrb[0].mxu0 %v1942
      %v2087 = vpop.f32.mrb[0].mxu0
      %v2088 = vadd.f32 %v1903, %v2087
      %v2089 = vpop.f32.mrb[0].mxu0
      %v2090 = vpop.f32.mrb[0].mxu0
      %v2091 = vadd.f32 %v1903, %v2090
      %v2092 = vpop.f32.mrb[0].mxu0
      %2093 = vmatprep.mubr.bf16.mxu0 0
      %2094 = vmatmul.mubr.bf16.gmra.mrb[0].mxu0 %v1945
      %v2095 = vpop.f32.mrb[0].mxu0
      %v2096 = vadd.f32 %v1903, %v2095
      %v2097 = vpop.f32.mrb[0].mxu0
      %v2098 = vpop.f32.mrb[0].mxu0
      %v2099 = vadd.f32 %v1903, %v2098
      %v2100 = vpop.f32.mrb[0].mxu0
      %2101 = vmatprep.mubr.bf16.mxu0 0
      %2102 = vmatmul.mubr.bf16.gmra.mrb[0].mxu0 %v1948
      %v2103 = vpop.f32.mrb[0].mxu0
      %v2104 = vadd.f32 %v1903, %v2103
      %v2105 = vpop.f32.mrb[0].mxu0
      %v2106 = vpop.f32.mrb[0].mxu0
      %v2107 = vadd.f32 %v1903, %v2106
      %v2108 = vpop.f32.mrb[0].mxu0
      %2109 = vmatprep.mubr.bf16.mxu0 0
      %2110 = vmatmul.mubr.bf16.gmra.mrb[0].mxu0 %v1951
      %v2111 = vpop.f32.mrb[0].mxu0
      %v2112 = vadd.f32 %v1903, %v2111
      %v2113 = vpop.f32.mrb[0].mxu0
      %v2114 = vpop.f32.mrb[0].mxu0
      %v2115 = vadd.f32 %v1903, %v2114
      %v2116 = vpop.f32.mrb[0].mxu0
      %2117 = vmatprep.mubr.bf16.mxu0 0
      %2118 = vmatmul.mubr.bf16.gmra.mrb[0].mxu0 %v1954
      %v2119 = vpop.f32.mrb[0].mxu0
      %v2120 = vadd.f32 %v1903, %v2119
      %v2121 = vpop.f32.mrb[0].mxu0
      %v2122 = vpop.f32.mrb[0].mxu0
      %v2123 = vadd.f32 %v1903, %v2122
      %v2124 = vpop.f32.mrb[0].mxu0
      %2125 = vmatprep.mubr.bf16.mxu0 0
      %2126 = vmatmul.mubr.bf16.gmra.mrb[0].mxu0 %v1957
      %v2127 = vpop.f32.mrb[0].mxu0
      %v2128 = vadd.f32 %v1903, %v2127
      %v2129 = vpop.f32.mrb[0].mxu0
      %v2130 = vpop.f32.mrb[0].mxu0
      %v2131 = vadd.f32 %v1903, %v2130
      %v2132 = vpop.f32.mrb[0].mxu0
      %2133 = vmatprep.mubr.bf16.mxu0 0
      %2134 = vmatmul.mubr.bf16.gmra.mrb[0].mxu0 %v1960
      %v2135 = vpop.f32.mrb[0].mxu0
      %v2136 = vadd.f32 %v1903, %v2135
      %v2137 = vpop.f32.mrb[0].mxu0
      %v2138 = vpop.f32.mrb[0].mxu0
      %v2139 = vadd.f32 %v1903, %v2138
      %v2140 = vpop.f32.mrb[0].mxu0
      %2141 = vmatprep.mubr.bf16.mxu0 0
      %2142 = vmatmul.mubr.bf16.gmra.mrb[0].mxu0 %v1963
      %v2143 = vpop.f32.mrb[0].mxu0
      %v2144 = vadd.f32 %v1903, %v2143
      %v2145 = vpop.f32.mrb[0].mxu0
      %v2146 = vpop.f32.mrb[0].mxu0
      %v2147 = vadd.f32 %v1903, %v2146
      %v2148 = vpop.f32.mrb[0].mxu0
      %2149 = vmatprep.mubr.bf16.mxu0 0
      %2150 = vmatmul.mubr.bf16.gmra.mrb[0].mxu0 %v1966
      %v2151 = vpop.f32.mrb[0].mxu0
      %v2152 = vadd.f32 %v1903, %v2151
      %v2153 = vpop.f32.mrb[0].mxu0
      %v2154 = vpop.f32.mrb[0].mxu0
      %v2155 = vadd.f32 %v1903, %v2154
      %v2156 = vpop.f32.mrb[0].mxu0
      %2157 = vmatprep.mubr.bf16.mxu0 0
      %2158 = vmatmul.mubr.bf16.gmra.mrb[0].mxu0 %v1969
      %v2159 = vpop.f32.mrb[0].mxu0
      %v2160 = vadd.f32 %v1903, %v2159
      %v2161 = vpop.f32.mrb[0].mxu0
      %v2162 = vpop.f32.mrb[0].mxu0
      %v2163 = vadd.f32 %v1903, %v2162
      %v2164 = vpop.f32.mrb[0].mxu0
      %2165 = vmatprep.mubr.bf16.mxu0 0
      %2166 = vmatmul.mubr.bf16.gmra.mrb[0].mxu0 %v1972
      %v2167 = vpop.f32.mrb[0].mxu0
      %v2168 = vadd.f32 %v1903, %v2167
      %v2169 = vpop.f32.mrb[0].mxu0
      %v2170 = vpop.f32.mrb[0].mxu0
      %v2171 = vadd.f32 %v1903, %v2170
      %v2172 = vpop.f32.mrb[0].mxu0
      %2173 = vmatprep.mubr.bf16.mxu0 0
      %2174 = vmatmul.mubr.bf16.gmra.mrb[0].mxu0 %v1975
      %v2175 = vpop.f32.mrb[0].mxu0
      %v2176 = vadd.f32 %v1903, %v2175
      %v2177 = vpop.f32.mrb[0].mxu0
      %v2178 = vpop.f32.mrb[0].mxu0
      %v2179 = vadd.f32 %v1903, %v2178
      %v2180 = vpop.f32.mrb[0].mxu0
      %2181 = vmatprep.mubr.bf16.mxu0 0
      %2182 = vmatmul.mubr.bf16.gmra.mrb[0].mxu0 %v1978
      %v2183 = vpop.f32.mrb[0].mxu0
      %v2184 = vadd.f32 %v1903, %v2183
      %v2185 = vpop.f32.mrb[0].mxu0
      %v2186 = vpop.f32.mrb[0].mxu0
      %v2187 = vadd.f32 %v1903, %v2186
      %v2188 = vpop.f32.mrb[0].mxu0
      %2189 = vmatprep.mubr.bf16.mxu0 0
      %2190 = vmatmul.mubr.bf16.gmra.mrb[0].mxu0 %v1981
      %v2191 = vpop.f32.mrb[0].mxu0
      %v2192 = vadd.f32 %v1903, %v2191
      %v2193 = vpop.f32.mrb[0].mxu0
      %v2194 = vpop.f32.mrb[0].mxu0
      %v2195 = vadd.f32 %v1903, %v2194
      %v2196 = vpop.f32.mrb[0].mxu0
      %2197 = vmatprep.mubr.bf16.mxu0 0
      %2198 = vmatmul.mubr.bf16.gmra.mrb[0].mxu0 %v1984
      %v2199 = vpop.f32.mrb[0].mxu0
      %v2200 = vadd.f32 %v1903, %v2199
      %v2201 = vpop.f32.mrb[0].mxu0
      %v2202 = vpop.f32.mrb[0].mxu0
      %v2203 = vadd.f32 %v1903, %v2202
      %v2204 = vpop.f32.mrb[0].mxu0
      %2205 = vmatprep.mubr.bf16.mxu0 0
      %2206 = vmatmul.mubr.bf16.gmra.mrb[0].mxu0 %v1987
      %v2207 = vpop.f32.mrb[0].mxu0
      %v2208 = vadd.f32 %v1903, %v2207
      %v2209 = vpop.f32.mrb[0].mxu0
      %v2210 = vpop.f32.mrb[0].mxu0
      %v2211 = vadd.f32 %v1903, %v2210
      %v2212 = vpop.f32.mrb[0].mxu0
      %2213 = vdwg.mxu0
      %vm2214 = vcmp.gt.f32.partialorder %v2024, 0.0
      %vm2215 = vcmp.gt.f32.partialorder %v2027, 0.0
      %vm2216 = vcmp.gt.f32.partialorder %v2032, 0.0
      %vm2217 = vcmp.gt.f32.partialorder %v2035, 0.0
      %vm2218 = vcmp.gt.f32.partialorder %v2040, 0.0
      %vm2219 = vcmp.gt.f32.partialorder %v2043, 0.0
      %vm2220 = vcmp.gt.f32.partialorder %v2048, 0.0
      %vm2221 = vcmp.gt.f32.partialorder %v2051, 0.0
      %vm2222 = vcmp.gt.f32.partialorder %v2056, 0.0
      %vm2223 = vcmp.gt.f32.partialorder %v2059, 0.0
      %vm2224 = vcmp.gt.f32.partialorder %v2064, 0.0
      %vm2225 = vcmp.gt.f32.partialorder %v2067, 0.0
      %vm2226 = vcmp.gt.f32.partialorder %v2072, 0.0
      %vm2227 = vcmp.gt.f32.partialorder %v2075, 0.0
      %vm2228 = vcmp.gt.f32.partialorder %v2080, 0.0
      %vm2229 = vcmp.gt.f32.partialorder %v2083, 0.0
      %vm2230 = vcmp.gt.f32.partialorder %v2088, 0.0
      %vm2231 = vcmp.gt.f32.partialorder %v2091, 0.0
      %vm2232 = vcmp.gt.f32.partialorder %v2096, 0.0
      %vm2233 = vcmp.gt.f32.partialorder %v2099, 0.0
      %vm2234 = vcmp.gt.f32.partialorder %v2104, 0.0
      %vm2235 = vcmp.gt.f32.partialorder %v2107, 0.0
      %vm2236 = vcmp.gt.f32.partialorder %v2112, 0.0
      %vm2237 = vcmp.gt.f32.partialorder %v2115, 0.0
      %vm2238 = vcmp.gt.f32.partialorder %v2120, 0.0
      %vm2239 = vcmp.gt.f32.partialorder %v2123, 0.0
      %vm2240 = vcmp.gt.f32.partialorder %v2128, 0.0
      %vm2241 = vcmp.gt.f32.partialorder %v2131, 0.0
      %vm2242 = vcmp.gt.f32.partialorder %v2136, 0.0
      %vm2243 = vcmp.gt.f32.partialorder %v2139, 0.0
      %vm2244 = vcmp.gt.f32.partialorder %v2144, 0.0
      %vm2245 = vcmp.gt.f32.partialorder %v2147, 0.0
      %vm2246 = vcmp.gt.f32.partialorder %v2152, 0.0
      %vm2247 = vcmp.gt.f32.partialorder %v2155, 0.0
      %vm2248 = vcmp.gt.f32.partialorder %v2160, 0.0
      %vm2249 = vcmp.gt.f32.partialorder %v2163, 0.0
      %vm2250 = vcmp.gt.f32.partialorder %v2168, 0.0
      %vm2251 = vcmp.gt.f32.partialorder %v2171, 0.0
      %vm2252 = vcmp.gt.f32.partialorder %v2176, 0.0
      %vm2253 = vcmp.gt.f32.partialorder %v2179, 0.0
      %vm2254 = vcmp.gt.f32.partialorder %v2184, 0.0
      %vm2255 = vcmp.gt.f32.partialorder %v2187, 0.0
      %vm2256 = vcmp.gt.f32.partialorder %v2192, 0.0
      %vm2257 = vcmp.gt.f32.partialorder %v2195, 0.0
      %vm2258 = vcmp.gt.f32.partialorder %v2200, 0.0
      %vm2259 = vcmp.gt.f32.partialorder %v2203, 0.0
      %vm2260 = vcmp.gt.f32.partialorder %v2208, 0.0
      %vm2261 = vcmp.gt.f32.partialorder %v2211, 0.0
      %v2262 = vmul.f32 %v2024, 0.1
      %v2263 = vmul.f32 %v2027, 0.1
      %v2264 = vmul.f32 %v2032, 0.1
      %v2265 = vmul.f32 %v2035, 0.1
      %v2266 = vmul.f32 %v2040, 0.1
      %v2267 = vmul.f32 %v2043, 0.1
      %v2268 = vmul.f32 %v2048, 0.1
      %v2269 = vmul.f32 %v2051, 0.1
      %v2270 = vmul.f32 %v2056, 0.1
      %v2271 = vmul.f32 %v2059, 0.1
      %v2272 = vmul.f32 %v2064, 0.1
      %v2273 = vmul.f32 %v2067, 0.1
      %v2274 = vmul.f32 %v2072, 0.1
      %v2275 = vmul.f32 %v2075, 0.1
      %v2276 = vmul.f32 %v2080, 0.1
      %v2277 = vmul.f32 %v2083, 0.1
      %v2278 = vmul.f32 %v2088, 0.1
      %v2279 = vmul.f32 %v2091, 0.1
      %v2280 = vmul.f32 %v2096, 0.1
      %v2281 = vmul.f32 %v2099, 0.1
      %v2282 = vmul.f32 %v2104, 0.1
      %v2283 = vmul.f32 %v2107, 0.1
      %v2284 = vmul.f32 %v2112, 0.1
      %v2285 = vmul.f32 %v2115, 0.1
      %v2286 = vmul.f32 %v2120, 0.1
      %v2287 = vmul.f32 %v2123, 0.1
      %v2288 = vmul.f32 %v2128, 0.1
      %v2289 = vmul.f32 %v2131, 0.1
      %v2290 = vmul.f32 %v2136, 0.1
      %v2291 = vmul.f32 %v2139, 0.1
      %v2292 = vmul.f32 %v2144, 0.1
      %v2293 = vmul.f32 %v2147, 0.1
      %v2294 = vmul.f32 %v2152, 0.1
      %v2295 = vmul.f32 %v2155, 0.1
      %v2296 = vmul.f32 %v2160, 0.1
      %v2297 = vmul.f32 %v2163, 0.1
      %v2298 = vmul.f32 %v2168, 0.1
      %v2299 = vmul.f32 %v2171, 0.1
      %v2300 = vmul.f32 %v2176, 0.1
      %v2301 = vmul.f32 %v2179, 0.1
      %v2302 = vmul.f32 %v2184, 0.1
      %v2303 = vmul.f32 %v2187, 0.1
      %v2304 = vmul.f32 %v2192, 0.1
      %v2305 = vmul.f32 %v2195, 0.1
      %v2306 = vmul.f32 %v2200, 0.1
      %v2307 = vmul.f32 %v2203, 0.1
      %v2308 = vmul.f32 %v2208, 0.1
      %v2309 = vmul.f32 %v2211, 0.1
      %v2310 = vsel %vm2214, %v2024, %v2262
      %v2311 = vsel %vm2215, %v2027, %v2263
      %v2312 = vsel %vm2216, %v2032, %v2264
      %v2313 = vsel %vm2217, %v2035, %v2265
      %v2314 = vsel %vm2218, %v2040, %v2266
      %v2315 = vsel %vm2219, %v2043, %v2267
      %v2316 = vsel %vm2220, %v2048, %v2268
      %v2317 = vsel %vm2221, %v2051, %v2269
      %v2318 = vsel %vm2222, %v2056, %v2270
      %v2319 = vsel %vm2223, %v2059, %v2271
      %v2320 = vsel %vm2224, %v2064, %v2272
      %v2321 = vsel %vm2225, %v2067, %v2273
      %v2322 = vsel %vm2226, %v2072, %v2274
      %v2323 = vsel %vm2227, %v2075, %v2275
      %v2324 = vsel %vm2228, %v2080, %v2276
      %v2325 = vsel %vm2229, %v2083, %v2277
      %v2326 = vsel %vm2230, %v2088, %v2278
      %v2327 = vsel %vm2231, %v2091, %v2279
      %v2328 = vsel %vm2232, %v2096, %v2280
      %v2329 = vsel %vm2233, %v2099, %v2281
      %v2330 = vsel %vm2234, %v2104, %v2282
      %v2331 = vsel %vm2235, %v2107, %v2283
      %v2332 = vsel %vm2236, %v2112, %v2284
      %v2333 = vsel %vm2237, %v2115, %v2285
      %v2334 = vsel %vm2238, %v2120, %v2286
      %v2335 = vsel %vm2239, %v2123, %v2287
      %v2336 = vsel %vm2240, %v2128, %v2288
      %v2337 = vsel %vm2241, %v2131, %v2289
      %v2338 = vsel %vm2242, %v2136, %v2290
      %v2339 = vsel %vm2243, %v2139, %v2291
      %v2340 = vsel %vm2244, %v2144, %v2292
      %v2341 = vsel %vm2245, %v2147, %v2293
      %v2342 = vsel %vm2246, %v2152, %v2294
      %v2343 = vsel %vm2247, %v2155, %v2295
      %v2344 = vsel %vm2248, %v2160, %v2296
      %v2345 = vsel %vm2249, %v2163, %v2297
      %v2346 = vsel %vm2250, %v2168, %v2298
      %v2347 = vsel %vm2251, %v2171, %v2299
      %v2348 = vsel %vm2252, %v2176, %v2300
      %v2349 = vsel %vm2253, %v2179, %v2301
      %v2350 = vsel %vm2254, %v2184, %v2302
      %v2351 = vsel %vm2255, %v2187, %v2303
      %v2352 = vsel %vm2256, %v2192, %v2304
      %v2353 = vsel %vm2257, %v2195, %v2305
      %v2354 = vsel %vm2258, %v2200, %v2306
      %v2355 = vsel %vm2259, %v2203, %v2307
      %v2356 = vsel %vm2260, %v2208, %v2308
      %v2357 = vsel %vm2261, %v2211, %v2309
      %v2358 = vpack.c.bf16 %v2311, %v2310
      %v2359 = vpack.c.bf16 %v2313, %v2312
      %v2360 = vpack.c.bf16 %v2315, %v2314
      %v2361 = vpack.c.bf16 %v2317, %v2316
      %v2362 = vpack.c.bf16 %v2319, %v2318
      %v2363 = vpack.c.bf16 %v2321, %v2320
      %v2364 = vpack.c.bf16 %v2323, %v2322
      %v2365 = vpack.c.bf16 %v2325, %v2324
      %v2366 = vpack.c.bf16 %v2327, %v2326
      %v2367 = vpack.c.bf16 %v2329, %v2328
      %v2368 = vpack.c.bf16 %v2331, %v2330
      %v2369 = vpack.c.bf16 %v2333, %v2332
      %v2370 = vpack.c.bf16 %v2335, %v2334
      %v2371 = vpack.c.bf16 %v2337, %v2336
      %v2372 = vpack.c.bf16 %v2339, %v2338
      %v2373 = vpack.c.bf16 %v2341, %v2340
      %v2374 = vpack.c.bf16 %v2343, %v2342
      %v2375 = vpack.c.bf16 %v2345, %v2344
      %v2376 = vpack.c.bf16 %v2347, %v2346
      %v2377 = vpack.c.bf16 %v2349, %v2348
      %v2378 = vpack.c.bf16 %v2351, %v2350
      %v2379 = vpack.c.bf16 %v2353, %v2352
      %v2380 = vpack.c.bf16 %v2355, %v2354
      %v2381 = vpack.c.bf16 %v2357, %v2356
      %s2382 = scalar_lea.vmem %s2, 48
      %v2383 = vld [vmem:[%s2382] sm:$0xf]
      %v2384 = vld [vmem:[%s2382 + $0x4] sm:$0xf]
      %v2385 = vld [vmem:[%s2382 + $0x8] sm:$0xf]
      %v2386 = vld [vmem:[%s2382 + $0xc] sm:$0xf]
      %s2387 = scalar_lea.vmem %s4, 4
      %v2388 = vld [vmem:[%s2387] sm:$0x1]
      %v2390 = vlaneseq
      %v2391 = vshrl.u32 %v2390, 7
      %v2392 = vsub.s32 0, %v2391
      %v2393 = vrot.slane %v2388, %v2392
      %v2399 = vunpack.c.l.b16 %v2383
      %v2400 = vunpack.c.l.b16 %v2384
      %v2401 = vunpack.c.l.b16 %v2385
      %v2402 = vunpack.c.l.b16 %v2386
      %v2403 = vpack.c.b16 %v2400, %v2399
      %v2404 = vpack.c.b16 %v2402, %v2401
      %v2408 = vsel %vm447, %v2358, 0
      %v2411 = vsel %vm447, %v2359, 0
      %v2414 = vsel %vm447, %v2360, 0
      %v2417 = vsel %vm447, %v2361, 0
      %v2420 = vsel %vm447, %v2362, 0
      %v2423 = vsel %vm447, %v2363, 0
      %v2426 = vsel %vm447, %v2364, 0
      %v2429 = vsel %vm447, %v2365, 0
      %v2432 = vsel %vm447, %v2366, 0
      %v2435 = vsel %vm447, %v2367, 0
      %v2438 = vsel %vm447, %v2368, 0
      %v2441 = vsel %vm447, %v2369, 0
      %v2444 = vsel %vm447, %v2370, 0
      %v2447 = vsel %vm447, %v2371, 0
      %v2450 = vsel %vm447, %v2372, 0
      %v2453 = vsel %vm447, %v2373, 0
      %v2456 = vsel %vm447, %v2374, 0
      %v2459 = vsel %vm447, %v2375, 0
      %v2462 = vsel %vm447, %v2376, 0
      %v2465 = vsel %vm447, %v2377, 0
      %v2468 = vsel %vm447, %v2378, 0
      %v2471 = vsel %vm447, %v2379, 0
      %v2474 = vsel %vm447, %v2380, 0
      %v2477 = vsel %vm447, %v2381, 0
      %2479 = vmatprep.subr.bf16.mxu0 0
      %2480 = vmatpush1.bf16.msra.mxu0 %v2403
      %2481 = vmatprep.subr.bf16.mxu0 0
      %2482 = vmatpush1.bf16.msra.mxu0 %v2404
      %2483 = vmatprep.subr.bf16.mxu0 0
      %2484 = vmatpush1.bf16.msra.mxu0 0
      %2485 = vmatprep.subr.bf16.mxu0 0
      %2486 = vmatpush1.bf16.msra.mxu0 0
      %2487 = vmatprep.subr.bf16.mxu0 0
      %2488 = vmatpush1.bf16.msra.mxu0 0
      %2489 = vmatprep.subr.bf16.mxu0 0
      %2490 = vmatpush1.bf16.msra.mxu0 0
      %2491 = vmatprep.subr.bf16.mxu0 0
      %2492 = vmatpush1.bf16.msra.mxu0 0
      %2493 = vmatprep.subr.bf16.mxu0 0
      %2494 = vmatpush1.bf16.msra.mxu0 0
      %2495 = vmatprep.subr.bf16.mxu0 0
      %2496 = vmatpush1.bf16.msra.mxu0 0
      %2497 = vmatprep.subr.bf16.mxu0 0
      %2498 = vmatpush1.bf16.msra.mxu0 0
      %2499 = vmatprep.subr.bf16.mxu0 0
      %2500 = vmatpush1.bf16.msra.mxu0 0
      %2501 = vmatprep.subr.bf16.mxu0 0
      %2502 = vmatpush1.bf16.msra.mxu0 0
      %2503 = vmatprep.subr.bf16.mxu0 0
      %2504 = vmatpush1.bf16.msra.mxu0 0
      %2505 = vmatprep.subr.bf16.mxu0 0
      %2506 = vmatpush1.bf16.msra.mxu0 0
      %2507 = vmatprep.subr.bf16.mxu0 0
      %2508 = vmatpush1.bf16.msra.mxu0 0
      %2509 = vmatprep.subr.bf16.mxu0 0
      %2510 = vmatpush1.bf16.msra.mxu0 0
      %2511 = vmatprep.mubr.bf16.mxu0 0
      %2512 = vmatmul.mubr.bf16.gmra.mrb[0].mxu0 %v2408
      %v2513 = vpop.f32.mrb[0].mxu0
      %v2514 = vadd.f32 %v2393, %v2513
      %v2515 = vpop.f32.mrb[0].mxu0
      %v2516 = vpop.f32.mrb[0].mxu0
      %v2517 = vadd.f32 %v2393, %v2516
      %v2518 = vpop.f32.mrb[0].mxu0
      %2519 = vmatprep.mubr.bf16.mxu0 0
      %2520 = vmatmul.mubr.bf16.gmra.mrb[0].mxu0 %v2411
      %v2521 = vpop.f32.mrb[0].mxu0
      %v2522 = vadd.f32 %v2393, %v2521
      %v2523 = vpop.f32.mrb[0].mxu0
      %v2524 = vpop.f32.mrb[0].mxu0
      %v2525 = vadd.f32 %v2393, %v2524
      %v2526 = vpop.f32.mrb[0].mxu0
      %2527 = vmatprep.mubr.bf16.mxu0 0
      %2528 = vmatmul.mubr.bf16.gmra.mrb[0].mxu0 %v2414
      %v2529 = vpop.f32.mrb[0].mxu0
      %v2530 = vadd.f32 %v2393, %v2529
      %v2531 = vpop.f32.mrb[0].mxu0
      %v2532 = vpop.f32.mrb[0].mxu0
      %v2533 = vadd.f32 %v2393, %v2532
      %v2534 = vpop.f32.mrb[0].mxu0
      %2535 = vmatprep.mubr.bf16.mxu0 0
      %2536 = vmatmul.mubr.bf16.gmra.mrb[0].mxu0 %v2417
      %v2537 = vpop.f32.mrb[0].mxu0
      %v2538 = vadd.f32 %v2393, %v2537
      %v2539 = vpop.f32.mrb[0].mxu0
      %v2540 = vpop.f32.mrb[0].mxu0
      %v2541 = vadd.f32 %v2393, %v2540
      %v2542 = vpop.f32.mrb[0].mxu0
      %2543 = vmatprep.mubr.bf16.mxu0 0
      %2544 = vmatmul.mubr.bf16.gmra.mrb[0].mxu0 %v2420
      %v2545 = vpop.f32.mrb[0].mxu0
      %v2546 = vadd.f32 %v2393, %v2545
      %v2547 = vpop.f32.mrb[0].mxu0
      %v2548 = vpop.f32.mrb[0].mxu0
      %v2549 = vadd.f32 %v2393, %v2548
      %v2550 = vpop.f32.mrb[0].mxu0
      %2551 = vmatprep.mubr.bf16.mxu0 0
      %2552 = vmatmul.mubr.bf16.gmra.mrb[0].mxu0 %v2423
      %v2553 = vpop.f32.mrb[0].mxu0
      %v2554 = vadd.f32 %v2393, %v2553
      %v2555 = vpop.f32.mrb[0].mxu0
      %v2556 = vpop.f32.mrb[0].mxu0
      %v2557 = vadd.f32 %v2393, %v2556
      %v2558 = vpop.f32.mrb[0].mxu0
      %2559 = vmatprep.mubr.bf16.mxu0 0
      %2560 = vmatmul.mubr.bf16.gmra.mrb[0].mxu0 %v2426
      %v2561 = vpop.f32.mrb[0].mxu0
      %v2562 = vadd.f32 %v2393, %v2561
      %v2563 = vpop.f32.mrb[0].mxu0
      %v2564 = vpop.f32.mrb[0].mxu0
      %v2565 = vadd.f32 %v2393, %v2564
      %v2566 = vpop.f32.mrb[0].mxu0
      %2567 = vmatprep.mubr.bf16.mxu0 0
      %2568 = vmatmul.mubr.bf16.gmra.mrb[0].mxu0 %v2429
      %v2569 = vpop.f32.mrb[0].mxu0
      %v2570 = vadd.f32 %v2393, %v2569
      %v2571 = vpop.f32.mrb[0].mxu0
      %v2572 = vpop.f32.mrb[0].mxu0
      %v2573 = vadd.f32 %v2393, %v2572
      %v2574 = vpop.f32.mrb[0].mxu0
      %2575 = vmatprep.mubr.bf16.mxu0 0
      %2576 = vmatmul.mubr.bf16.gmra.mrb[0].mxu0 %v2432
      %v2577 = vpop.f32.mrb[0].mxu0
      %v2578 = vadd.f32 %v2393, %v2577
      %v2579 = vpop.f32.mrb[0].mxu0
      %v2580 = vpop.f32.mrb[0].mxu0
      %v2581 = vadd.f32 %v2393, %v2580
      %v2582 = vpop.f32.mrb[0].mxu0
      %2583 = vmatprep.mubr.bf16.mxu0 0
      %2584 = vmatmul.mubr.bf16.gmra.mrb[0].mxu0 %v2435
      %v2585 = vpop.f32.mrb[0].mxu0
      %v2586 = vadd.f32 %v2393, %v2585
      %v2587 = vpop.f32.mrb[0].mxu0
      %v2588 = vpop.f32.mrb[0].mxu0
      %v2589 = vadd.f32 %v2393, %v2588
      %v2590 = vpop.f32.mrb[0].mxu0
      %2591 = vmatprep.mubr.bf16.mxu0 0
      %2592 = vmatmul.mubr.bf16.gmra.mrb[0].mxu0 %v2438
      %v2593 = vpop.f32.mrb[0].mxu0
      %v2594 = vadd.f32 %v2393, %v2593
      %v2595 = vpop.f32.mrb[0].mxu0
      %v2596 = vpop.f32.mrb[0].mxu0
      %v2597 = vadd.f32 %v2393, %v2596
      %v2598 = vpop.f32.mrb[0].mxu0
      %2599 = vmatprep.mubr.bf16.mxu0 0
      %2600 = vmatmul.mubr.bf16.gmra.mrb[0].mxu0 %v2441
      %v2601 = vpop.f32.mrb[0].mxu0
      %v2602 = vadd.f32 %v2393, %v2601
      %v2603 = vpop.f32.mrb[0].mxu0
      %v2604 = vpop.f32.mrb[0].mxu0
      %v2605 = vadd.f32 %v2393, %v2604
      %v2606 = vpop.f32.mrb[0].mxu0
      %2607 = vmatprep.mubr.bf16.mxu0 0
      %2608 = vmatmul.mubr.bf16.gmra.mrb[0].mxu0 %v2444
      %v2609 = vpop.f32.mrb[0].mxu0
      %v2610 = vadd.f32 %v2393, %v2609
      %v2611 = vpop.f32.mrb[0].mxu0
      %v2612 = vpop.f32.mrb[0].mxu0
      %v2613 = vadd.f32 %v2393, %v2612
      %v2614 = vpop.f32.mrb[0].mxu0
      %2615 = vmatprep.mubr.bf16.mxu0 0
      %2616 = vmatmul.mubr.bf16.gmra.mrb[0].mxu0 %v2447
      %v2617 = vpop.f32.mrb[0].mxu0
      %v2618 = vadd.f32 %v2393, %v2617
      %v2619 = vpop.f32.mrb[0].mxu0
      %v2620 = vpop.f32.mrb[0].mxu0
      %v2621 = vadd.f32 %v2393, %v2620
      %v2622 = vpop.f32.mrb[0].mxu0
      %2623 = vmatprep.mubr.bf16.mxu0 0
      %2624 = vmatmul.mubr.bf16.gmra.mrb[0].mxu0 %v2450
      %v2625 = vpop.f32.mrb[0].mxu0
      %v2626 = vadd.f32 %v2393, %v2625
      %v2627 = vpop.f32.mrb[0].mxu0
      %v2628 = vpop.f32.mrb[0].mxu0
      %v2629 = vadd.f32 %v2393, %v2628
      %v2630 = vpop.f32.mrb[0].mxu0
      %2631 = vmatprep.mubr.bf16.mxu0 0
      %2632 = vmatmul.mubr.bf16.gmra.mrb[0].mxu0 %v2453
      %v2633 = vpop.f32.mrb[0].mxu0
      %v2634 = vadd.f32 %v2393, %v2633
      %v2635 = vpop.f32.mrb[0].mxu0
      %v2636 = vpop.f32.mrb[0].mxu0
      %v2637 = vadd.f32 %v2393, %v2636
      %v2638 = vpop.f32.mrb[0].mxu0
      %2639 = vmatprep.mubr.bf16.mxu0 0
      %2640 = vmatmul.mubr.bf16.gmra.mrb[0].mxu0 %v2456
      %v2641 = vpop.f32.mrb[0].mxu0
      %v2642 = vadd.f32 %v2393, %v2641
      %v2643 = vpop.f32.mrb[0].mxu0
      %v2644 = vpop.f32.mrb[0].mxu0
      %v2645 = vadd.f32 %v2393, %v2644
      %v2646 = vpop.f32.mrb[0].mxu0
      %2647 = vmatprep.mubr.bf16.mxu0 0
      %2648 = vmatmul.mubr.bf16.gmra.mrb[0].mxu0 %v2459
      %v2649 = vpop.f32.mrb[0].mxu0
      %v2650 = vadd.f32 %v2393, %v2649
      %v2651 = vpop.f32.mrb[0].mxu0
      %v2652 = vpop.f32.mrb[0].mxu0
      %v2653 = vadd.f32 %v2393, %v2652
      %v2654 = vpop.f32.mrb[0].mxu0
      %2655 = vmatprep.mubr.bf16.mxu0 0
      %2656 = vmatmul.mubr.bf16.gmra.mrb[0].mxu0 %v2462
      %v2657 = vpop.f32.mrb[0].mxu0
      %v2658 = vadd.f32 %v2393, %v2657
      %v2659 = vpop.f32.mrb[0].mxu0
      %v2660 = vpop.f32.mrb[0].mxu0
      %v2661 = vadd.f32 %v2393, %v2660
      %v2662 = vpop.f32.mrb[0].mxu0
      %2663 = vmatprep.mubr.bf16.mxu0 0
      %2664 = vmatmul.mubr.bf16.gmra.mrb[0].mxu0 %v2465
      %v2665 = vpop.f32.mrb[0].mxu0
      %v2666 = vadd.f32 %v2393, %v2665
      %v2667 = vpop.f32.mrb[0].mxu0
      %v2668 = vpop.f32.mrb[0].mxu0
      %v2669 = vadd.f32 %v2393, %v2668
      %v2670 = vpop.f32.mrb[0].mxu0
      %2671 = vmatprep.mubr.bf16.mxu0 0
      %2672 = vmatmul.mubr.bf16.gmra.mrb[0].mxu0 %v2468
      %v2673 = vpop.f32.mrb[0].mxu0
      %v2674 = vadd.f32 %v2393, %v2673
      %v2675 = vpop.f32.mrb[0].mxu0
      %v2676 = vpop.f32.mrb[0].mxu0
      %v2677 = vadd.f32 %v2393, %v2676
      %v2678 = vpop.f32.mrb[0].mxu0
      %2679 = vmatprep.mubr.bf16.mxu0 0
      %2680 = vmatmul.mubr.bf16.gmra.mrb[0].mxu0 %v2471
      %v2681 = vpop.f32.mrb[0].mxu0
      %v2682 = vadd.f32 %v2393, %v2681
      %v2683 = vpop.f32.mrb[0].mxu0
      %v2684 = vpop.f32.mrb[0].mxu0
      %v2685 = vadd.f32 %v2393, %v2684
      %v2686 = vpop.f32.mrb[0].mxu0
      %2687 = vmatprep.mubr.bf16.mxu0 0
      %2688 = vmatmul.mubr.bf16.gmra.mrb[0].mxu0 %v2474
      %v2689 = vpop.f32.mrb[0].mxu0
      %v2690 = vadd.f32 %v2393, %v2689
      %v2691 = vpop.f32.mrb[0].mxu0
      %v2692 = vpop.f32.mrb[0].mxu0
      %v2693 = vadd.f32 %v2393, %v2692
      %v2694 = vpop.f32.mrb[0].mxu0
      %2695 = vmatprep.mubr.bf16.mxu0 0
      %2696 = vmatmul.mubr.bf16.gmra.mrb[0].mxu0 %v2477
      %v2697 = vpop.f32.mrb[0].mxu0
      %v2698 = vadd.f32 %v2393, %v2697
      %v2699 = vpop.f32.mrb[0].mxu0
      %v2700 = vpop.f32.mrb[0].mxu0
      %v2701 = vadd.f32 %v2393, %v2700
      %v2702 = vpop.f32.mrb[0].mxu0
      %2703 = vdwg.mxu0
      %vm2704 = vcmp.gt.f32.partialorder %v2514, 0.0
      %vm2705 = vcmp.gt.f32.partialorder %v2517, 0.0
      %vm2706 = vcmp.gt.f32.partialorder %v2522, 0.0
      %vm2707 = vcmp.gt.f32.partialorder %v2525, 0.0
      %vm2708 = vcmp.gt.f32.partialorder %v2530, 0.0
      %vm2709 = vcmp.gt.f32.partialorder %v2533, 0.0
      %vm2710 = vcmp.gt.f32.partialorder %v2538, 0.0
      %vm2711 = vcmp.gt.f32.partialorder %v2541, 0.0
      %vm2712 = vcmp.gt.f32.partialorder %v2546, 0.0
      %vm2713 = vcmp.gt.f32.partialorder %v2549, 0.0
      %vm2714 = vcmp.gt.f32.partialorder %v2554, 0.0
      %vm2715 = vcmp.gt.f32.partialorder %v2557, 0.0
      %vm2716 = vcmp.gt.f32.partialorder %v2562, 0.0
      %vm2717 = vcmp.gt.f32.partialorder %v2565, 0.0
      %vm2718 = vcmp.gt.f32.partialorder %v2570, 0.0
      %vm2719 = vcmp.gt.f32.partialorder %v2573, 0.0
      %vm2720 = vcmp.gt.f32.partialorder %v2578, 0.0
      %vm2721 = vcmp.gt.f32.partialorder %v2581, 0.0
      %vm2722 = vcmp.gt.f32.partialorder %v2586, 0.0
      %vm2723 = vcmp.gt.f32.partialorder %v2589, 0.0
      %vm2724 = vcmp.gt.f32.partialorder %v2594, 0.0
      %vm2725 = vcmp.gt.f32.partialorder %v2597, 0.0
      %vm2726 = vcmp.gt.f32.partialorder %v2602, 0.0
      %vm2727 = vcmp.gt.f32.partialorder %v2605, 0.0
      %vm2728 = vcmp.gt.f32.partialorder %v2610, 0.0
      %vm2729 = vcmp.gt.f32.partialorder %v2613, 0.0
      %vm2730 = vcmp.gt.f32.partialorder %v2618, 0.0
      %vm2731 = vcmp.gt.f32.partialorder %v2621, 0.0
      %vm2732 = vcmp.gt.f32.partialorder %v2626, 0.0
      %vm2733 = vcmp.gt.f32.partialorder %v2629, 0.0
      %vm2734 = vcmp.gt.f32.partialorder %v2634, 0.0
      %vm2735 = vcmp.gt.f32.partialorder %v2637, 0.0
      %vm2736 = vcmp.gt.f32.partialorder %v2642, 0.0
      %vm2737 = vcmp.gt.f32.partialorder %v2645, 0.0
      %vm2738 = vcmp.gt.f32.partialorder %v2650, 0.0
      %vm2739 = vcmp.gt.f32.partialorder %v2653, 0.0
      %vm2740 = vcmp.gt.f32.partialorder %v2658, 0.0
      %vm2741 = vcmp.gt.f32.partialorder %v2661, 0.0
      %vm2742 = vcmp.gt.f32.partialorder %v2666, 0.0
      %vm2743 = vcmp.gt.f32.partialorder %v2669, 0.0
      %vm2744 = vcmp.gt.f32.partialorder %v2674, 0.0
      %vm2745 = vcmp.gt.f32.partialorder %v2677, 0.0
      %vm2746 = vcmp.gt.f32.partialorder %v2682, 0.0
      %vm2747 = vcmp.gt.f32.partialorder %v2685, 0.0
      %vm2748 = vcmp.gt.f32.partialorder %v2690, 0.0
      %vm2749 = vcmp.gt.f32.partialorder %v2693, 0.0
      %vm2750 = vcmp.gt.f32.partialorder %v2698, 0.0
      %vm2751 = vcmp.gt.f32.partialorder %v2701, 0.0
      %v2752 = vmul.f32 %v2514, 0.1
      %v2753 = vmul.f32 %v2517, 0.1
      %v2754 = vmul.f32 %v2522, 0.1
      %v2755 = vmul.f32 %v2525, 0.1
      %v2756 = vmul.f32 %v2530, 0.1
      %v2757 = vmul.f32 %v2533, 0.1
      %v2758 = vmul.f32 %v2538, 0.1
      %v2759 = vmul.f32 %v2541, 0.1
      %v2760 = vmul.f32 %v2546, 0.1
      %v2761 = vmul.f32 %v2549, 0.1
      %v2762 = vmul.f32 %v2554, 0.1
      %v2763 = vmul.f32 %v2557, 0.1
      %v2764 = vmul.f32 %v2562, 0.1
      %v2765 = vmul.f32 %v2565, 0.1
      %v2766 = vmul.f32 %v2570, 0.1
      %v2767 = vmul.f32 %v2573, 0.1
      %v2768 = vmul.f32 %v2578, 0.1
      %v2769 = vmul.f32 %v2581, 0.1
      %v2770 = vmul.f32 %v2586, 0.1
      %v2771 = vmul.f32 %v2589, 0.1
      %v2772 = vmul.f32 %v2594, 0.1
      %v2773 = vmul.f32 %v2597, 0.1
      %v2774 = vmul.f32 %v2602, 0.1
      %v2775 = vmul.f32 %v2605, 0.1
      %v2776 = vmul.f32 %v2610, 0.1
      %v2777 = vmul.f32 %v2613, 0.1
      %v2778 = vmul.f32 %v2618, 0.1
      %v2779 = vmul.f32 %v2621, 0.1
      %v2780 = vmul.f32 %v2626, 0.1
      %v2781 = vmul.f32 %v2629, 0.1
      %v2782 = vmul.f32 %v2634, 0.1
      %v2783 = vmul.f32 %v2637, 0.1
      %v2784 = vmul.f32 %v2642, 0.1
      %v2785 = vmul.f32 %v2645, 0.1
      %v2786 = vmul.f32 %v2650, 0.1
      %v2787 = vmul.f32 %v2653, 0.1
      %v2788 = vmul.f32 %v2658, 0.1
      %v2789 = vmul.f32 %v2661, 0.1
      %v2790 = vmul.f32 %v2666, 0.1
      %v2791 = vmul.f32 %v2669, 0.1
      %v2792 = vmul.f32 %v2674, 0.1
      %v2793 = vmul.f32 %v2677, 0.1
      %v2794 = vmul.f32 %v2682, 0.1
      %v2795 = vmul.f32 %v2685, 0.1
      %v2796 = vmul.f32 %v2690, 0.1
      %v2797 = vmul.f32 %v2693, 0.1
      %v2798 = vmul.f32 %v2698, 0.1
      %v2799 = vmul.f32 %v2701, 0.1
      %v2800 = vsel %vm2704, %v2514, %v2752
      %v2801 = vsel %vm2705, %v2517, %v2753
      %v2802 = vsel %vm2706, %v2522, %v2754
      %v2803 = vsel %vm2707, %v2525, %v2755
      %v2804 = vsel %vm2708, %v2530, %v2756
      %v2805 = vsel %vm2709, %v2533, %v2757
      %v2806 = vsel %vm2710, %v2538, %v2758
      %v2807 = vsel %vm2711, %v2541, %v2759
      %v2808 = vsel %vm2712, %v2546, %v2760
      %v2809 = vsel %vm2713, %v2549, %v2761
      %v2810 = vsel %vm2714, %v2554, %v2762
      %v2811 = vsel %vm2715, %v2557, %v2763
      %v2812 = vsel %vm2716, %v2562, %v2764
      %v2813 = vsel %vm2717, %v2565, %v2765
      %v2814 = vsel %vm2718, %v2570, %v2766
      %v2815 = vsel %vm2719, %v2573, %v2767
      %v2816 = vsel %vm2720, %v2578, %v2768
      %v2817 = vsel %vm2721, %v2581, %v2769
      %v2818 = vsel %vm2722, %v2586, %v2770
      %v2819 = vsel %vm2723, %v2589, %v2771
      %v2820 = vsel %vm2724, %v2594, %v2772
      %v2821 = vsel %vm2725, %v2597, %v2773
      %v2822 = vsel %vm2726, %v2602, %v2774
      %v2823 = vsel %vm2727, %v2605, %v2775
      %v2824 = vsel %vm2728, %v2610, %v2776
      %v2825 = vsel %vm2729, %v2613, %v2777
      %v2826 = vsel %vm2730, %v2618, %v2778
      %v2827 = vsel %vm2731, %v2621, %v2779
      %v2828 = vsel %vm2732, %v2626, %v2780
      %v2829 = vsel %vm2733, %v2629, %v2781
      %v2830 = vsel %vm2734, %v2634, %v2782
      %v2831 = vsel %vm2735, %v2637, %v2783
      %v2832 = vsel %vm2736, %v2642, %v2784
      %v2833 = vsel %vm2737, %v2645, %v2785
      %v2834 = vsel %vm2738, %v2650, %v2786
      %v2835 = vsel %vm2739, %v2653, %v2787
      %v2836 = vsel %vm2740, %v2658, %v2788
      %v2837 = vsel %vm2741, %v2661, %v2789
      %v2838 = vsel %vm2742, %v2666, %v2790
      %v2839 = vsel %vm2743, %v2669, %v2791
      %v2840 = vsel %vm2744, %v2674, %v2792
      %v2841 = vsel %vm2745, %v2677, %v2793
      %v2842 = vsel %vm2746, %v2682, %v2794
      %v2843 = vsel %vm2747, %v2685, %v2795
      %v2844 = vsel %vm2748, %v2690, %v2796
      %v2845 = vsel %vm2749, %v2693, %v2797
      %v2846 = vsel %vm2750, %v2698, %v2798
      %v2847 = vsel %vm2751, %v2701, %v2799
      %v2848 = vpack.c.bf16 %v2801, %v2800
      %v2849 = vpack.c.bf16 %v2803, %v2802
      %v2850 = vpack.c.bf16 %v2805, %v2804
      %v2851 = vpack.c.bf16 %v2807, %v2806
      %v2852 = vpack.c.bf16 %v2809, %v2808
      %v2853 = vpack.c.bf16 %v2811, %v2810
      %v2854 = vpack.c.bf16 %v2813, %v2812
      %v2855 = vpack.c.bf16 %v2815, %v2814
      %v2856 = vpack.c.bf16 %v2817, %v2816
      %v2857 = vpack.c.bf16 %v2819, %v2818
      %v2858 = vpack.c.bf16 %v2821, %v2820
      %v2859 = vpack.c.bf16 %v2823, %v2822
      %v2860 = vpack.c.bf16 %v2825, %v2824
      %v2861 = vpack.c.bf16 %v2827, %v2826
      %v2862 = vpack.c.bf16 %v2829, %v2828
      %v2863 = vpack.c.bf16 %v2831, %v2830
      %v2864 = vpack.c.bf16 %v2833, %v2832
      %v2865 = vpack.c.bf16 %v2835, %v2834
      %v2866 = vpack.c.bf16 %v2837, %v2836
      %v2867 = vpack.c.bf16 %v2839, %v2838
      %v2868 = vpack.c.bf16 %v2841, %v2840
      %v2869 = vpack.c.bf16 %v2843, %v2842
      %v2870 = vpack.c.bf16 %v2845, %v2844
      %v2871 = vpack.c.bf16 %v2847, %v2846
      %v2872 = vld [vmem:[%s3] sm:$0xf]
      %v2873 = vld [vmem:[%s3 + $0x4] sm:$0xf]
      %v2874 = vld [vmem:[%s3 + $0x8] sm:$0xf]
      %v2875 = vld [vmem:[%s3 + $0xc] sm:$0xf]
      %v2876 = vld [vmem:[%s5] sm:$0x1]
      %v2878 = vlaneseq
      %v2879 = vshrl.u32 %v2878, 7
      %v2880 = vsub.s32 0, %v2879
      %v2881 = vrot.slane %v2876, %v2880
      %v2887 = vunpack.c.l.b16 %v2872
      %v2888 = vunpack.c.l.b16 %v2873
      %v2889 = vunpack.c.l.b16 %v2874
      %v2890 = vunpack.c.l.b16 %v2875
      %v2891 = vpack.c.b16 %v2888, %v2887
      %v2892 = vpack.c.b16 %v2890, %v2889
      %v2896 = vsel %vm447, %v2848, 0
      %v2899 = vsel %vm447, %v2849, 0
      %v2902 = vsel %vm447, %v2850, 0
      %v2905 = vsel %vm447, %v2851, 0
      %v2908 = vsel %vm447, %v2852, 0
      %v2911 = vsel %vm447, %v2853, 0
      %v2914 = vsel %vm447, %v2854, 0
      %v2917 = vsel %vm447, %v2855, 0
      %v2920 = vsel %vm447, %v2856, 0
      %v2923 = vsel %vm447, %v2857, 0
      %v2926 = vsel %vm447, %v2858, 0
      %v2929 = vsel %vm447, %v2859, 0
      %v2932 = vsel %vm447, %v2860, 0
      %v2935 = vsel %vm447, %v2861, 0
      %v2938 = vsel %vm447, %v2862, 0
      %v2941 = vsel %vm447, %v2863, 0
      %v2944 = vsel %vm447, %v2864, 0
      %v2947 = vsel %vm447, %v2865, 0
      %v2950 = vsel %vm447, %v2866, 0
      %v2953 = vsel %vm447, %v2867, 0
      %v2956 = vsel %vm447, %v2868, 0
      %v2959 = vsel %vm447, %v2869, 0
      %v2962 = vsel %vm447, %v2870, 0
      %v2965 = vsel %vm447, %v2871, 0
      %2967 = vmatprep.subr.bf16.mxu0 0
      %2968 = vmatpush1.bf16.msra.mxu0 %v2891
      %2969 = vmatprep.subr.bf16.mxu0 0
      %2970 = vmatpush1.bf16.msra.mxu0 %v2892
      %2971 = vmatprep.subr.bf16.mxu0 0
      %2972 = vmatpush1.bf16.msra.mxu0 0
      %2973 = vmatprep.subr.bf16.mxu0 0
      %2974 = vmatpush1.bf16.msra.mxu0 0
      %2975 = vmatprep.subr.bf16.mxu0 0
      %2976 = vmatpush1.bf16.msra.mxu0 0
      %2977 = vmatprep.subr.bf16.mxu0 0
      %2978 = vmatpush1.bf16.msra.mxu0 0
      %2979 = vmatprep.subr.bf16.mxu0 0
      %2980 = vmatpush1.bf16.msra.mxu0 0
      %2981 = vmatprep.subr.bf16.mxu0 0
      %2982 = vmatpush1.bf16.msra.mxu0 0
      %2983 = vmatprep.subr.bf16.mxu0 0
      %2984 = vmatpush1.bf16.msra.mxu0 0
      %2985 = vmatprep.subr.bf16.mxu0 0
      %2986 = vmatpush1.bf16.msra.mxu0 0
      %2987 = vmatprep.subr.bf16.mxu0 0
      %2988 = vmatpush1.bf16.msra.mxu0 0
      %2989 = vmatprep.subr.bf16.mxu0 0
      %2990 = vmatpush1.bf16.msra.mxu0 0
      %2991 = vmatprep.subr.bf16.mxu0 0
      %2992 = vmatpush1.bf16.msra.mxu0 0
      %2993 = vmatprep.subr.bf16.mxu0 0
      %2994 = vmatpush1.bf16.msra.mxu0 0
      %2995 = vmatprep.subr.bf16.mxu0 0
      %2996 = vmatpush1.bf16.msra.mxu0 0
      %2997 = vmatprep.subr.bf16.mxu0 0
      %2998 = vmatpush1.bf16.msra.mxu0 0
      %2999 = vmatprep.mubr.bf16.mxu0 0
      %3000 = vmatmul.mubr.bf16.gmra.mrb[0].mxu0 %v2896
      %v3001 = vpop.f32.mrb[0].mxu0
      %v3002 = vadd.f32 %v2881, %v3001
      %v3003 = vpop.f32.mrb[0].mxu0
      %v3004 = vpop.f32.mrb[0].mxu0
      %v3005 = vadd.f32 %v2881, %v3004
      %v3006 = vpop.f32.mrb[0].mxu0
      %3007 = vmatprep.mubr.bf16.mxu0 0
      %3008 = vmatmul.mubr.bf16.gmra.mrb[0].mxu0 %v2899
      %v3009 = vpop.f32.mrb[0].mxu0
      %v3010 = vadd.f32 %v2881, %v3009
      %v3011 = vpop.f32.mrb[0].mxu0
      %v3012 = vpop.f32.mrb[0].mxu0
      %v3013 = vadd.f32 %v2881, %v3012
      %v3014 = vpop.f32.mrb[0].mxu0
      %3015 = vmatprep.mubr.bf16.mxu0 0
      %3016 = vmatmul.mubr.bf16.gmra.mrb[0].mxu0 %v2902
      %v3017 = vpop.f32.mrb[0].mxu0
      %v3018 = vadd.f32 %v2881, %v3017
      %v3019 = vpop.f32.mrb[0].mxu0
      %v3020 = vpop.f32.mrb[0].mxu0
      %v3021 = vadd.f32 %v2881, %v3020
      %v3022 = vpop.f32.mrb[0].mxu0
      %3023 = vmatprep.mubr.bf16.mxu0 0
      %3024 = vmatmul.mubr.bf16.gmra.mrb[0].mxu0 %v2905
      %v3025 = vpop.f32.mrb[0].mxu0
      %v3026 = vadd.f32 %v2881, %v3025
      %v3027 = vpop.f32.mrb[0].mxu0
      %v3028 = vpop.f32.mrb[0].mxu0
      %v3029 = vadd.f32 %v2881, %v3028
      %v3030 = vpop.f32.mrb[0].mxu0
      %3031 = vmatprep.mubr.bf16.mxu0 0
      %3032 = vmatmul.mubr.bf16.gmra.mrb[0].mxu0 %v2908
      %v3033 = vpop.f32.mrb[0].mxu0
      %v3034 = vadd.f32 %v2881, %v3033
      %v3035 = vpop.f32.mrb[0].mxu0
      %v3036 = vpop.f32.mrb[0].mxu0
      %v3037 = vadd.f32 %v2881, %v3036
      %v3038 = vpop.f32.mrb[0].mxu0
      %3039 = vmatprep.mubr.bf16.mxu0 0
      %3040 = vmatmul.mubr.bf16.gmra.mrb[0].mxu0 %v2911
      %v3041 = vpop.f32.mrb[0].mxu0
      %v3042 = vadd.f32 %v2881, %v3041
      %v3043 = vpop.f32.mrb[0].mxu0
      %v3044 = vpop.f32.mrb[0].mxu0
      %v3045 = vadd.f32 %v2881, %v3044
      %v3046 = vpop.f32.mrb[0].mxu0
      %3047 = vmatprep.mubr.bf16.mxu0 0
      %3048 = vmatmul.mubr.bf16.gmra.mrb[0].mxu0 %v2914
      %v3049 = vpop.f32.mrb[0].mxu0
      %v3050 = vadd.f32 %v2881, %v3049
      %v3051 = vpop.f32.mrb[0].mxu0
      %v3052 = vpop.f32.mrb[0].mxu0
      %v3053 = vadd.f32 %v2881, %v3052
      %v3054 = vpop.f32.mrb[0].mxu0
      %3055 = vmatprep.mubr.bf16.mxu0 0
      %3056 = vmatmul.mubr.bf16.gmra.mrb[0].mxu0 %v2917
      %v3057 = vpop.f32.mrb[0].mxu0
      %v3058 = vadd.f32 %v2881, %v3057
      %v3059 = vpop.f32.mrb[0].mxu0
      %v3060 = vpop.f32.mrb[0].mxu0
      %v3061 = vadd.f32 %v2881, %v3060
      %v3062 = vpop.f32.mrb[0].mxu0
      %3063 = vmatprep.mubr.bf16.mxu0 0
      %3064 = vmatmul.mubr.bf16.gmra.mrb[0].mxu0 %v2920
      %v3065 = vpop.f32.mrb[0].mxu0
      %v3066 = vadd.f32 %v2881, %v3065
      %v3067 = vpop.f32.mrb[0].mxu0
      %v3068 = vpop.f32.mrb[0].mxu0
      %v3069 = vadd.f32 %v2881, %v3068
      %v3070 = vpop.f32.mrb[0].mxu0
      %3071 = vmatprep.mubr.bf16.mxu0 0
      %3072 = vmatmul.mubr.bf16.gmra.mrb[0].mxu0 %v2923
      %v3073 = vpop.f32.mrb[0].mxu0
      %v3074 = vadd.f32 %v2881, %v3073
      %v3075 = vpop.f32.mrb[0].mxu0
      %v3076 = vpop.f32.mrb[0].mxu0
      %v3077 = vadd.f32 %v2881, %v3076
      %v3078 = vpop.f32.mrb[0].mxu0
      %3079 = vmatprep.mubr.bf16.mxu0 0
      %3080 = vmatmul.mubr.bf16.gmra.mrb[0].mxu0 %v2926
      %v3081 = vpop.f32.mrb[0].mxu0
      %v3082 = vadd.f32 %v2881, %v3081
      %v3083 = vpop.f32.mrb[0].mxu0
      %v3084 = vpop.f32.mrb[0].mxu0
      %v3085 = vadd.f32 %v2881, %v3084
      %v3086 = vpop.f32.mrb[0].mxu0
      %3087 = vmatprep.mubr.bf16.mxu0 0
      %3088 = vmatmul.mubr.bf16.gmra.mrb[0].mxu0 %v2929
      %v3089 = vpop.f32.mrb[0].mxu0
      %v3090 = vadd.f32 %v2881, %v3089
      %v3091 = vpop.f32.mrb[0].mxu0
      %v3092 = vpop.f32.mrb[0].mxu0
      %v3093 = vadd.f32 %v2881, %v3092
      %v3094 = vpop.f32.mrb[0].mxu0
      %3095 = vmatprep.mubr.bf16.mxu0 0
      %3096 = vmatmul.mubr.bf16.gmra.mrb[0].mxu0 %v2932
      %v3097 = vpop.f32.mrb[0].mxu0
      %v3098 = vadd.f32 %v2881, %v3097
      %v3099 = vpop.f32.mrb[0].mxu0
      %v3100 = vpop.f32.mrb[0].mxu0
      %v3101 = vadd.f32 %v2881, %v3100
      %v3102 = vpop.f32.mrb[0].mxu0
      %3103 = vmatprep.mubr.bf16.mxu0 0
      %3104 = vmatmul.mubr.bf16.gmra.mrb[0].mxu0 %v2935
      %v3105 = vpop.f32.mrb[0].mxu0
      %v3106 = vadd.f32 %v2881, %v3105
      %v3107 = vpop.f32.mrb[0].mxu0
      %v3108 = vpop.f32.mrb[0].mxu0
      %v3109 = vadd.f32 %v2881, %v3108
      %v3110 = vpop.f32.mrb[0].mxu0
      %3111 = vmatprep.mubr.bf16.mxu0 0
      %3112 = vmatmul.mubr.bf16.gmra.mrb[0].mxu0 %v2938
      %v3113 = vpop.f32.mrb[0].mxu0
      %v3114 = vadd.f32 %v2881, %v3113
      %v3115 = vpop.f32.mrb[0].mxu0
      %v3116 = vpop.f32.mrb[0].mxu0
      %v3117 = vadd.f32 %v2881, %v3116
      %v3118 = vpop.f32.mrb[0].mxu0
      %3119 = vmatprep.mubr.bf16.mxu0 0
      %3120 = vmatmul.mubr.bf16.gmra.mrb[0].mxu0 %v2941
      %v3121 = vpop.f32.mrb[0].mxu0
      %v3122 = vadd.f32 %v2881, %v3121
      %v3123 = vpop.f32.mrb[0].mxu0
      %v3124 = vpop.f32.mrb[0].mxu0
      %v3125 = vadd.f32 %v2881, %v3124
      %v3126 = vpop.f32.mrb[0].mxu0
      %3127 = vmatprep.mubr.bf16.mxu0 0
      %3128 = vmatmul.mubr.bf16.gmra.mrb[0].mxu0 %v2944
      %v3129 = vpop.f32.mrb[0].mxu0
      %v3130 = vadd.f32 %v2881, %v3129
      %v3131 = vpop.f32.mrb[0].mxu0
      %v3132 = vpop.f32.mrb[0].mxu0
      %v3133 = vadd.f32 %v2881, %v3132
      %v3134 = vpop.f32.mrb[0].mxu0
      %3135 = vmatprep.mubr.bf16.mxu0 0
      %3136 = vmatmul.mubr.bf16.gmra.mrb[0].mxu0 %v2947
      %v3137 = vpop.f32.mrb[0].mxu0
      %v3138 = vadd.f32 %v2881, %v3137
      %v3139 = vpop.f32.mrb[0].mxu0
      %v3140 = vpop.f32.mrb[0].mxu0
      %v3141 = vadd.f32 %v2881, %v3140
      %v3142 = vpop.f32.mrb[0].mxu0
      %3143 = vmatprep.mubr.bf16.mxu0 0
      %3144 = vmatmul.mubr.bf16.gmra.mrb[0].mxu0 %v2950
      %v3145 = vpop.f32.mrb[0].mxu0
      %v3146 = vadd.f32 %v2881, %v3145
      %v3147 = vpop.f32.mrb[0].mxu0
      %v3148 = vpop.f32.mrb[0].mxu0
      %v3149 = vadd.f32 %v2881, %v3148
      %v3150 = vpop.f32.mrb[0].mxu0
      %3151 = vmatprep.mubr.bf16.mxu0 0
      %3152 = vmatmul.mubr.bf16.gmra.mrb[0].mxu0 %v2953
      %v3153 = vpop.f32.mrb[0].mxu0
      %v3154 = vadd.f32 %v2881, %v3153
      %v3155 = vpop.f32.mrb[0].mxu0
      %v3156 = vpop.f32.mrb[0].mxu0
      %v3157 = vadd.f32 %v2881, %v3156
      %v3158 = vpop.f32.mrb[0].mxu0
      %3159 = vmatprep.mubr.bf16.mxu0 0
      %3160 = vmatmul.mubr.bf16.gmra.mrb[0].mxu0 %v2956
      %v3161 = vpop.f32.mrb[0].mxu0
      %v3162 = vadd.f32 %v2881, %v3161
      %v3163 = vpop.f32.mrb[0].mxu0
      %v3164 = vpop.f32.mrb[0].mxu0
      %v3165 = vadd.f32 %v2881, %v3164
      %v3166 = vpop.f32.mrb[0].mxu0
      %3167 = vmatprep.mubr.bf16.mxu0 0
      %3168 = vmatmul.mubr.bf16.gmra.mrb[0].mxu0 %v2959
      %v3169 = vpop.f32.mrb[0].mxu0
      %v3170 = vadd.f32 %v2881, %v3169
      %v3171 = vpop.f32.mrb[0].mxu0
      %v3172 = vpop.f32.mrb[0].mxu0
      %v3173 = vadd.f32 %v2881, %v3172
      %v3174 = vpop.f32.mrb[0].mxu0
      %3175 = vmatprep.mubr.bf16.mxu0 0
      %3176 = vmatmul.mubr.bf16.gmra.mrb[0].mxu0 %v2962
      %v3177 = vpop.f32.mrb[0].mxu0
      %v3178 = vadd.f32 %v2881, %v3177
      %v3179 = vpop.f32.mrb[0].mxu0
      %v3180 = vpop.f32.mrb[0].mxu0
      %v3181 = vadd.f32 %v2881, %v3180
      %v3182 = vpop.f32.mrb[0].mxu0
      %3183 = vmatprep.mubr.bf16.mxu0 0
      %3184 = vmatmul.mubr.bf16.gmra.mrb[0].mxu0 %v2965
      %v3185 = vpop.f32.mrb[0].mxu0
      %v3186 = vadd.f32 %v2881, %v3185
      %v3187 = vpop.f32.mrb[0].mxu0
      %v3188 = vpop.f32.mrb[0].mxu0
      %v3189 = vadd.f32 %v2881, %v3188
      %v3190 = vpop.f32.mrb[0].mxu0
      %3191 = vdwg.mxu0
      %v3192 = vxor.u32 %v3002, 2147483648
      %v3193 = vxor.u32 %v3005, 2147483648
      %v3194 = vxor.u32 %v3010, 2147483648
      %v3195 = vxor.u32 %v3013, 2147483648
      %v3196 = vxor.u32 %v3018, 2147483648
      %v3197 = vxor.u32 %v3021, 2147483648
      %v3198 = vxor.u32 %v3026, 2147483648
      %v3199 = vxor.u32 %v3029, 2147483648
      %v3200 = vxor.u32 %v3034, 2147483648
      %v3201 = vxor.u32 %v3037, 2147483648
      %v3202 = vxor.u32 %v3042, 2147483648
      %v3203 = vxor.u32 %v3045, 2147483648
      %v3204 = vxor.u32 %v3050, 2147483648
      %v3205 = vxor.u32 %v3053, 2147483648
      %v3206 = vxor.u32 %v3058, 2147483648
      %v3207 = vxor.u32 %v3061, 2147483648
      %v3208 = vxor.u32 %v3066, 2147483648
      %v3209 = vxor.u32 %v3069, 2147483648
      %v3210 = vxor.u32 %v3074, 2147483648
      %v3211 = vxor.u32 %v3077, 2147483648
      %v3212 = vxor.u32 %v3082, 2147483648
      %v3213 = vxor.u32 %v3085, 2147483648
      %v3214 = vxor.u32 %v3090, 2147483648
      %v3215 = vxor.u32 %v3093, 2147483648
      %v3216 = vxor.u32 %v3098, 2147483648
      %v3217 = vxor.u32 %v3101, 2147483648
      %v3218 = vxor.u32 %v3106, 2147483648
      %v3219 = vxor.u32 %v3109, 2147483648
      %v3220 = vxor.u32 %v3114, 2147483648
      %v3221 = vxor.u32 %v3117, 2147483648
      %v3222 = vxor.u32 %v3122, 2147483648
      %v3223 = vxor.u32 %v3125, 2147483648
      %v3224 = vxor.u32 %v3130, 2147483648
      %v3225 = vxor.u32 %v3133, 2147483648
      %v3226 = vxor.u32 %v3138, 2147483648
      %v3227 = vxor.u32 %v3141, 2147483648
      %v3228 = vxor.u32 %v3146, 2147483648
      %v3229 = vxor.u32 %v3149, 2147483648
      %v3230 = vxor.u32 %v3154, 2147483648
      %v3231 = vxor.u32 %v3157, 2147483648
      %v3232 = vxor.u32 %v3162, 2147483648
      %v3233 = vxor.u32 %v3165, 2147483648
      %v3234 = vxor.u32 %v3170, 2147483648
      %v3235 = vxor.u32 %v3173, 2147483648
      %v3236 = vxor.u32 %v3178, 2147483648
      %v3237 = vxor.u32 %v3181, 2147483648
      %v3238 = vxor.u32 %v3186, 2147483648
      %v3239 = vxor.u32 %v3189, 2147483648
      %v3240 = vmul.f32 %v3192, 1.442695
      %v3241 = vpow.pop %v3240
      %v3242 = vmul.f32 %v3193, 1.442695
      %v3243 = vpow.pop %v3242
      %v3244 = vmul.f32 %v3194, 1.442695
      %v3245 = vpow.pop %v3244
      %v3246 = vmul.f32 %v3195, 1.442695
      %v3247 = vpow.pop %v3246
      %v3248 = vmul.f32 %v3196, 1.442695
      %v3249 = vpow.pop %v3248
      %v3250 = vmul.f32 %v3197, 1.442695
      %v3251 = vpow.pop %v3250
      %v3252 = vmul.f32 %v3198, 1.442695
      %v3253 = vpow.pop %v3252
      %v3254 = vmul.f32 %v3199, 1.442695
      %v3255 = vpow.pop %v3254
      %v3256 = vmul.f32 %v3200, 1.442695
      %v3257 = vpow.pop %v3256
      %v3258 = vmul.f32 %v3201, 1.442695
      %v3259 = vpow.pop %v3258
      %v3260 = vmul.f32 %v3202, 1.442695
      %v3261 = vpow.pop %v3260
      %v3262 = vmul.f32 %v3203, 1.442695
      %v3263 = vpow.pop %v3262
      %v3264 = vmul.f32 %v3204, 1.442695
      %v3265 = vpow.pop %v3264
      %v3266 = vmul.f32 %v3205, 1.442695
      %v3267 = vpow.pop %v3266
      %v3268 = vmul.f32 %v3206, 1.442695
      %v3269 = vpow.pop %v3268
      %v3270 = vmul.f32 %v3207, 1.442695
      %v3271 = vpow.pop %v3270
      %v3272 = vmul.f32 %v3208, 1.442695
      %v3273 = vpow.pop %v3272
      %v3274 = vmul.f32 %v3209, 1.442695
      %v3275 = vpow.pop %v3274
      %v3276 = vmul.f32 %v3210, 1.442695
      %v3277 = vpow.pop %v3276
      %v3278 = vmul.f32 %v3211, 1.442695
      %v3279 = vpow.pop %v3278
      %v3280 = vmul.f32 %v3212, 1.442695
      %v3281 = vpow.pop %v3280
      %v3282 = vmul.f32 %v3213, 1.442695
      %v3283 = vpow.pop %v3282
      %v3284 = vmul.f32 %v3214, 1.442695
      %v3285 = vpow.pop %v3284
      %v3286 = vmul.f32 %v3215, 1.442695
      %v3287 = vpow.pop %v3286
      %v3288 = vmul.f32 %v3216, 1.442695
      %v3289 = vpow.pop %v3288
      %v3290 = vmul.f32 %v3217, 1.442695
      %v3291 = vpow.pop %v3290
      %v3292 = vmul.f32 %v3218, 1.442695
      %v3293 = vpow.pop %v3292
      %v3294 = vmul.f32 %v3219, 1.442695
      %v3295 = vpow.pop %v3294
      %v3296 = vmul.f32 %v3220, 1.442695
      %v3297 = vpow.pop %v3296
      %v3298 = vmul.f32 %v3221, 1.442695
      %v3299 = vpow.pop %v3298
      %v3300 = vmul.f32 %v3222, 1.442695
      %v3301 = vpow.pop %v3300
      %v3302 = vmul.f32 %v3223, 1.442695
      %v3303 = vpow.pop %v3302
      %v3304 = vmul.f32 %v3224, 1.442695
      %v3305 = vpow.pop %v3304
      %v3306 = vmul.f32 %v3225, 1.442695
      %v3307 = vpow.pop %v3306
      %v3308 = vmul.f32 %v3226, 1.442695
      %v3309 = vpow.pop %v3308
      %v3310 = vmul.f32 %v3227, 1.442695
      %v3311 = vpow.pop %v3310
      %v3312 = vmul.f32 %v3228, 1.442695
      %v3313 = vpow.pop %v3312
      %v3314 = vmul.f32 %v3229, 1.442695
      %v3315 = vpow.pop %v3314
      %v3316 = vmul.f32 %v3230, 1.442695
      %v3317 = vpow.pop %v3316
      %v3318 = vmul.f32 %v3231, 1.442695
      %v3319 = vpow.pop %v3318
      %v3320 = vmul.f32 %v3232, 1.442695
      %v3321 = vpow.pop %v3320
      %v3322 = vmul.f32 %v3233, 1.442695
      %v3323 = vpow.pop %v3322
      %v3324 = vmul.f32 %v3234, 1.442695
      %v3325 = vpow.pop %v3324
      %v3326 = vmul.f32 %v3235, 1.442695
      %v3327 = vpow.pop %v3326
      %v3328 = vmul.f32 %v3236, 1.442695
      %v3329 = vpow.pop %v3328
      %v3330 = vmul.f32 %v3237, 1.442695
      %v3331 = vpow.pop %v3330
      %v3332 = vmul.f32 %v3238, 1.442695
      %v3333 = vpow.pop %v3332
      %v3334 = vmul.f32 %v3239, 1.442695
      %v3335 = vpow.pop %v3334
      %v3336 = vadd.f32 %v3241, 1.0
      %v3337 = vadd.f32 %v3243, 1.0
      %v3338 = vadd.f32 %v3245, 1.0
      %v3339 = vadd.f32 %v3247, 1.0
      %v3340 = vadd.f32 %v3249, 1.0
      %v3341 = vadd.f32 %v3251, 1.0
      %v3342 = vadd.f32 %v3253, 1.0
      %v3343 = vadd.f32 %v3255, 1.0
      %v3344 = vadd.f32 %v3257, 1.0
      %v3345 = vadd.f32 %v3259, 1.0
      %v3346 = vadd.f32 %v3261, 1.0
      %v3347 = vadd.f32 %v3263, 1.0
      %v3348 = vadd.f32 %v3265, 1.0
      %v3349 = vadd.f32 %v3267, 1.0
      %v3350 = vadd.f32 %v3269, 1.0
      %v3351 = vadd.f32 %v3271, 1.0
      %v3352 = vadd.f32 %v3273, 1.0
      %v3353 = vadd.f32 %v3275, 1.0
      %v3354 = vadd.f32 %v3277, 1.0
      %v3355 = vadd.f32 %v3279, 1.0
      %v3356 = vadd.f32 %v3281, 1.0
      %v3357 = vadd.f32 %v3283, 1.0
      %v3358 = vadd.f32 %v3285, 1.0
      %v3359 = vadd.f32 %v3287, 1.0
      %v3360 = vadd.f32 %v3289, 1.0
      %v3361 = vadd.f32 %v3291, 1.0
      %v3362 = vadd.f32 %v3293, 1.0
      %v3363 = vadd.f32 %v3295, 1.0
      %v3364 = vadd.f32 %v3297, 1.0
      %v3365 = vadd.f32 %v3299, 1.0
      %v3366 = vadd.f32 %v3301, 1.0
      %v3367 = vadd.f32 %v3303, 1.0
      %v3368 = vadd.f32 %v3305, 1.0
      %v3369 = vadd.f32 %v3307, 1.0
      %v3370 = vadd.f32 %v3309, 1.0
      %v3371 = vadd.f32 %v3311, 1.0
      %v3372 = vadd.f32 %v3313, 1.0
      %v3373 = vadd.f32 %v3315, 1.0
      %v3374 = vadd.f32 %v3317, 1.0
      %v3375 = vadd.f32 %v3319, 1.0
      %v3376 = vadd.f32 %v3321, 1.0
      %v3377 = vadd.f32 %v3323, 1.0
      %v3378 = vadd.f32 %v3325, 1.0
      %v3379 = vadd.f32 %v3327, 1.0
      %v3380 = vadd.f32 %v3329, 1.0
      %v3381 = vadd.f32 %v3331, 1.0
      %v3382 = vadd.f32 %v3333, 1.0
      %v3383 = vadd.f32 %v3335, 1.0
      %v3384 = vrcp.pop %v3336
      %v3385 = vmul.f32 1.0, %v3384
      %v3386 = vrcp.pop %v3337
      %v3387 = vmul.f32 1.0, %v3386
      %v3388 = vrcp.pop %v3338
      %v3389 = vmul.f32 1.0, %v3388
      %v3390 = vrcp.pop %v3339
      %v3391 = vmul.f32 1.0, %v3390
      %v3392 = vrcp.pop %v3340
      %v3393 = vmul.f32 1.0, %v3392
      %v3394 = vrcp.pop %v3341
      %v3395 = vmul.f32 1.0, %v3394
      %v3396 = vrcp.pop %v3342
      %v3397 = vmul.f32 1.0, %v3396
      %v3398 = vrcp.pop %v3343
      %v3399 = vmul.f32 1.0, %v3398
      %v3400 = vrcp.pop %v3344
      %v3401 = vmul.f32 1.0, %v3400
      %v3402 = vrcp.pop %v3345
      %v3403 = vmul.f32 1.0, %v3402
      %v3404 = vrcp.pop %v3346
      %v3405 = vmul.f32 1.0, %v3404
      %v3406 = vrcp.pop %v3347
      %v3407 = vmul.f32 1.0, %v3406
      %v3408 = vrcp.pop %v3348
      %v3409 = vmul.f32 1.0, %v3408
      %v3410 = vrcp.pop %v3349
      %v3411 = vmul.f32 1.0, %v3410
      %v3412 = vrcp.pop %v3350
      %v3413 = vmul.f32 1.0, %v3412
      %v3414 = vrcp.pop %v3351
      %v3415 = vmul.f32 1.0, %v3414
      %v3416 = vrcp.pop %v3352
      %v3417 = vmul.f32 1.0, %v3416
      %v3418 = vrcp.pop %v3353
      %v3419 = vmul.f32 1.0, %v3418
      %v3420 = vrcp.pop %v3354
      %v3421 = vmul.f32 1.0, %v3420
      %v3422 = vrcp.pop %v3355
      %v3423 = vmul.f32 1.0, %v3422
      %v3424 = vrcp.pop %v3356
      %v3425 = vmul.f32 1.0, %v3424
      %v3426 = vrcp.pop %v3357
      %v3427 = vmul.f32 1.0, %v3426
      %v3428 = vrcp.pop %v3358
      %v3429 = vmul.f32 1.0, %v3428
      %v3430 = vrcp.pop %v3359
      %v3431 = vmul.f32 1.0, %v3430
      %v3432 = vrcp.pop %v3360
      %v3433 = vmul.f32 1.0, %v3432
      %v3434 = vrcp.pop %v3361
      %v3435 = vmul.f32 1.0, %v3434
      %v3436 = vrcp.pop %v3362
      %v3437 = vmul.f32 1.0, %v3436
      %v3438 = vrcp.pop %v3363
      %v3439 = vmul.f32 1.0, %v3438
      %v3440 = vrcp.pop %v3364
      %v3441 = vmul.f32 1.0, %v3440
      %v3442 = vrcp.pop %v3365
      %v3443 = vmul.f32 1.0, %v3442
      %v3444 = vrcp.pop %v3366
      %v3445 = vmul.f32 1.0, %v3444
      %v3446 = vrcp.pop %v3367
      %v3447 = vmul.f32 1.0, %v3446
      %v3448 = vrcp.pop %v3368
      %v3449 = vmul.f32 1.0, %v3448
      %v3450 = vrcp.pop %v3369
      %v3451 = vmul.f32 1.0, %v3450
      %v3452 = vrcp.pop %v3370
      %v3453 = vmul.f32 1.0, %v3452
      %v3454 = vrcp.pop %v3371
      %v3455 = vmul.f32 1.0, %v3454
      %v3456 = vrcp.pop %v3372
      %v3457 = vmul.f32 1.0, %v3456
      %v3458 = vrcp.pop %v3373
      %v3459 = vmul.f32 1.0, %v3458
      %v3460 = vrcp.pop %v3374
      %v3461 = vmul.f32 1.0, %v3460
      %v3462 = vrcp.pop %v3375
      %v3463 = vmul.f32 1.0, %v3462
      %v3464 = vrcp.pop %v3376
      %v3465 = vmul.f32 1.0, %v3464
      %v3466 = vrcp.pop %v3377
      %v3467 = vmul.f32 1.0, %v3466
      %v3468 = vrcp.pop %v3378
      %v3469 = vmul.f32 1.0, %v3468
      %v3470 = vrcp.pop %v3379
      %v3471 = vmul.f32 1.0, %v3470
      %v3472 = vrcp.pop %v3380
      %v3473 = vmul.f32 1.0, %v3472
      %v3474 = vrcp.pop %v3381
      %v3475 = vmul.f32 1.0, %v3474
      %v3476 = vrcp.pop %v3382
      %v3477 = vmul.f32 1.0, %v3476
      %v3478 = vrcp.pop %v3383
      %v3479 = vmul.f32 1.0, %v3478
      %v3480 = vpack.c.bf16 %v3387, %v3385
      %v3481 = vpack.c.bf16 %v3391, %v3389
      %v3482 = vpack.c.bf16 %v3395, %v3393
      %v3483 = vpack.c.bf16 %v3399, %v3397
      %v3484 = vpack.c.bf16 %v3403, %v3401
      %v3485 = vpack.c.bf16 %v3407, %v3405
      %v3486 = vpack.c.bf16 %v3411, %v3409
      %v3487 = vpack.c.bf16 %v3415, %v3413
      %v3488 = vpack.c.bf16 %v3419, %v3417
      %v3489 = vpack.c.bf16 %v3423, %v3421
      %v3490 = vpack.c.bf16 %v3427, %v3425
      %v3491 = vpack.c.bf16 %v3431, %v3429
      %v3492 = vpack.c.bf16 %v3435, %v3433
      %v3493 = vpack.c.bf16 %v3439, %v3437
      %v3494 = vpack.c.bf16 %v3443, %v3441
      %v3495 = vpack.c.bf16 %v3447, %v3445
      %v3496 = vpack.c.bf16 %v3451, %v3449
      %v3497 = vpack.c.bf16 %v3455, %v3453
      %v3498 = vpack.c.bf16 %v3459, %v3457
      %v3499 = vpack.c.bf16 %v3463, %v3461
      %v3500 = vpack.c.bf16 %v3467, %v3465
      %v3501 = vpack.c.bf16 %v3471, %v3469
      %v3502 = vpack.c.bf16 %v3475, %v3473
      %v3503 = vpack.c.bf16 %v3479, %v3477
      %v3528 = vunpack.c.l.b16 %v3480
      %v3529 = vunpack.c.h.b16 %v3480
      %v3530 = vunpack.c.l.b16 %v3481
      %v3531 = vunpack.c.h.b16 %v3481
      %v3532 = vunpack.c.l.b16 %v3482
      %v3533 = vunpack.c.h.b16 %v3482
      %v3534 = vunpack.c.l.b16 %v3483
      %v3535 = vunpack.c.h.b16 %v3483
      %v3536 = vunpack.c.l.b16 %v3484
      %v3537 = vunpack.c.h.b16 %v3484
      %v3538 = vunpack.c.l.b16 %v3485
      %v3539 = vunpack.c.h.b16 %v3485
      %v3540 = vunpack.c.l.b16 %v3486
      %v3541 = vunpack.c.h.b16 %v3486
      %v3542 = vunpack.c.l.b16 %v3487
      %v3543 = vunpack.c.h.b16 %v3487
      %v3544 = vunpack.c.l.b16 %v3488
      %v3545 = vunpack.c.h.b16 %v3488
      %v3546 = vunpack.c.l.b16 %v3489
      %v3547 = vunpack.c.h.b16 %v3489
      %v3548 = vunpack.c.l.b16 %v3490
      %v3549 = vunpack.c.h.b16 %v3490
      %v3550 = vunpack.c.l.b16 %v3491
      %v3551 = vunpack.c.h.b16 %v3491
      %v3552 = vunpack.c.l.b16 %v3492
      %v3553 = vunpack.c.h.b16 %v3492
      %v3554 = vunpack.c.l.b16 %v3493
      %v3555 = vunpack.c.h.b16 %v3493
      %v3556 = vunpack.c.l.b16 %v3494
      %v3557 = vunpack.c.h.b16 %v3494
      %v3558 = vunpack.c.l.b16 %v3495
      %v3559 = vunpack.c.h.b16 %v3495
      %v3560 = vunpack.c.l.b16 %v3496
      %v3561 = vunpack.c.h.b16 %v3496
      %v3562 = vunpack.c.l.b16 %v3497
      %v3563 = vunpack.c.h.b16 %v3497
      %v3564 = vunpack.c.l.b16 %v3498
      %v3565 = vunpack.c.h.b16 %v3498
      %v3566 = vunpack.c.l.b16 %v3499
      %v3567 = vunpack.c.h.b16 %v3499
      %v3568 = vunpack.c.l.b16 %v3500
      %v3569 = vunpack.c.h.b16 %v3500
      %v3570 = vunpack.c.l.b16 %v3501
      %v3571 = vunpack.c.h.b16 %v3501
      %v3572 = vunpack.c.l.b16 %v3502
      %v3573 = vunpack.c.h.b16 %v3502
      %v3574 = vunpack.c.l.b16 %v3503
      %v3575 = vunpack.c.h.b16 %v3503
      %v3576 = vpack.c.b16 %v3528, %v3528
      %v3577 = vpack.c.b16 %v3529, %v3529
      %v3578 = vpack.c.b16 %v3530, %v3530
      %v3579 = vpack.c.b16 %v3531, %v3531
      %v3580 = vpack.c.b16 %v3532, %v3532
      %v3581 = vpack.c.b16 %v3533, %v3533
      %v3582 = vpack.c.b16 %v3534, %v3534
      %v3583 = vpack.c.b16 %v3535, %v3535
      %v3584 = vpack.c.b16 %v3536, %v3536
      %v3585 = vpack.c.b16 %v3537, %v3537
      %v3586 = vpack.c.b16 %v3538, %v3538
      %v3587 = vpack.c.b16 %v3539, %v3539
      %v3588 = vpack.c.b16 %v3540, %v3540
      %v3589 = vpack.c.b16 %v3541, %v3541
      %v3590 = vpack.c.b16 %v3542, %v3542
      %v3591 = vpack.c.b16 %v3543, %v3543
      %v3592 = vpack.c.b16 %v3544, %v3544
      %v3593 = vpack.c.b16 %v3545, %v3545
      %v3594 = vpack.c.b16 %v3546, %v3546
      %v3595 = vpack.c.b16 %v3547, %v3547
      %v3596 = vpack.c.b16 %v3548, %v3548
      %v3597 = vpack.c.b16 %v3549, %v3549
      %v3598 = vpack.c.b16 %v3550, %v3550
      %v3599 = vpack.c.b16 %v3551, %v3551
      %v3600 = vpack.c.b16 %v3552, %v3552
      %v3601 = vpack.c.b16 %v3553, %v3553
      %v3602 = vpack.c.b16 %v3554, %v3554
      %v3603 = vpack.c.b16 %v3555, %v3555
      %v3604 = vpack.c.b16 %v3556, %v3556
      %v3605 = vpack.c.b16 %v3557, %v3557
      %v3606 = vpack.c.b16 %v3558, %v3558
      %v3607 = vpack.c.b16 %v3559, %v3559
      %v3608 = vpack.c.b16 %v3560, %v3560
      %v3609 = vpack.c.b16 %v3561, %v3561
      %v3610 = vpack.c.b16 %v3562, %v3562
      %v3611 = vpack.c.b16 %v3563, %v3563
      %v3612 = vpack.c.b16 %v3564, %v3564
      %v3613 = vpack.c.b16 %v3565, %v3565
      %v3614 = vpack.c.b16 %v3566, %v3566
      %v3615 = vpack.c.b16 %v3567, %v3567
      %v3616 = vpack.c.b16 %v3568, %v3568
      %v3617 = vpack.c.b16 %v3569, %v3569
      %v3618 = vpack.c.b16 %v3570, %v3570
      %v3619 = vpack.c.b16 %v3571, %v3571
      %v3620 = vpack.c.b16 %v3572, %v3572
      %v3621 = vpack.c.b16 %v3573, %v3573
      %v3622 = vpack.c.b16 %v3574, %v3574
      %v3623 = vpack.c.b16 %v3575, %v3575
      %vm3672 = vcmask 257024
      %3673 = vst.msk [vmem:[%s253] sm:$0xf] %vm3672, %v3576
      %3674 = vst.msk [vmem:[%s253 + $0x4] sm:$0xf] %vm3672, %v3577
      %3675 = vst.msk [vmem:[%s253 + $0x8] sm:$0xf] %vm3672, %v3578
      %3676 = vst.msk [vmem:[%s253 + $0xc] sm:$0xf] %vm3672, %v3579
      %3677 = vst.msk [vmem:[%s253 + $0x10] sm:$0xf] %vm3672, %v3580
      %3678 = vst.msk [vmem:[%s253 + $0x14] sm:$0xf] %vm3672, %v3581
      %3679 = vst.msk [vmem:[%s253 + $0x18] sm:$0xf] %vm3672, %v3582
      %3680 = vst.msk [vmem:[%s253 + $0x1c] sm:$0xf] %vm3672, %v3583
      %3681 = vst.msk [vmem:[%s253 + $0x20] sm:$0xf] %vm3672, %v3584
      %3682 = vst.msk [vmem:[%s253 + $0x24] sm:$0xf] %vm3672, %v3585
      %3683 = vst.msk [vmem:[%s253 + $0x28] sm:$0xf] %vm3672, %v3586
      %3684 = vst.msk [vmem:[%s253 + $0x2c] sm:$0xf] %vm3672, %v3587
      %3685 = vst.msk [vmem:[%s253 + $0x30] sm:$0xf] %vm3672, %v3588
      %3686 = vst.msk [vmem:[%s253 + $0x34] sm:$0xf] %vm3672, %v3589
      %3687 = vst.msk [vmem:[%s253 + $0x38] sm:$0xf] %vm3672, %v3590
      %3688 = vst.msk [vmem:[%s253 + $0x3c] sm:$0xf] %vm3672, %v3591
      %3689 = vst.msk [vmem:[%s253 + $0x40] sm:$0xf] %vm3672, %v3592
      %3690 = vst.msk [vmem:[%s253 + $0x44] sm:$0xf] %vm3672, %v3593
      %3691 = vst.msk [vmem:[%s253 + $0x48] sm:$0xf] %vm3672, %v3594
      %3692 = vst.msk [vmem:[%s253 + $0x4c] sm:$0xf] %vm3672, %v3595
      %3693 = vst.msk [vmem:[%s253 + $0x50] sm:$0xf] %vm3672, %v3596
      %3694 = vst.msk [vmem:[%s253 + $0x54] sm:$0xf] %vm3672, %v3597
      %3695 = vst.msk [vmem:[%s253 + $0x58] sm:$0xf] %vm3672, %v3598
      %3696 = vst.msk [vmem:[%s253 + $0x5c] sm:$0xf] %vm3672, %v3599
      %3697 = vst.msk [vmem:[%s253 + $0x60] sm:$0xf] %vm3672, %v3600
      %3698 = vst.msk [vmem:[%s253 + $0x64] sm:$0xf] %vm3672, %v3601
      %3699 = vst.msk [vmem:[%s253 + $0x68] sm:$0xf] %vm3672, %v3602
      %3700 = vst.msk [vmem:[%s253 + $0x6c] sm:$0xf] %vm3672, %v3603
      %3701 = vst.msk [vmem:[%s253 + $0x70] sm:$0xf] %vm3672, %v3604
      %3702 = vst.msk [vmem:[%s253 + $0x74] sm:$0xf] %vm3672, %v3605
      %3703 = vst.msk [vmem:[%s253 + $0x78] sm:$0xf] %vm3672, %v3606
      %3704 = vst.msk [vmem:[%s253 + $0x7c] sm:$0xf] %vm3672, %v3607
      %3705 = vst.msk [vmem:[%s253 + $0x80] sm:$0xf] %vm3672, %v3608
      %3706 = vst.msk [vmem:[%s253 + $0x84] sm:$0xf] %vm3672, %v3609
      %3707 = vst.msk [vmem:[%s253 + $0x88] sm:$0xf] %vm3672, %v3610
      %3708 = vst.msk [vmem:[%s253 + $0x8c] sm:$0xf] %vm3672, %v3611
      %3709 = vst.msk [vmem:[%s253 + $0x90] sm:$0xf] %vm3672, %v3612
      %3710 = vst.msk [vmem:[%s253 + $0x94] sm:$0xf] %vm3672, %v3613
      %3711 = vst.msk [vmem:[%s253 + $0x98] sm:$0xf] %vm3672, %v3614
      %3712 = vst.msk [vmem:[%s253 + $0x9c] sm:$0xf] %vm3672, %v3615
      %3713 = vst.msk [vmem:[%s253 + $0xa0] sm:$0xf] %vm3672, %v3616
      %3714 = vst.msk [vmem:[%s253 + $0xa4] sm:$0xf] %vm3672, %v3617
      %3715 = vst.msk [vmem:[%s253 + $0xa8] sm:$0xf] %vm3672, %v3618
      %3716 = vst.msk [vmem:[%s253 + $0xac] sm:$0xf] %vm3672, %v3619
      %3717 = vst.msk [vmem:[%s253 + $0xb0] sm:$0xf] %vm3672, %v3620
      %3718 = vst.msk [vmem:[%s253 + $0xb4] sm:$0xf] %vm3672, %v3621
      %3719 = vst.msk [vmem:[%s253 + $0xb8] sm:$0xf] %vm3672, %v3622
      %3720 = vst.msk [vmem:[%s253 + $0xbc] sm:$0xf] %vm3672, %v3623
      %s3721 = smul.u32 48, %s17
      %p3722 = scmp.lt.s32.totalorder %s3721, 95
      %s3723 = scalar_select %p3722, %s3721, 95
      %s3724 = smul.addr %s3723, 4
      %s3725 = scalar_lea.vmem %s6, %s3724
      // Predicated region
      $region45: #{tpu_custom_call.1} parent=43 // pred_check
        %p3726 = pneg %p166
      $region46: #{tpu_custom_call.1} parent=43 // pred_check_branch
        %3728 = sbr.rel (%p3726) target = $region48
      $region47: #{tpu_custom_call.1} parent=43 // pred_region
        %s3729 = smul.u32 48, %s17
      $region48: #{tpu_custom_call.1} parent=43 // pred_fallthru
        _
    $region44: #{tpu_custom_call.1} parent=5 // pred_fallthru
      _
    %p3730 = scmp.le.s32.totalorder 2, %s12
    // Predicated region
    $region49: #{tpu_custom_call.1} parent=5 // pred_check
      %p3731 = pneg %p3730
    $region50: #{tpu_custom_call.1} parent=5 // pred_check_branch
      %3733 = sbr.rel (%p3731) target = $region52
    $region51: #{tpu_custom_call.1} parent=5 // pred_region
      %s3734 = ssub.s32 %s12, 2
      // Predicated region
      $region53: #{tpu_custom_call.1} parent=51 // pred_check
        %p3735 = pneg %p172
      $region54: #{tpu_custom_call.1} parent=51 // pred_check_branch
        %3737 = sbr.rel (%p3735) target = $region56
      $region55: #{tpu_custom_call.1} parent=51 // pred_region
        %s3738 = smul.u32 48, %s18
        %p3739 = scmp.lt.s32.totalorder %s3738, 95
        %s3740 = scalar_select %p3739, %s3738, 95
        %s3741 = smul.addr %s3740, 4
        %s3742 = scalar_lea.vmem %s6, %s3741
      $region56: #{tpu_custom_call.1} parent=51 // pred_fallthru
        _
    $region52: #{tpu_custom_call.1} parent=5 // pred_fallthru
      _
  $region6: #{tpu_custom_call.1} parent=0 // loop_footer
    %s16 = sadd.s32 1, %s12
  $region7: #{tpu_custom_call.1} parent=0 // loop_footer_branch
    %11 = sbr.rel target = $region3
  $region8: #{tpu_custom_call.1} parent=0 // loop_exit
    _

</llo_original>
